<compile_context>
chip_gen: v7x
topology: tpu7x:2x2x1
jax: 0.10.0
libtpu: 0.0.40
codegen_flags: <defaults>
</compile_context>

<pallas_src>
import functools
import numpy as np
import jax
import jax.numpy as jnp
from jax import lax
from jax.experimental import pallas as pl
from jax.experimental.pallas import tpu as pltpu

FAAR_DIM = 512        # hard-coded in ForegroundAwareRefinementModel(512, num_classes)
FAAR_F_MAPS = 64
FAAR_LAYERS = 3


# -----------------------------------------------------------------------------
# Pallas kernel: conv1x1 -> [dilated residual layer]*L -> conv1x1 (per batch)
# -----------------------------------------------------------------------------
def _tcn_kernel(*refs, dilations, has_mask, use_layer_mask, apply_input_softmax):
    if has_mask:
        (x_ref, mask_ref, w_in_ref, b_in_ref, wd_ref, bd_ref,
         w11_ref, b11_ref, w_out_ref, b_out_ref, o_ref) = refs
    else:
        (x_ref, w_in_ref, b_in_ref, wd_ref, bd_ref,
         w11_ref, b11_ref, w_out_ref, b_out_ref, o_ref) = refs
        mask_ref = None

    x_raw = x_ref[0]                                   # [T, Cin] (f32 or bf16)
    m = None
    if has_mask:
        m = mask_ref[0].astype(jnp.float32)            # [T, 1]

    if apply_input_softmax:
        # F.softmax(out, dim=1) * mask[:, 0:1, :]  (channel softmax) in f32
        x = x_raw.astype(jnp.float32)
        x_max = jnp.max(x, axis=-1, keepdims=True)
        ex = jnp.exp(x - x_max)
        x = ex / jnp.sum(ex, axis=-1, keepdims=True)
        x = x * m
        x_in = x.astype(jnp.bfloat16)
    else:
        x_in = x_raw.astype(jnp.bfloat16)

    # conv_1x1 (kernel size 1) == channel matmul on the MXU (bf16 in, f32 acc)
    h = jnp.dot(x_in, w_in_ref[...], preferred_element_type=jnp.float32) + b_in_ref[...]
    T, F = h.shape

    # [T, 1] iota for the dilation boundary masks (keeps vreg pressure low).
    row = lax.broadcasted_iota(jnp.int32, (T, 1), 0)

    for i, d in enumerate(dilations):
        # dilated conv (k=3, padding=d, dilation=d): taps at t-d, t, t+d, zero-padded.
        lm = (row >= d).astype(jnp.float32)            # valid where t-d >= 0
        rm = (row < T - d).astype(jnp.float32)         # valid where t+d < T
        left = pltpu.roll(h, shift=d % T, axis=0) * lm
        right = pltpu.roll(h, shift=(T - d) % T, axis=0) * rm
        # Fuse the three taps into one K=3F matmul to fill the MXU.
        xcat = jnp.concatenate([left, h, right], axis=-1).astype(jnp.bfloat16)  # [T, 3F]
        y = jnp.dot(xcat, wd_ref[i], preferred_element_type=jnp.float32) + bd_ref[i:i + 1]
        y = jnp.maximum(y, 0.0)                                                  # ReLU (f32)
        y = (jnp.dot(y.astype(jnp.bfloat16), w11_ref[i],
                     preferred_element_type=jnp.float32) + b11_ref[i:i + 1])
        # TODO(synk): nn.Dropout treated as identity (eval/inference mode)
        h = h + y                                                                # residual
        if use_layer_mask:
            h = h * m

    out = (jnp.dot(h.astype(jnp.bfloat16), w_out_ref[...],
                   preferred_element_type=jnp.float32) + b_out_ref[...])
    o_ref[0] = out.astype(o_ref.dtype)                 # lane-dense [T, CP] store


def tcn_stack(x_btc, mask_bt1, p, dilations, *, use_layer_mask, apply_input_softmax):
    """x_btc: [B, T, Cin], mask_bt1: [B, T, 1] or None -> logits [B, T, Cout] (f32)."""
    B, T, Cin = x_btc.shape
    F = p["w_in"].shape[1]
    Cout = p["w_out"].shape[1]
    CP = max(128, ((Cout + 127) // 128) * 128)          # lane-dense output width
    has_mask = mask_bt1 is not None
    if not has_mask:
        assert not use_layer_mask and not apply_input_softmax

    # Zero-pad conv_out to CP lanes (sliced back to Cout after the call).
    w_out = jnp.pad(p["w_out"], ((0, 0), (0, CP - Cout)))
    b_out = jnp.pad(p["b_out"], ((0, 0), (0, CP - Cout)))

    kern = functools.partial(
        _tcn_kernel,
        dilations=tuple(int(d) for d in dilations),
        has_mask=has_mask,
        use_layer_mask=use_layer_mask,
        apply_input_softmax=apply_input_softmax)

    def rep(arr):
        r = arr.ndim
        return pl.BlockSpec(arr.shape, lambda b, r=r: (0,) * r)

    in_arrays = [x_btc]
    in_specs = [pl.BlockSpec((1, T, Cin), lambda b: (b, 0, 0))]
    if has_mask:
        in_arrays.append(mask_bt1)
        in_specs.append(pl.BlockSpec((1, T, 1), lambda b: (b, 0, 0)))
    weights = [p["w_in"], p["b_in"], p["wd"], p["bd"], p["w11"], p["b11"], w_out, b_out]
    in_arrays += weights
    in_specs += [rep(a) for a in weights]

    L = len(dilations)
    flops = int(2 * B * T * (Cin * F + L * (3 * F * F + F * F) + F * CP))
    transc = int(B * T * Cin) if apply_input_softmax else 0
    bytes_accessed = int(sum(a.size * a.dtype.itemsize for a in in_arrays) + B * T * CP * 4)

    out = pl.pallas_call(
        kern,
        out_shape=jax.ShapeDtypeStruct((B, T, CP), jnp.float32),
        grid_spec=pltpu.PrefetchScalarGridSpec(
            num_scalar_prefetch=0,
            grid=(B,),
            in_specs=in_specs,
            out_specs=pl.BlockSpec((1, T, CP), lambda b: (b, 0, 0)),
        ),
        compiler_params=pltpu.CompilerParams(
            dimension_semantics=("parallel",),
            vmem_limit_bytes=48 * 1024 * 1024,          # headroom even on v7x (64 MiB phys)
        ),
        cost_estimate=pl.CostEstimate(
            flops=flops, transcendentals=transc, bytes_accessed=bytes_accessed),
    )(*in_arrays)
    return out[:, :, :Cout]


# -----------------------------------------------------------------------------
# Parameter init (deterministic, PyTorch-Conv1d-style uniform bounds)
# -----------------------------------------------------------------------------
def _init_conv1d(key, in_ch, out_ch, ksize):
    bound = 1.0 / np.sqrt(in_ch * ksize)
    kw, kb = jax.random.split(key)
    w = jax.random.uniform(kw, (out_ch, in_ch, ksize), jnp.float32, -bound, bound)
    b = jax.random.uniform(kb, (out_ch,), jnp.float32, -bound, bound)
    return w, b


def init_trunk_params(key, num_layers, num_f_maps, in_dim, num_classes):
    keys = jax.random.split(key, 2 + 2 * num_layers)
    w_in, b_in = _init_conv1d(keys[0], in_dim, num_f_maps, 1)
    wd_l, bd_l, w11_l, b11_l = [], [], [], []
    for i in range(num_layers):
        wdi, bdi = _init_conv1d(keys[1 + 2 * i], num_f_maps, num_f_maps, 3)
        w1i, b1i = _init_conv1d(keys[2 + 2 * i], num_f_maps, num_f_maps, 1)
        # Fused dilated weight [3F, F]: rows 0:F -> tap x[t-d], F:2F -> x[t], 2F:3F -> x[t+d].
        wd_fused = jnp.concatenate(
            [wdi[:, :, 0].T, wdi[:, :, 1].T, wdi[:, :, 2].T], axis=0)
        wd_l.append(wd_fused)
        bd_l.append(bdi)
        w11_l.append(w1i[:, :, 0].T)
        b11_l.append(b1i)
    w_out, b_out = _init_conv1d(keys[-1], num_f_maps, num_classes, 1)
    bf = jnp.bfloat16
    return dict(
        w_in=w_in[:, :, 0].T.astype(bf), b_in=b_in[None, :],
        wd=jnp.stack(wd_l, 0).astype(bf), bd=jnp.stack(bd_l, 0),
        w11=jnp.stack(w11_l, 0).astype(bf), b11=jnp.stack(b11_l, 0),
        w_out=w_out[:, :, 0].T.astype(bf), b_out=b_out[None, :],
    )


def init_multistage_params(key, num_stages, num_layers, num_f_maps, dim, num_classes):
    keys = jax.random.split(key, 2 * num_stages)
    params = []
    for s in range(num_stages):
        in_dim = dim if s == 0 else num_classes
        params.append(dict(
            tcn=init_trunk_params(keys[2 * s], num_layers, num_f_maps, in_dim, num_classes),
            faar=init_trunk_params(keys[2 * s + 1], FAAR_LAYERS, FAAR_F_MAPS, FAAR_DIM, num_classes),
        ))
    return params


# -----------------------------------------------------------------------------
# FAAR + single stage + multi stage (glue around the Pallas trunk)
# -----------------------------------------------------------------------------
def faar_forward(feats_btcf, raw_logits_btc, faar_p, k, fg_weight):
    """feats_btcf: [B, T, C, 512] (pre-transposed bf16), raw_logits_btc: [B, T, C]."""
    B, T, C = raw_logits_btc.shape
    if k == 1:
        # top-1: argmax gather; softmax over a size-1 axis is identically 1.
        idx = jnp.argmax(raw_logits_btc, axis=-1)                              # [B, T]
        fg = jnp.take_along_axis(feats_btcf, idx[..., None, None], axis=2)     # [B, T, 1, 512]
        x = fg.reshape(B, T, FAAR_DIM)
        weighted = tcn_stack(x, None, faar_p, (1, 2, 4),
                             use_layer_mask=False, apply_input_softmax=False)  # [B, T, C]
    else:
        topk_values, topk_indices = lax.top_k(raw_logits_btc, k)               # [B, T, k]
        fg = jnp.take_along_axis(feats_btcf, topk_indices[..., None], axis=2)  # [B, T, k, 512]
        x = jnp.transpose(fg, (0, 2, 1, 3)).reshape(B * k, T, FAAR_DIM)
        out = tcn_stack(x, None, faar_p, (1, 2, 4),
                        use_layer_mask=False, apply_input_softmax=False)       # [B*k, T, C]
        out = out.reshape(B, k, T, C)
        w = jax.nn.softmax(topk_values.astype(jnp.float32), axis=-1)           # softmax over k
        weighted = jnp.einsum("bktc,btk->btc", out, w)
    return (raw_logits_btc + fg_weight * weighted) / (1.0 + fg_weight)


def single_stage(x_btc, feats_btcf, mask_bt1, stage_p, num_layers, k, fg_weight,
                 apply_input_softmax):
    dil = tuple(2 ** i for i in range(num_layers))
    logits = tcn_stack(x_btc, mask_bt1, stage_p["tcn"], dil,
                       use_layer_mask=True, apply_input_softmax=apply_input_softmax)
    refined = faar_forward(feats_btcf, logits, stage_p["faar"], k, fg_weight)
    return refined * mask_bt1


def multi_stage_forward(params, x_bdT, fg_bg_feat, mask_bCT, *, num_layers, k=1, fg_weight=1.0):
    x = jnp.transpose(x_bdT, (0, 2, 1))                     # [B, T, dim]
    m = jnp.transpose(mask_bCT[:, 0:1, :], (0, 2, 1))       # [B, T, 1]
    # Hoist the FAAR feature slice + transpose out of the stage loop; bf16 halves
    # the HBM bytes touched by the per-stage gather.
    feats = jnp.transpose(fg_bg_feat[:, :, :FAAR_DIM, :], (0, 3, 1, 2)).astype(jnp.bfloat16)
    out = single_stage(x, feats, m, params[0], num_layers, k, fg_weight,
                       apply_input_softmax=False)
    outputs = [out]
    for s in range(1, len(params)):
        out = single_stage(out, feats, m, params[s], num_layers, k, fg_weight,
                           apply_input_softmax=True)
        outputs.append(out)
    outs = jnp.stack(outputs, axis=0)                       # [S, B, T, C]
    return jnp.transpose(outs, (0, 1, 3, 2))                # [S, B, C, T]


# -----------------------------------------------------------------------------
if __name__ == "__main__":
    B, T = 2, 16
    dim, num_f_maps, num_layers, num_stages, num_classes = 64, 32, 3, 2, 6
    k_top, fg_weight = 1, 1.0

    key = jax.random.PRNGKey(0)
    kx, kf, kp = jax.random.split(key, 3)
    x = jax.random.normal(kx, (B, dim, T), dtype=jnp.float32)                       # [B, dim, T]
    fg_bg_feat = jax.random.normal(kf, (B, num_classes, FAAR_DIM, T), jnp.float32)  # [B, C, 512, T]
    lengths = jnp.array([T, 12])
    valid = (jnp.arange(T)[None, :] < lengths[:, None]).astype(jnp.float32)         # [B, T]
    mask = jnp.broadcast_to(valid[:, None, :], (B, num_classes, T))                 # [B, C, T]

    params = init_multistage_params(kp, num_stages, num_layers, num_f_maps, dim, num_classes)

    fwd = jax.jit(functools.partial(multi_stage_forward,
                                    num_layers=num_layers, k=k_top, fg_weight=fg_weight))
    out = fwd(params, x, fg_bg_feat, mask)
    out = jax.block_until_ready(out)
    assert out.shape == (num_stages, B, num_classes, T), out.shape
    assert jnp.all(jnp.isfinite(out))
    print("KERNEL_OK")
</pallas_src>

<mosaic_0001>
module attributes {stable_mosaic.version = 11 : i64} {
  func.func @_tcn_kernel(%arg0: i32, %arg1: memref<1x16x64xf32, #tpu.memory_space<vmem>>, %arg2: memref<1x16x1xf32, #tpu.memory_space<vmem>>, %arg3: memref<64x32xbf16, #tpu.memory_space<vmem>>, %arg4: memref<1x32xf32, #tpu.memory_space<vmem>>, %arg5: memref<3x96x32xbf16, #tpu.memory_space<vmem>>, %arg6: memref<3x32xf32, #tpu.memory_space<vmem>>, %arg7: memref<3x32x32xbf16, #tpu.memory_space<vmem>>, %arg8: memref<3x32xf32, #tpu.memory_space<vmem>>, %arg9: memref<32x128xbf16, #tpu.memory_space<vmem>>, %arg10: memref<1x128xf32, #tpu.memory_space<vmem>>, %arg11: memref<1x16x128xf32, #tpu.memory_space<vmem>>) attributes {dimension_semantics = [#tpu.dimension_semantics<parallel>], iteration_bounds = array<i64: 2>, scalar_prefetch = 0 : i64, scratch_operands = 0 : i64, tpu.core_type = #tpu.core_type<tc>, window_params = [{transform_indices = @transform_0, window_bounds = array<i64: 1, 16, 64>}, {transform_indices = @transform_1, window_bounds = array<i64: 1, 16, 1>}, {pipeline_mode = #tpu.pipeline_mode<synchronous>, transform_indices = @transform_2, window_bounds = array<i64: 64, 32>}, {pipeline_mode = #tpu.pipeline_mode<synchronous>, transform_indices = @transform_3, window_bounds = array<i64: 1, 32>}, {pipeline_mode = #tpu.pipeline_mode<synchronous>, transform_indices = @transform_4, window_bounds = array<i64: 3, 96, 32>}, {pipeline_mode = #tpu.pipeline_mode<synchronous>, transform_indices = @transform_5, window_bounds = array<i64: 3, 32>}, {pipeline_mode = #tpu.pipeline_mode<synchronous>, transform_indices = @transform_6, window_bounds = array<i64: 3, 32, 32>}, {pipeline_mode = #tpu.pipeline_mode<synchronous>, transform_indices = @transform_7, window_bounds = array<i64: 3, 32>}, {pipeline_mode = #tpu.pipeline_mode<synchronous>, transform_indices = @transform_8, window_bounds = array<i64: 32, 128>}, {pipeline_mode = #tpu.pipeline_mode<synchronous>, transform_indices = @transform_9, window_bounds = array<i64: 1, 128>}, {transform_indices = @transform_10, window_bounds = array<i64: 1, 16, 128>}]} {
    %c0 = arith.constant 0 : index
    %c0_0 = arith.constant 0 : index
    %c0_1 = arith.constant 0 : index
    %0 = vector.load %arg1[%c0, %c0_0, %c0_1] : memref<1x16x64xf32, #tpu.memory_space<vmem>>, vector<1x16x64xf32>
    %1 = vector.shape_cast %0 : vector<1x16x64xf32> to vector<16x64xf32>
    %c0_2 = arith.constant 0 : index
    %c0_3 = arith.constant 0 : index
    %c0_4 = arith.constant 0 : index
    %2 = vector.load %arg2[%c0_2, %c0_3, %c0_4] : memref<1x16x1xf32, #tpu.memory_space<vmem>>, vector<1x16x1xf32>
    %3 = vector.shape_cast %2 : vector<1x16x1xf32> to vector<16x1xf32>
    %4 = arith.truncf %1 : vector<16x64xf32> to vector<16x64xbf16>
    %c0_5 = arith.constant 0 : index
    %c0_6 = arith.constant 0 : index
    %5 = vector.load %arg3[%c0_5, %c0_6] : memref<64x32xbf16, #tpu.memory_space<vmem>>, vector<64x32xbf16>
    %cst = arith.constant dense<0.000000e+00> : vector<16x32xf32>
    %6 = tpu.matmul %4, %5, %cst {dimension_numbers = #tpu.dot_dimension_numbers<[1], [0], [0], [1], [0, 0, 1, 1], [], []>} : vector<16x64xbf16>, vector<64x32xbf16>, vector<16x32xf32> -> vector<16x32xf32>
    %c0_7 = arith.constant 0 : index
    %c0_8 = arith.constant 0 : index
    %7 = vector.load %arg4[%c0_7, %c0_8] : memref<1x32xf32, #tpu.memory_space<vmem>>, vector<1x32xf32>
    %8 = vector.broadcast %7 : vector<1x32xf32> to vector<16x32xf32>
    %9 = arith.addf %6, %8 : vector<16x32xf32>
    %10 = tpu.iota {dimensions = array<i32: 0>} : vector<16x1xi32>
    %c1_i32 = arith.constant 1 : i32
    %11 = vector.broadcast %c1_i32 : i32 to vector<16x1xi32>
    %12 = arith.cmpi sge, %10, %11 : vector<16x1xi32>
    %13 = arith.extui %12 : vector<16x1xi1> to vector<16x1xi32>
    %14 = arith.sitofp %13 : vector<16x1xi32> to vector<16x1xf32>
    %c15_i32 = arith.constant 15 : i32
    %15 = vector.broadcast %c15_i32 : i32 to vector<16x1xi32>
    %16 = arith.cmpi slt, %10, %15 : vector<16x1xi32>
    %17 = arith.extui %16 : vector<16x1xi1> to vector<16x1xi32>
    %18 = arith.sitofp %17 : vector<16x1xi32> to vector<16x1xf32>
    %c1_i32_9 = arith.constant 1 : i32
    %19 = tpu.dynamic_rotate %9 by %c1_i32_9 dim 0 : vector<16x32xf32>, i32 -> vector<16x32xf32>
    %20 = vector.broadcast %14 : vector<16x1xf32> to vector<16x32xf32>
    %21 = arith.mulf %19, %20 : vector<16x32xf32>
    %c15_i32_10 = arith.constant 15 : i32
    %22 = tpu.dynamic_rotate %9 by %c15_i32_10 dim 0 : vector<16x32xf32>, i32 -> vector<16x32xf32>
    %23 = vector.broadcast %18 : vector<16x1xf32> to vector<16x32xf32>
    %24 = arith.mulf %22, %23 : vector<16x32xf32>
    %25 = tpu.concatenate %21, %9, %24 in 1 : vector<16x32xf32>, vector<16x32xf32>, vector<16x32xf32> -> vector<16x96xf32>
    %26 = arith.truncf %25 : vector<16x96xf32> to vector<16x96xbf16>
    %c0_11 = arith.constant 0 : index
    %c0_12 = arith.constant 0 : index
    %c0_13 = arith.constant 0 : index
    %27 = vector.load %arg5[%c0_11, %c0_12, %c0_13] : memref<3x96x32xbf16, #tpu.memory_space<vmem>>, vector<1x96x32xbf16>
    %28 = vector.shape_cast %27 : vector<1x96x32xbf16> to vector<96x32xbf16>
    %cst_14 = arith.constant dense<0.000000e+00> : vector<16x32xf32>
    %29 = tpu.matmul %26, %28, %cst_14 {dimension_numbers = #tpu.dot_dimension_numbers<[1], [0], [0], [1], [0, 0, 1, 1], [], []>} : vector<16x96xbf16>, vector<96x32xbf16>, vector<16x32xf32> -> vector<16x32xf32>
    %c0_15 = arith.constant 0 : index
    %c0_16 = arith.constant 0 : index
    %30 = vector.load %arg6[%c0_15, %c0_16] : memref<3x32xf32, #tpu.memory_space<vmem>>, vector<1x32xf32>
    %31 = vector.broadcast %30 : vector<1x32xf32> to vector<16x32xf32>
    %32 = arith.addf %29, %31 : vector<16x32xf32>
    %cst_17 = arith.constant 0.000000e+00 : f32
    %33 = vector.broadcast %cst_17 : f32 to vector<16x32xf32>
    %34 = arith.maximumf %32, %33 : vector<16x32xf32>
    %35 = arith.truncf %34 : vector<16x32xf32> to vector<16x32xbf16>
    %c0_18 = arith.constant 0 : index
    %c0_19 = arith.constant 0 : index
    %c0_20 = arith.constant 0 : index
    %36 = vector.load %arg7[%c0_18, %c0_19, %c0_20] : memref<3x32x32xbf16, #tpu.memory_space<vmem>>, vector<1x32x32xbf16>
    %37 = vector.shape_cast %36 : vector<1x32x32xbf16> to vector<32x32xbf16>
    %cst_21 = arith.constant dense<0.000000e+00> : vector<16x32xf32>
    %38 = tpu.matmul %35, %37, %cst_21 {dimension_numbers = #tpu.dot_dimension_numbers<[1], [0], [0], [1], [0, 0, 1, 1], [], []>} : vector<16x32xbf16>, vector<32x32xbf16>, vector<16x32xf32> -> vector<16x32xf32>
    %c0_22 = arith.constant 0 : index
    %c0_23 = arith.constant 0 : index
    %39 = vector.load %arg8[%c0_22, %c0_23] : memref<3x32xf32, #tpu.memory_space<vmem>>, vector<1x32xf32>
    %40 = vector.broadcast %39 : vector<1x32xf32> to vector<16x32xf32>
    %41 = arith.addf %38, %40 : vector<16x32xf32>
    %42 = arith.addf %9, %41 : vector<16x32xf32>
    %43 = vector.broadcast %3 : vector<16x1xf32> to vector<16x32xf32>
    %44 = arith.mulf %42, %43 : vector<16x32xf32>
    %c2_i32 = arith.constant 2 : i32
    %45 = vector.broadcast %c2_i32 : i32 to vector<16x1xi32>
    %46 = arith.cmpi sge, %10, %45 : vector<16x1xi32>
    %47 = arith.extui %46 : vector<16x1xi1> to vector<16x1xi32>
    %48 = arith.sitofp %47 : vector<16x1xi32> to vector<16x1xf32>
    %c14_i32 = arith.constant 14 : i32
    %49 = vector.broadcast %c14_i32 : i32 to vector<16x1xi32>
    %50 = arith.cmpi slt, %10, %49 : vector<16x1xi32>
    %51 = arith.extui %50 : vector<16x1xi1> to vector<16x1xi32>
    %52 = arith.sitofp %51 : vector<16x1xi32> to vector<16x1xf32>
    %c2_i32_24 = arith.constant 2 : i32
    %53 = tpu.dynamic_rotate %44 by %c2_i32_24 dim 0 : vector<16x32xf32>, i32 -> vector<16x32xf32>
    %54 = vector.broadcast %48 : vector<16x1xf32> to vector<16x32xf32>
    %55 = arith.mulf %53, %54 : vector<16x32xf32>
    %c14_i32_25 = arith.constant 14 : i32
    %56 = tpu.dynamic_rotate %44 by %c14_i32_25 dim 0 : vector<16x32xf32>, i32 -> vector<16x32xf32>
    %57 = vector.broadcast %52 : vector<16x1xf32> to vector<16x32xf32>
    %58 = arith.mulf %56, %57 : vector<16x32xf32>
    %59 = tpu.concatenate %55, %44, %58 in 1 : vector<16x32xf32>, vector<16x32xf32>, vector<16x32xf32> -> vector<16x96xf32>
    %60 = arith.truncf %59 : vector<16x96xf32> to vector<16x96xbf16>
    %c1 = arith.constant 1 : index
    %c0_26 = arith.constant 0 : index
    %c0_27 = arith.constant 0 : index
    %61 = vector.load %arg5[%c1, %c0_26, %c0_27] : memref<3x96x32xbf16, #tpu.memory_space<vmem>>, vector<1x96x32xbf16>
    %62 = vector.shape_cast %61 : vector<1x96x32xbf16> to vector<96x32xbf16>
    %cst_28 = arith.constant dense<0.000000e+00> : vector<16x32xf32>
    %63 = tpu.matmul %60, %62, %cst_28 {dimension_numbers = #tpu.dot_dimension_numbers<[1], [0], [0], [1], [0, 0, 1, 1], [], []>} : vector<16x96xbf16>, vector<96x32xbf16>, vector<16x32xf32> -> vector<16x32xf32>
    %c1_29 = arith.constant 1 : index
    %c0_30 = arith.constant 0 : index
    %64 = vector.load %arg6[%c1_29, %c0_30] : memref<3x32xf32, #tpu.memory_space<vmem>>, vector<1x32xf32>
    %65 = vector.broadcast %64 : vector<1x32xf32> to vector<16x32xf32>
    %66 = arith.addf %63, %65 : vector<16x32xf32>
    %cst_31 = arith.constant 0.000000e+00 : f32
    %67 = vector.broadcast %cst_31 : f32 to vector<16x32xf32>
    %68 = arith.maximumf %66, %67 : vector<16x32xf32>
    %69 = arith.truncf %68 : vector<16x32xf32> to vector<16x32xbf16>
    %c1_32 = arith.constant 1 : index
    %c0_33 = arith.constant 0 : index
    %c0_34 = arith.constant 0 : index
    %70 = vector.load %arg7[%c1_32, %c0_33, %c0_34] : memref<3x32x32xbf16, #tpu.memory_space<vmem>>, vector<1x32x32xbf16>
    %71 = vector.shape_cast %70 : vector<1x32x32xbf16> to vector<32x32xbf16>
    %cst_35 = arith.constant dense<0.000000e+00> : vector<16x32xf32>
    %72 = tpu.matmul %69, %71, %cst_35 {dimension_numbers = #tpu.dot_dimension_numbers<[1], [0], [0], [1], [0, 0, 1, 1], [], []>} : vector<16x32xbf16>, vector<32x32xbf16>, vector<16x32xf32> -> vector<16x32xf32>
    %c1_36 = arith.constant 1 : index
    %c0_37 = arith.constant 0 : index
    %73 = vector.load %arg8[%c1_36, %c0_37] : memref<3x32xf32, #tpu.memory_space<vmem>>, vector<1x32xf32>
    %74 = vector.broadcast %73 : vector<1x32xf32> to vector<16x32xf32>
    %75 = arith.addf %72, %74 : vector<16x32xf32>
    %76 = arith.addf %44, %75 : vector<16x32xf32>
    %77 = vector.broadcast %3 : vector<16x1xf32> to vector<16x32xf32>
    %78 = arith.mulf %76, %77 : vector<16x32xf32>
    %c4_i32 = arith.constant 4 : i32
    %79 = vector.broadcast %c4_i32 : i32 to vector<16x1xi32>
    %80 = arith.cmpi sge, %10, %79 : vector<16x1xi32>
    %81 = arith.extui %80 : vector<16x1xi1> to vector<16x1xi32>
    %82 = arith.sitofp %81 : vector<16x1xi32> to vector<16x1xf32>
    %c12_i32 = arith.constant 12 : i32
    %83 = vector.broadcast %c12_i32 : i32 to vector<16x1xi32>
    %84 = arith.cmpi slt, %10, %83 : vector<16x1xi32>
    %85 = arith.extui %84 : vector<16x1xi1> to vector<16x1xi32>
    %86 = arith.sitofp %85 : vector<16x1xi32> to vector<16x1xf32>
    %c4_i32_38 = arith.constant 4 : i32
    %87 = tpu.dynamic_rotate %78 by %c4_i32_38 dim 0 : vector<16x32xf32>, i32 -> vector<16x32xf32>
    %88 = vector.broadcast %82 : vector<16x1xf32> to vector<16x32xf32>
    %89 = arith.mulf %87, %88 : vector<16x32xf32>
    %c12_i32_39 = arith.constant 12 : i32
    %90 = tpu.dynamic_rotate %78 by %c12_i32_39 dim 0 : vector<16x32xf32>, i32 -> vector<16x32xf32>
    %91 = vector.broadcast %86 : vector<16x1xf32> to vector<16x32xf32>
    %92 = arith.mulf %90, %91 : vector<16x32xf32>
    %93 = tpu.concatenate %89, %78, %92 in 1 : vector<16x32xf32>, vector<16x32xf32>, vector<16x32xf32> -> vector<16x96xf32>
    %94 = arith.truncf %93 : vector<16x96xf32> to vector<16x96xbf16>
    %c2 = arith.constant 2 : index
    %c0_40 = arith.constant 0 : index
    %c0_41 = arith.constant 0 : index
    %95 = vector.load %arg5[%c2, %c0_40, %c0_41] : memref<3x96x32xbf16, #tpu.memory_space<vmem>>, vector<1x96x32xbf16>
    %96 = vector.shape_cast %95 : vector<1x96x32xbf16> to vector<96x32xbf16>
    %cst_42 = arith.constant dense<0.000000e+00> : vector<16x32xf32>
    %97 = tpu.matmul %94, %96, %cst_42 {dimension_numbers = #tpu.dot_dimension_numbers<[1], [0], [0], [1], [0, 0, 1, 1], [], []>} : vector<16x96xbf16>, vector<96x32xbf16>, vector<16x32xf32> -> vector<16x32xf32>
    %c2_43 = arith.constant 2 : index
    %c0_44 = arith.constant 0 : index
    %98 = vector.load %arg6[%c2_43, %c0_44] : memref<3x32xf32, #tpu.memory_space<vmem>>, vector<1x32xf32>
    %99 = vector.broadcast %98 : vector<1x32xf32> to vector<16x32xf32>
    %100 = arith.addf %97, %99 : vector<16x32xf32>
    %cst_45 = arith.constant 0.000000e+00 : f32
    %101 = vector.broadcast %cst_45 : f32 to vector<16x32xf32>
    %102 = arith.maximumf %100, %101 : vector<16x32xf32>
    %103 = arith.truncf %102 : vector<16x32xf32> to vector<16x32xbf16>
    %c2_46 = arith.constant 2 : index
    %c0_47 = arith.constant 0 : index
    %c0_48 = arith.constant 0 : index
    %104 = vector.load %arg7[%c2_46, %c0_47, %c0_48] : memref<3x32x32xbf16, #tpu.memory_space<vmem>>, vector<1x32x32xbf16>
    %105 = vector.shape_cast %104 : vector<1x32x32xbf16> to vector<32x32xbf16>
    %cst_49 = arith.constant dense<0.000000e+00> : vector<16x32xf32>
    %106 = tpu.matmul %103, %105, %cst_49 {dimension_numbers = #tpu.dot_dimension_numbers<[1], [0], [0], [1], [0, 0, 1, 1], [], []>} : vector<16x32xbf16>, vector<32x32xbf16>, vector<16x32xf32> -> vector<16x32xf32>
    %c2_50 = arith.constant 2 : index
    %c0_51 = arith.constant 0 : index
    %107 = vector.load %arg8[%c2_50, %c0_51] : memref<3x32xf32, #tpu.memory_space<vmem>>, vector<1x32xf32>
    %108 = vector.broadcast %107 : vector<1x32xf32> to vector<16x32xf32>
    %109 = arith.addf %106, %108 : vector<16x32xf32>
    %110 = arith.addf %78, %109 : vector<16x32xf32>
    %111 = vector.broadcast %3 : vector<16x1xf32> to vector<16x32xf32>
    %112 = arith.mulf %110, %111 : vector<16x32xf32>
    %113 = arith.truncf %112 : vector<16x32xf32> to vector<16x32xbf16>
    %c0_52 = arith.constant 0 : index
    %c0_53 = arith.constant 0 : index
    %114 = vector.load %arg9[%c0_52, %c0_53] : memref<32x128xbf16, #tpu.memory_space<vmem>>, vector<32x128xbf16>
    %cst_54 = arith.constant dense<0.000000e+00> : vector<16x128xf32>
    %115 = tpu.matmul %113, %114, %cst_54 {dimension_numbers = #tpu.dot_dimension_numbers<[1], [0], [0], [1], [0, 0, 1, 1], [], []>} : vector<16x32xbf16>, vector<32x128xbf16>, vector<16x128xf32> -> vector<16x128xf32>
    %c0_55 = arith.constant 0 : index
    %c0_56 = arith.constant 0 : index
    %116 = vector.load %arg10[%c0_55, %c0_56] : memref<1x128xf32, #tpu.memory_space<vmem>>, vector<1x128xf32>
    %117 = vector.broadcast %116 : vector<1x128xf32> to vector<16x128xf32>
    %118 = arith.addf %115, %117 : vector<16x128xf32>
    %c0_57 = arith.constant 0 : index
    %c0_58 = arith.constant 0 : index
    %c0_59 = arith.constant 0 : index
    %119 = vector.load %arg11[%c0_57, %c0_58, %c0_59] : memref<1x16x128xf32, #tpu.memory_space<vmem>>, vector<1x16x128xf32>
    %120 = vector.shape_cast %119 : vector<1x16x128xf32> to vector<16x128xf32>
    %121 = vector.shape_cast %118 : vector<16x128xf32> to vector<1x16x128xf32>
    tpu.vector_store %arg11[%c0_57, %c0_58, %c0_59], %121 {strides = array<i32>} : memref<1x16x128xf32, #tpu.memory_space<vmem>>, vector<1x16x128xf32>,
    return
  }
  func.func @transform_0(%arg0: i32) -> (i32, i32, i32) {
    %c0_i32 = arith.constant 0 : i32
    %c0_i32_0 = arith.constant 0 : i32
    %c0_i32_1 = arith.constant 0 : i32
    return %arg0, %c0_i32, %c0_i32_0 : i32, i32, i32
  }
  func.func @transform_1(%arg0: i32) -> (i32, i32, i32) {
    %c0_i32 = arith.constant 0 : i32
    %c0_i32_0 = arith.constant 0 : i32
    %c0_i32_1 = arith.constant 0 : i32
    return %arg0, %c0_i32, %c0_i32_0 : i32, i32, i32
  }
  func.func @transform_2(%arg0: i32) -> (i32, i32) {
    %c0_i32 = arith.constant 0 : i32
    %c0_i32_0 = arith.constant 0 : i32
    %c0_i32_1 = arith.constant 0 : i32
    return %c0_i32, %c0_i32_0 : i32, i32
  }
  func.func @transform_3(%arg0: i32) -> (i32, i32) {
    %c0_i32 = arith.constant 0 : i32
    %c0_i32_0 = arith.constant 0 : i32
    %c0_i32_1 = arith.constant 0 : i32
    return %c0_i32, %c0_i32_0 : i32, i32
  }
  func.func @transform_4(%arg0: i32) -> (i32, i32, i32) {
    %c0_i32 = arith.constant 0 : i32
    %c0_i32_0 = arith.constant 0 : i32
    %c0_i32_1 = arith.constant 0 : i32
    %c0_i32_2 = arith.constant 0 : i32
    return %c0_i32, %c0_i32_0, %c0_i32_1 : i32, i32, i32
  }
  func.func @transform_5(%arg0: i32) -> (i32, i32) {
    %c0_i32 = arith.constant 0 : i32
    %c0_i32_0 = arith.constant 0 : i32
    %c0_i32_1 = arith.constant 0 : i32
    return %c0_i32, %c0_i32_0 : i32, i32
  }
  func.func @transform_6(%arg0: i32) -> (i32, i32, i32) {
    %c0_i32 = arith.constant 0 : i32
    %c0_i32_0 = arith.constant 0 : i32
    %c0_i32_1 = arith.constant 0 : i32
    %c0_i32_2 = arith.constant 0 : i32
    return %c0_i32, %c0_i32_0, %c0_i32_1 : i32, i32, i32
  }
  func.func @transform_7(%arg0: i32) -> (i32, i32) {
    %c0_i32 = arith.constant 0 : i32
    %c0_i32_0 = arith.constant 0 : i32
    %c0_i32_1 = arith.constant 0 : i32
    return %c0_i32, %c0_i32_0 : i32, i32
  }
  func.func @transform_8(%arg0: i32) -> (i32, i32) {
    %c0_i32 = arith.constant 0 : i32
    %c0_i32_0 = arith.constant 0 : i32
    %c0_i32_1 = arith.constant 0 : i32
    return %c0_i32, %c0_i32_0 : i32, i32
  }
  func.func @transform_9(%arg0: i32) -> (i32, i32) {
    %c0_i32 = arith.constant 0 : i32
    %c0_i32_0 = arith.constant 0 : i32
    %c0_i32_1 = arith.constant 0 : i32
    return %c0_i32, %c0_i32_0 : i32, i32
  }
  func.func @transform_10(%arg0: i32) -> (i32, i32, i32) {
    %c0_i32 = arith.constant 0 : i32
    %c0_i32_0 = arith.constant 0 : i32
    %c0_i32_1 = arith.constant 0 : i32
    return %arg0, %c0_i32, %c0_i32_0 : i32, i32, i32
  }
}

module attributes {stable_mosaic.version = 11 : i64} {
  func.func @_tcn_kernel(%arg0: i32, %arg1: memref<1x16x512xbf16, #tpu.memory_space<vmem>>, %arg2: memref<512x64xbf16, #tpu.memory_space<vmem>>, %arg3: memref<1x64xf32, #tpu.memory_space<vmem>>, %arg4: memref<3x192x64xbf16, #tpu.memory_space<vmem>>, %arg5: memref<3x64xf32, #tpu.memory_space<vmem>>, %arg6: memref<3x64x64xbf16, #tpu.memory_space<vmem>>, %arg7: memref<3x64xf32, #tpu.memory_space<vmem>>, %arg8: memref<64x128xbf16, #tpu.memory_space<vmem>>, %arg9: memref<1x128xf32, #tpu.memory_space<vmem>>, %arg10: memref<1x16x128xf32, #tpu.memory_space<vmem>>) attributes {dimension_semantics = [#tpu.dimension_semantics<parallel>], iteration_bounds = array<i64: 2>, scalar_prefetch = 0 : i64, scratch_operands = 0 : i64, tpu.core_type = #tpu.core_type<tc>, window_params = [{transform_indices = @transform_0, window_bounds = array<i64: 1, 16, 512>}, {pipeline_mode = #tpu.pipeline_mode<synchronous>, transform_indices = @transform_1, window_bounds = array<i64: 512, 64>}, {pipeline_mode = #tpu.pipeline_mode<synchronous>, transform_indices = @transform_2, window_bounds = array<i64: 1, 64>}, {pipeline_mode = #tpu.pipeline_mode<synchronous>, transform_indices = @transform_3, window_bounds = array<i64: 3, 192, 64>}, {pipeline_mode = #tpu.pipeline_mode<synchronous>, transform_indices = @transform_4, window_bounds = array<i64: 3, 64>}, {pipeline_mode = #tpu.pipeline_mode<synchronous>, transform_indices = @transform_5, window_bounds = array<i64: 3, 64, 64>}, {pipeline_mode = #tpu.pipeline_mode<synchronous>, transform_indices = @transform_6, window_bounds = array<i64: 3, 64>}, {pipeline_mode = #tpu.pipeline_mode<synchronous>, transform_indices = @transform_7, window_bounds = array<i64: 64, 128>}, {pipeline_mode = #tpu.pipeline_mode<synchronous>, transform_indices = @transform_8, window_bounds = array<i64: 1, 128>}, {transform_indices = @transform_9, window_bounds = array<i64: 1, 16, 128>}]} {
    %c0 = arith.constant 0 : index
    %c0_0 = arith.constant 0 : index
    %c0_1 = arith.constant 0 : index
    %0 = vector.load %arg1[%c0, %c0_0, %c0_1] : memref<1x16x512xbf16, #tpu.memory_space<vmem>>, vector<1x16x512xbf16>
    %1 = vector.shape_cast %0 : vector<1x16x512xbf16> to vector<16x512xbf16>
    %c0_2 = arith.constant 0 : index
    %c0_3 = arith.constant 0 : index
    %2 = vector.load %arg2[%c0_2, %c0_3] : memref<512x64xbf16, #tpu.memory_space<vmem>>, vector<512x64xbf16>
    %cst = arith.constant dense<0.000000e+00> : vector<16x64xf32>
    %3 = tpu.matmul %1, %2, %cst {dimension_numbers = #tpu.dot_dimension_numbers<[1], [0], [0], [1], [0, 0, 1, 1], [], []>} : vector<16x512xbf16>, vector<512x64xbf16>, vector<16x64xf32> -> vector<16x64xf32>
    %c0_4 = arith.constant 0 : index
    %c0_5 = arith.constant 0 : index
    %4 = vector.load %arg3[%c0_4, %c0_5] : memref<1x64xf32, #tpu.memory_space<vmem>>, vector<1x64xf32>
    %5 = vector.broadcast %4 : vector<1x64xf32> to vector<16x64xf32>
    %6 = arith.addf %3, %5 : vector<16x64xf32>
    %7 = tpu.iota {dimensions = array<i32: 0>} : vector<16x1xi32>
    %c1_i32 = arith.constant 1 : i32
    %8 = vector.broadcast %c1_i32 : i32 to vector<16x1xi32>
    %9 = arith.cmpi sge, %7, %8 : vector<16x1xi32>
    %10 = arith.extui %9 : vector<16x1xi1> to vector<16x1xi32>
    %11 = arith.sitofp %10 : vector<16x1xi32> to vector<16x1xf32>
    %c15_i32 = arith.constant 15 : i32
    %12 = vector.broadcast %c15_i32 : i32 to vector<16x1xi32>
    %13 = arith.cmpi slt, %7, %12 : vector<16x1xi32>
    %14 = arith.extui %13 : vector<16x1xi1> to vector<16x1xi32>
    %15 = arith.sitofp %14 : vector<16x1xi32> to vector<16x1xf32>
    %c1_i32_6 = arith.constant 1 : i32
    %16 = tpu.dynamic_rotate %6 by %c1_i32_6 dim 0 : vector<16x64xf32>, i32 -> vector<16x64xf32>
    %17 = vector.broadcast %11 : vector<16x1xf32> to vector<16x64xf32>
    %18 = arith.mulf %16, %17 : vector<16x64xf32>
    %c15_i32_7 = arith.constant 15 : i32
    %19 = tpu.dynamic_rotate %6 by %c15_i32_7 dim 0 : vector<16x64xf32>, i32 -> vector<16x64xf32>
    %20 = vector.broadcast %15 : vector<16x1xf32> to vector<16x64xf32>
    %21 = arith.mulf %19, %20 : vector<16x64xf32>
    %22 = tpu.concatenate %18, %6, %21 in 1 : vector<16x64xf32>, vector<16x64xf32>, vector<16x64xf32> -> vector<16x192xf32>
    %23 = arith.truncf %22 : vector<16x192xf32> to vector<16x192xbf16>
    %c0_8 = arith.constant 0 : index
    %c0_9 = arith.constant 0 : index
    %c0_10 = arith.constant 0 : index
    %24 = vector.load %arg4[%c0_8, %c0_9, %c0_10] : memref<3x192x64xbf16, #tpu.memory_space<vmem>>, vector<1x192x64xbf16>
    %25 = vector.shape_cast %24 : vector<1x192x64xbf16> to vector<192x64xbf16>
    %cst_11 = arith.constant dense<0.000000e+00> : vector<16x64xf32>
    %26 = tpu.matmul %23, %25, %cst_11 {dimension_numbers = #tpu.dot_dimension_numbers<[1], [0], [0], [1], [0, 0, 1, 1], [], []>} : vector<16x192xbf16>, vector<192x64xbf16>, vector<16x64xf32> -> vector<16x64xf32>
    %c0_12 = arith.constant 0 : index
    %c0_13 = arith.constant 0 : index
    %27 = vector.load %arg5[%c0_12, %c0_13] : memref<3x64xf32, #tpu.memory_space<vmem>>, vector<1x64xf32>
    %28 = vector.broadcast %27 : vector<1x64xf32> to vector<16x64xf32>
    %29 = arith.addf %26, %28 : vector<16x64xf32>
    %cst_14 = arith.constant 0.000000e+00 : f32
    %30 = vector.broadcast %cst_14 : f32 to vector<16x64xf32>
    %31 = arith.maximumf %29, %30 : vector<16x64xf32>
    %32 = arith.truncf %31 : vector<16x64xf32> to vector<16x64xbf16>
    %c0_15 = arith.constant 0 : index
    %c0_16 = arith.constant 0 : index
    %c0_17 = arith.constant 0 : index
    %33 = vector.load %arg6[%c0_15, %c0_16, %c0_17] : memref<3x64x64xbf16, #tpu.memory_space<vmem>>, vector<1x64x64xbf16>
    %34 = vector.shape_cast %33 : vector<1x64x64xbf16> to vector<64x64xbf16>
    %cst_18 = arith.constant dense<0.000000e+00> : vector<16x64xf32>
    %35 = tpu.matmul %32, %34, %cst_18 {dimension_numbers = #tpu.dot_dimension_numbers<[1], [0], [0], [1], [0, 0, 1, 1], [], []>} : vector<16x64xbf16>, vector<64x64xbf16>, vector<16x64xf32> -> vector<16x64xf32>
    %c0_19 = arith.constant 0 : index
    %c0_20 = arith.constant 0 : index
    %36 = vector.load %arg7[%c0_19, %c0_20] : memref<3x64xf32, #tpu.memory_space<vmem>>, vector<1x64xf32>
    %37 = vector.broadcast %36 : vector<1x64xf32> to vector<16x64xf32>
    %38 = arith.addf %35, %37 : vector<16x64xf32>
    %39 = arith.addf %6, %38 : vector<16x64xf32>
    %c2_i32 = arith.constant 2 : i32
    %40 = vector.broadcast %c2_i32 : i32 to vector<16x1xi32>
    %41 = arith.cmpi sge, %7, %40 : vector<16x1xi32>
    %42 = arith.extui %41 : vector<16x1xi1> to vector<16x1xi32>
    %43 = arith.sitofp %42 : vector<16x1xi32> to vector<16x1xf32>
    %c14_i32 = arith.constant 14 : i32
    %44 = vector.broadcast %c14_i32 : i32 to vector<16x1xi32>
    %45 = arith.cmpi slt, %7, %44 : vector<16x1xi32>
    %46 = arith.extui %45 : vector<16x1xi1> to vector<16x1xi32>
    %47 = arith.sitofp %46 : vector<16x1xi32> to vector<16x1xf32>
    %c2_i32_21 = arith.constant 2 : i32
    %48 = tpu.dynamic_rotate %39 by %c2_i32_21 dim 0 : vector<16x64xf32>, i32 -> vector<16x64xf32>
    %49 = vector.broadcast %43 : vector<16x1xf32> to vector<16x64xf32>
    %50 = arith.mulf %48, %49 : vector<16x64xf32>
    %c14_i32_22 = arith.constant 14 : i32
    %51 = tpu.dynamic_rotate %39 by %c14_i32_22 dim 0 : vector<16x64xf32>, i32 -> vector<16x64xf32>
    %52 = vector.broadcast %47 : vector<16x1xf32> to vector<16x64xf32>
    %53 = arith.mulf %51, %52 : vector<16x64xf32>
    %54 = tpu.concatenate %50, %39, %53 in 1 : vector<16x64xf32>, vector<16x64xf32>, vector<16x64xf32> -> vector<16x192xf32>
    %55 = arith.truncf %54 : vector<16x192xf32> to vector<16x192xbf16>
    %c1 = arith.constant 1 : index
    %c0_23 = arith.constant 0 : index
    %c0_24 = arith.constant 0 : index
    %56 = vector.load %arg4[%c1, %c0_23, %c0_24] : memref<3x192x64xbf16, #tpu.memory_space<vmem>>, vector<1x192x64xbf16>
    %57 = vector.shape_cast %56 : vector<1x192x64xbf16> to vector<192x64xbf16>
    %cst_25 = arith.constant dense<0.000000e+00> : vector<16x64xf32>
    %58 = tpu.matmul %55, %57, %cst_25 {dimension_numbers = #tpu.dot_dimension_numbers<[1], [0], [0], [1], [0, 0, 1, 1], [], []>} : vector<16x192xbf16>, vector<192x64xbf16>, vector<16x64xf32> -> vector<16x64xf32>
    %c1_26 = arith.constant 1 : index
    %c0_27 = arith.constant 0 : index
    %59 = vector.load %arg5[%c1_26, %c0_27] : memref<3x64xf32, #tpu.memory_space<vmem>>, vector<1x64xf32>
    %60 = vector.broadcast %59 : vector<1x64xf32> to vector<16x64xf32>
    %61 = arith.addf %58, %60 : vector<16x64xf32>
    %cst_28 = arith.constant 0.000000e+00 : f32
    %62 = vector.broadcast %cst_28 : f32 to vector<16x64xf32>
    %63 = arith.maximumf %61, %62 : vector<16x64xf32>
    %64 = arith.truncf %63 : vector<16x64xf32> to vector<16x64xbf16>
    %c1_29 = arith.constant 1 : index
    %c0_30 = arith.constant 0 : index
    %c0_31 = arith.constant 0 : index
    %65 = vector.load %arg6[%c1_29, %c0_30, %c0_31] : memref<3x64x64xbf16, #tpu.memory_space<vmem>>, vector<1x64x64xbf16>
    %66 = vector.shape_cast %65 : vector<1x64x64xbf16> to vector<64x64xbf16>
    %cst_32 = arith.constant dense<0.000000e+00> : vector<16x64xf32>
    %67 = tpu.matmul %64, %66, %cst_32 {dimension_numbers = #tpu.dot_dimension_numbers<[1], [0], [0], [1], [0, 0, 1, 1], [], []>} : vector<16x64xbf16>, vector<64x64xbf16>, vector<16x64xf32> -> vector<16x64xf32>
    %c1_33 = arith.constant 1 : index
    %c0_34 = arith.constant 0 : index
    %68 = vector.load %arg7[%c1_33, %c0_34] : memref<3x64xf32, #tpu.memory_space<vmem>>, vector<1x64xf32>
    %69 = vector.broadcast %68 : vector<1x64xf32> to vector<16x64xf32>
    %70 = arith.addf %67, %69 : vector<16x64xf32>
    %71 = arith.addf %39, %70 : vector<16x64xf32>
    %c4_i32 = arith.constant 4 : i32
    %72 = vector.broadcast %c4_i32 : i32 to vector<16x1xi32>
    %73 = arith.cmpi sge, %7, %72 : vector<16x1xi32>
    %74 = arith.extui %73 : vector<16x1xi1> to vector<16x1xi32>
    %75 = arith.sitofp %74 : vector<16x1xi32> to vector<16x1xf32>
    %c12_i32 = arith.constant 12 : i32
    %76 = vector.broadcast %c12_i32 : i32 to vector<16x1xi32>
    %77 = arith.cmpi slt, %7, %76 : vector<16x1xi32>
    %78 = arith.extui %77 : vector<16x1xi1> to vector<16x1xi32>
    %79 = arith.sitofp %78 : vector<16x1xi32> to vector<16x1xf32>
    %c4_i32_35 = arith.constant 4 : i32
    %80 = tpu.dynamic_rotate %71 by %c4_i32_35 dim 0 : vector<16x64xf32>, i32 -> vector<16x64xf32>
    %81 = vector.broadcast %75 : vector<16x1xf32> to vector<16x64xf32>
    %82 = arith.mulf %80, %81 : vector<16x64xf32>
    %c12_i32_36 = arith.constant 12 : i32
    %83 = tpu.dynamic_rotate %71 by %c12_i32_36 dim 0 : vector<16x64xf32>, i32 -> vector<16x64xf32>
    %84 = vector.broadcast %79 : vector<16x1xf32> to vector<16x64xf32>
    %85 = arith.mulf %83, %84 : vector<16x64xf32>
    %86 = tpu.concatenate %82, %71, %85 in 1 : vector<16x64xf32>, vector<16x64xf32>, vector<16x64xf32> -> vector<16x192xf32>
    %87 = arith.truncf %86 : vector<16x192xf32> to vector<16x192xbf16>
    %c2 = arith.constant 2 : index
    %c0_37 = arith.constant 0 : index
    %c0_38 = arith.constant 0 : index
    %88 = vector.load %arg4[%c2, %c0_37, %c0_38] : memref<3x192x64xbf16, #tpu.memory_space<vmem>>, vector<1x192x64xbf16>
    %89 = vector.shape_cast %88 : vector<1x192x64xbf16> to vector<192x64xbf16>
    %cst_39 = arith.constant dense<0.000000e+00> : vector<16x64xf32>
    %90 = tpu.matmul %87, %89, %cst_39 {dimension_numbers = #tpu.dot_dimension_numbers<[1], [0], [0], [1], [0, 0, 1, 1], [], []>} : vector<16x192xbf16>, vector<192x64xbf16>, vector<16x64xf32> -> vector<16x64xf32>
    %c2_40 = arith.constant 2 : index
    %c0_41 = arith.constant 0 : index
    %91 = vector.load %arg5[%c2_40, %c0_41] : memref<3x64xf32, #tpu.memory_space<vmem>>, vector<1x64xf32>
    %92 = vector.broadcast %91 : vector<1x64xf32> to vector<16x64xf32>
    %93 = arith.addf %90, %92 : vector<16x64xf32>
    %cst_42 = arith.constant 0.000000e+00 : f32
    %94 = vector.broadcast %cst_42 : f32 to vector<16x64xf32>
    %95 = arith.maximumf %93, %94 : vector<16x64xf32>
    %96 = arith.truncf %95 : vector<16x64xf32> to vector<16x64xbf16>
    %c2_43 = arith.constant 2 : index
    %c0_44 = arith.constant 0 : index
    %c0_45 = arith.constant 0 : index
    %97 = vector.load %arg6[%c2_43, %c0_44, %c0_45] : memref<3x64x64xbf16, #tpu.memory_space<vmem>>, vector<1x64x64xbf16>
    %98 = vector.shape_cast %97 : vector<1x64x64xbf16> to vector<64x64xbf16>
    %cst_46 = arith.constant dense<0.000000e+00> : vector<16x64xf32>
    %99 = tpu.matmul %96, %98, %cst_46 {dimension_numbers = #tpu.dot_dimension_numbers<[1], [0], [0], [1], [0, 0, 1, 1], [], []>} : vector<16x64xbf16>, vector<64x64xbf16>, vector<16x64xf32> -> vector<16x64xf32>
    %c2_47 = arith.constant 2 : index
    %c0_48 = arith.constant 0 : index
    %100 = vector.load %arg7[%c2_47, %c0_48] : memref<3x64xf32, #tpu.memory_space<vmem>>, vector<1x64xf32>
    %101 = vector.broadcast %100 : vector<1x64xf32> to vector<16x64xf32>
    %102 = arith.addf %99, %101 : vector<16x64xf32>
    %103 = arith.addf %71, %102 : vector<16x64xf32>
    %104 = arith.truncf %103 : vector<16x64xf32> to vector<16x64xbf16>
    %c0_49 = arith.constant 0 : index
    %c0_50 = arith.constant 0 : index
    %105 = vector.load %arg8[%c0_49, %c0_50] : memref<64x128xbf16, #tpu.memory_space<vmem>>, vector<64x128xbf16>
    %cst_51 = arith.constant dense<0.000000e+00> : vector<16x128xf32>
    %106 = tpu.matmul %104, %105, %cst_51 {dimension_numbers = #tpu.dot_dimension_numbers<[1], [0], [0], [1], [0, 0, 1, 1], [], []>} : vector<16x64xbf16>, vector<64x128xbf16>, vector<16x128xf32> -> vector<16x128xf32>
    %c0_52 = arith.constant 0 : index
    %c0_53 = arith.constant 0 : index
    %107 = vector.load %arg9[%c0_52, %c0_53] : memref<1x128xf32, #tpu.memory_space<vmem>>, vector<1x128xf32>
    %108 = vector.broadcast %107 : vector<1x128xf32> to vector<16x128xf32>
    %109 = arith.addf %106, %108 : vector<16x128xf32>
    %c0_54 = arith.constant 0 : index
    %c0_55 = arith.constant 0 : index
    %c0_56 = arith.constant 0 : index
    %110 = vector.load %arg10[%c0_54, %c0_55, %c0_56] : memref<1x16x128xf32, #tpu.memory_space<vmem>>, vector<1x16x128xf32>
    %111 = vector.shape_cast %110 : vector<1x16x128xf32> to vector<16x128xf32>
    %112 = vector.shape_cast %109 : vector<16x128xf32> to vector<1x16x128xf32>
    tpu.vector_store %arg10[%c0_54, %c0_55, %c0_56], %112 {strides = array<i32>} : memref<1x16x128xf32, #tpu.memory_space<vmem>>, vector<1x16x128xf32>,
    return
  }
  func.func @transform_0(%arg0: i32) -> (i32, i32, i32) {
    %c0_i32 = arith.constant 0 : i32
    %c0_i32_0 = arith.constant 0 : i32
    %c0_i32_1 = arith.constant 0 : i32
    return %arg0, %c0_i32, %c0_i32_0 : i32, i32, i32
  }
  func.func @transform_1(%arg0: i32) -> (i32, i32) {
    %c0_i32 = arith.constant 0 : i32
    %c0_i32_0 = arith.constant 0 : i32
    %c0_i32_1 = arith.constant 0 : i32
    return %c0_i32, %c0_i32_0 : i32, i32
  }
  func.func @transform_2(%arg0: i32) -> (i32, i32) {
    %c0_i32 = arith.constant 0 : i32
    %c0_i32_0 = arith.constant 0 : i32
    %c0_i32_1 = arith.constant 0 : i32
    return %c0_i32, %c0_i32_0 : i32, i32
  }
  func.func @transform_3(%arg0: i32) -> (i32, i32, i32) {
    %c0_i32 = arith.constant 0 : i32
    %c0_i32_0 = arith.constant 0 : i32
    %c0_i32_1 = arith.constant 0 : i32
    %c0_i32_2 = arith.constant 0 : i32
    return %c0_i32, %c0_i32_0, %c0_i32_1 : i32, i32, i32
  }
  func.func @transform_4(%arg0: i32) -> (i32, i32) {
    %c0_i32 = arith.constant 0 : i32
    %c0_i32_0 = arith.constant 0 : i32
    %c0_i32_1 = arith.constant 0 : i32
    return %c0_i32, %c0_i32_0 : i32, i32
  }
  func.func @transform_5(%arg0: i32) -> (i32, i32, i32) {
    %c0_i32 = arith.constant 0 : i32
    %c0_i32_0 = arith.constant 0 : i32
    %c0_i32_1 = arith.constant 0 : i32
    %c0_i32_2 = arith.constant 0 : i32
    return %c0_i32, %c0_i32_0, %c0_i32_1 : i32, i32, i32
  }
  func.func @transform_6(%arg0: i32) -> (i32, i32) {
    %c0_i32 = arith.constant 0 : i32
    %c0_i32_0 = arith.constant 0 : i32
    %c0_i32_1 = arith.constant 0 : i32
    return %c0_i32, %c0_i32_0 : i32, i32
  }
  func.func @transform_7(%arg0: i32) -> (i32, i32) {
    %c0_i32 = arith.constant 0 : i32
    %c0_i32_0 = arith.constant 0 : i32
    %c0_i32_1 = arith.constant 0 : i32
    return %c0_i32, %c0_i32_0 : i32, i32
  }
  func.func @transform_8(%arg0: i32) -> (i32, i32) {
    %c0_i32 = arith.constant 0 : i32
    %c0_i32_0 = arith.constant 0 : i32
    %c0_i32_1 = arith.constant 0 : i32
    return %c0_i32, %c0_i32_0 : i32, i32
  }
  func.func @transform_9(%arg0: i32) -> (i32, i32, i32) {
    %c0_i32 = arith.constant 0 : i32
    %c0_i32_0 = arith.constant 0 : i32
    %c0_i32_1 = arith.constant 0 : i32
    return %arg0, %c0_i32, %c0_i32_0 : i32, i32, i32
  }
}

module attributes {stable_mosaic.version = 11 : i64} {
  func.func @_tcn_kernel(%arg0: i32, %arg1: memref<1x16x6xf32, #tpu.memory_space<vmem>>, %arg2: memref<1x16x1xf32, #tpu.memory_space<vmem>>, %arg3: memref<6x32xbf16, #tpu.memory_space<vmem>>, %arg4: memref<1x32xf32, #tpu.memory_space<vmem>>, %arg5: memref<3x96x32xbf16, #tpu.memory_space<vmem>>, %arg6: memref<3x32xf32, #tpu.memory_space<vmem>>, %arg7: memref<3x32x32xbf16, #tpu.memory_space<vmem>>, %arg8: memref<3x32xf32, #tpu.memory_space<vmem>>, %arg9: memref<32x128xbf16, #tpu.memory_space<vmem>>, %arg10: memref<1x128xf32, #tpu.memory_space<vmem>>, %arg11: memref<1x16x128xf32, #tpu.memory_space<vmem>>) attributes {dimension_semantics = [#tpu.dimension_semantics<parallel>], iteration_bounds = array<i64: 2>, scalar_prefetch = 0 : i64, scratch_operands = 0 : i64, tpu.core_type = #tpu.core_type<tc>, window_params = [{transform_indices = @transform_0, window_bounds = array<i64: 1, 16, 6>}, {transform_indices = @transform_1, window_bounds = array<i64: 1, 16, 1>}, {pipeline_mode = #tpu.pipeline_mode<synchronous>, transform_indices = @transform_2, window_bounds = array<i64: 6, 32>}, {pipeline_mode = #tpu.pipeline_mode<synchronous>, transform_indices = @transform_3, window_bounds = array<i64: 1, 32>}, {pipeline_mode = #tpu.pipeline_mode<synchronous>, transform_indices = @transform_4, window_bounds = array<i64: 3, 96, 32>}, {pipeline_mode = #tpu.pipeline_mode<synchronous>, transform_indices = @transform_5, window_bounds = array<i64: 3, 32>}, {pipeline_mode = #tpu.pipeline_mode<synchronous>, transform_indices = @transform_6, window_bounds = array<i64: 3, 32, 32>}, {pipeline_mode = #tpu.pipeline_mode<synchronous>, transform_indices = @transform_7, window_bounds = array<i64: 3, 32>}, {pipeline_mode = #tpu.pipeline_mode<synchronous>, transform_indices = @transform_8, window_bounds = array<i64: 32, 128>}, {pipeline_mode = #tpu.pipeline_mode<synchronous>, transform_indices = @transform_9, window_bounds = array<i64: 1, 128>}, {transform_indices = @transform_10, window_bounds = array<i64: 1, 16, 128>}]} {
    %c0 = arith.constant 0 : index
    %c0_0 = arith.constant 0 : index
    %c0_1 = arith.constant 0 : index
    %0 = vector.load %arg1[%c0, %c0_0, %c0_1] : memref<1x16x6xf32, #tpu.memory_space<vmem>>, vector<1x16x6xf32>
    %1 = vector.shape_cast %0 : vector<1x16x6xf32> to vector<16x6xf32>
    %c0_2 = arith.constant 0 : index
    %c0_3 = arith.constant 0 : index
    %c0_4 = arith.constant 0 : index
    %2 = vector.load %arg2[%c0_2, %c0_3, %c0_4] : memref<1x16x1xf32, #tpu.memory_space<vmem>>, vector<1x16x1xf32>
    %3 = vector.shape_cast %2 : vector<1x16x1xf32> to vector<16x1xf32>
    %cst = arith.constant dense<0xFF800000> : vector<16xf32>
    %4 = vector.multi_reduction <maximumf>, %1, %cst [1] : vector<16x6xf32> to vector<16xf32>
    %5 = vector.shape_cast %4 : vector<16xf32> to vector<16x1xf32>
    %6 = vector.broadcast %5 : vector<16x1xf32> to vector<16x6xf32>
    %7 = arith.subf %1, %6 : vector<16x6xf32>
    %8 = math.exp %7 : vector<16x6xf32>
    %cst_5 = arith.constant dense<0.000000e+00> : vector<16xf32>
    %9 = vector.multi_reduction <add>, %8, %cst_5 [1] : vector<16x6xf32> to vector<16xf32>
    %10 = vector.shape_cast %9 : vector<16xf32> to vector<16x1xf32>
    %11 = vector.broadcast %10 : vector<16x1xf32> to vector<16x6xf32>
    %12 = arith.divf %8, %11 : vector<16x6xf32>
    %13 = vector.broadcast %3 : vector<16x1xf32> to vector<16x6xf32>
    %14 = arith.mulf %12, %13 : vector<16x6xf32>
    %15 = arith.truncf %14 : vector<16x6xf32> to vector<16x6xbf16>
    %c0_6 = arith.constant 0 : index
    %c0_7 = arith.constant 0 : index
    %16 = vector.load %arg3[%c0_6, %c0_7] : memref<6x32xbf16, #tpu.memory_space<vmem>>, vector<6x32xbf16>
    %cst_8 = arith.constant dense<0.000000e+00> : vector<16x32xf32>
    %17 = tpu.matmul %15, %16, %cst_8 {dimension_numbers = #tpu.dot_dimension_numbers<[1], [0], [0], [1], [0, 0, 1, 1], [], []>} : vector<16x6xbf16>, vector<6x32xbf16>, vector<16x32xf32> -> vector<16x32xf32>
    %c0_9 = arith.constant 0 : index
    %c0_10 = arith.constant 0 : index
    %18 = vector.load %arg4[%c0_9, %c0_10] : memref<1x32xf32, #tpu.memory_space<vmem>>, vector<1x32xf32>
    %19 = vector.broadcast %18 : vector<1x32xf32> to vector<16x32xf32>
    %20 = arith.addf %17, %19 : vector<16x32xf32>
    %21 = tpu.iota {dimensions = array<i32: 0>} : vector<16x1xi32>
    %c1_i32 = arith.constant 1 : i32
    %22 = vector.broadcast %c1_i32 : i32 to vector<16x1xi32>
    %23 = arith.cmpi sge, %21, %22 : vector<16x1xi32>
    %24 = arith.extui %23 : vector<16x1xi1> to vector<16x1xi32>
    %25 = arith.sitofp %24 : vector<16x1xi32> to vector<16x1xf32>
    %c15_i32 = arith.constant 15 : i32
    %26 = vector.broadcast %c15_i32 : i32 to vector<16x1xi32>
    %27 = arith.cmpi slt, %21, %26 : vector<16x1xi32>
    %28 = arith.extui %27 : vector<16x1xi1> to vector<16x1xi32>
    %29 = arith.sitofp %28 : vector<16x1xi32> to vector<16x1xf32>
    %c1_i32_11 = arith.constant 1 : i32
    %30 = tpu.dynamic_rotate %20 by %c1_i32_11 dim 0 : vector<16x32xf32>, i32 -> vector<16x32xf32>
    %31 = vector.broadcast %25 : vector<16x1xf32> to vector<16x32xf32>
    %32 = arith.mulf %30, %31 : vector<16x32xf32>
    %c15_i32_12 = arith.constant 15 : i32
    %33 = tpu.dynamic_rotate %20 by %c15_i32_12 dim 0 : vector<16x32xf32>, i32 -> vector<16x32xf32>
    %34 = vector.broadcast %29 : vector<16x1xf32> to vector<16x32xf32>
    %35 = arith.mulf %33, %34 : vector<16x32xf32>
    %36 = tpu.concatenate %32, %20, %35 in 1 : vector<16x32xf32>, vector<16x32xf32>, vector<16x32xf32> -> vector<16x96xf32>
    %37 = arith.truncf %36 : vector<16x96xf32> to vector<16x96xbf16>
    %c0_13 = arith.constant 0 : index
    %c0_14 = arith.constant 0 : index
    %c0_15 = arith.constant 0 : index
    %38 = vector.load %arg5[%c0_13, %c0_14, %c0_15] : memref<3x96x32xbf16, #tpu.memory_space<vmem>>, vector<1x96x32xbf16>
    %39 = vector.shape_cast %38 : vector<1x96x32xbf16> to vector<96x32xbf16>
    %cst_16 = arith.constant dense<0.000000e+00> : vector<16x32xf32>
    %40 = tpu.matmul %37, %39, %cst_16 {dimension_numbers = #tpu.dot_dimension_numbers<[1], [0], [0], [1], [0, 0, 1, 1], [], []>} : vector<16x96xbf16>, vector<96x32xbf16>, vector<16x32xf32> -> vector<16x32xf32>
    %c0_17 = arith.constant 0 : index
    %c0_18 = arith.constant 0 : index
    %41 = vector.load %arg6[%c0_17, %c0_18] : memref<3x32xf32, #tpu.memory_space<vmem>>, vector<1x32xf32>
    %42 = vector.broadcast %41 : vector<1x32xf32> to vector<16x32xf32>
    %43 = arith.addf %40, %42 : vector<16x32xf32>
    %cst_19 = arith.constant 0.000000e+00 : f32
    %44 = vector.broadcast %cst_19 : f32 to vector<16x32xf32>
    %45 = arith.maximumf %43, %44 : vector<16x32xf32>
    %46 = arith.truncf %45 : vector<16x32xf32> to vector<16x32xbf16>
    %c0_20 = arith.constant 0 : index
    %c0_21 = arith.constant 0 : index
    %c0_22 = arith.constant 0 : index
    %47 = vector.load %arg7[%c0_20, %c0_21, %c0_22] : memref<3x32x32xbf16, #tpu.memory_space<vmem>>, vector<1x32x32xbf16>
    %48 = vector.shape_cast %47 : vector<1x32x32xbf16> to vector<32x32xbf16>
    %cst_23 = arith.constant dense<0.000000e+00> : vector<16x32xf32>
    %49 = tpu.matmul %46, %48, %cst_23 {dimension_numbers = #tpu.dot_dimension_numbers<[1], [0], [0], [1], [0, 0, 1, 1], [], []>} : vector<16x32xbf16>, vector<32x32xbf16>, vector<16x32xf32> -> vector<16x32xf32>
    %c0_24 = arith.constant 0 : index
    %c0_25 = arith.constant 0 : index
    %50 = vector.load %arg8[%c0_24, %c0_25] : memref<3x32xf32, #tpu.memory_space<vmem>>, vector<1x32xf32>
    %51 = vector.broadcast %50 : vector<1x32xf32> to vector<16x32xf32>
    %52 = arith.addf %49, %51 : vector<16x32xf32>
    %53 = arith.addf %20, %52 : vector<16x32xf32>
    %54 = vector.broadcast %3 : vector<16x1xf32> to vector<16x32xf32>
    %55 = arith.mulf %53, %54 : vector<16x32xf32>
    %c2_i32 = arith.constant 2 : i32
    %56 = vector.broadcast %c2_i32 : i32 to vector<16x1xi32>
    %57 = arith.cmpi sge, %21, %56 : vector<16x1xi32>
    %58 = arith.extui %57 : vector<16x1xi1> to vector<16x1xi32>
    %59 = arith.sitofp %58 : vector<16x1xi32> to vector<16x1xf32>
    %c14_i32 = arith.constant 14 : i32
    %60 = vector.broadcast %c14_i32 : i32 to vector<16x1xi32>
    %61 = arith.cmpi slt, %21, %60 : vector<16x1xi32>
    %62 = arith.extui %61 : vector<16x1xi1> to vector<16x1xi32>
    %63 = arith.sitofp %62 : vector<16x1xi32> to vector<16x1xf32>
    %c2_i32_26 = arith.constant 2 : i32
    %64 = tpu.dynamic_rotate %55 by %c2_i32_26 dim 0 : vector<16x32xf32>, i32 -> vector<16x32xf32>
    %65 = vector.broadcast %59 : vector<16x1xf32> to vector<16x32xf32>
    %66 = arith.mulf %64, %65 : vector<16x32xf32>
    %c14_i32_27 = arith.constant 14 : i32
    %67 = tpu.dynamic_rotate %55 by %c14_i32_27 dim 0 : vector<16x32xf32>, i32 -> vector<16x32xf32>
    %68 = vector.broadcast %63 : vector<16x1xf32> to vector<16x32xf32>
    %69 = arith.mulf %67, %68 : vector<16x32xf32>
    %70 = tpu.concatenate %66, %55, %69 in 1 : vector<16x32xf32>, vector<16x32xf32>, vector<16x32xf32> -> vector<16x96xf32>
    %71 = arith.truncf %70 : vector<16x96xf32> to vector<16x96xbf16>
    %c1 = arith.constant 1 : index
    %c0_28 = arith.constant 0 : index
    %c0_29 = arith.constant 0 : index
    %72 = vector.load %arg5[%c1, %c0_28, %c0_29] : memref<3x96x32xbf16, #tpu.memory_space<vmem>>, vector<1x96x32xbf16>
    %73 = vector.shape_cast %72 : vector<1x96x32xbf16> to vector<96x32xbf16>
    %cst_30 = arith.constant dense<0.000000e+00> : vector<16x32xf32>
    %74 = tpu.matmul %71, %73, %cst_30 {dimension_numbers = #tpu.dot_dimension_numbers<[1], [0], [0], [1], [0, 0, 1, 1], [], []>} : vector<16x96xbf16>, vector<96x32xbf16>, vector<16x32xf32> -> vector<16x32xf32>
    %c1_31 = arith.constant 1 : index
    %c0_32 = arith.constant 0 : index
    %75 = vector.load %arg6[%c1_31, %c0_32] : memref<3x32xf32, #tpu.memory_space<vmem>>, vector<1x32xf32>
    %76 = vector.broadcast %75 : vector<1x32xf32> to vector<16x32xf32>
    %77 = arith.addf %74, %76 : vector<16x32xf32>
    %cst_33 = arith.constant 0.000000e+00 : f32
    %78 = vector.broadcast %cst_33 : f32 to vector<16x32xf32>
    %79 = arith.maximumf %77, %78 : vector<16x32xf32>
    %80 = arith.truncf %79 : vector<16x32xf32> to vector<16x32xbf16>
    %c1_34 = arith.constant 1 : index
    %c0_35 = arith.constant 0 : index
    %c0_36 = arith.constant 0 : index
    %81 = vector.load %arg7[%c1_34, %c0_35, %c0_36] : memref<3x32x32xbf16, #tpu.memory_space<vmem>>, vector<1x32x32xbf16>
    %82 = vector.shape_cast %81 : vector<1x32x32xbf16> to vector<32x32xbf16>
    %cst_37 = arith.constant dense<0.000000e+00> : vector<16x32xf32>
    %83 = tpu.matmul %80, %82, %cst_37 {dimension_numbers = #tpu.dot_dimension_numbers<[1], [0], [0], [1], [0, 0, 1, 1], [], []>} : vector<16x32xbf16>, vector<32x32xbf16>, vector<16x32xf32> -> vector<16x32xf32>
    %c1_38 = arith.constant 1 : index
    %c0_39 = arith.constant 0 : index
    %84 = vector.load %arg8[%c1_38, %c0_39] : memref<3x32xf32, #tpu.memory_space<vmem>>, vector<1x32xf32>
    %85 = vector.broadcast %84 : vector<1x32xf32> to vector<16x32xf32>
    %86 = arith.addf %83, %85 : vector<16x32xf32>
    %87 = arith.addf %55, %86 : vector<16x32xf32>
    %88 = vector.broadcast %3 : vector<16x1xf32> to vector<16x32xf32>
    %89 = arith.mulf %87, %88 : vector<16x32xf32>
    %c4_i32 = arith.constant 4 : i32
    %90 = vector.broadcast %c4_i32 : i32 to vector<16x1xi32>
    %91 = arith.cmpi sge, %21, %90 : vector<16x1xi32>
    %92 = arith.extui %91 : vector<16x1xi1> to vector<16x1xi32>
    %93 = arith.sitofp %92 : vector<16x1xi32> to vector<16x1xf32>
    %c12_i32 = arith.constant 12 : i32
    %94 = vector.broadcast %c12_i32 : i32 to vector<16x1xi32>
    %95 = arith.cmpi slt, %21, %94 : vector<16x1xi32>
    %96 = arith.extui %95 : vector<16x1xi1> to vector<16x1xi32>
    %97 = arith.sitofp %96 : vector<16x1xi32> to vector<16x1xf32>
    %c4_i32_40 = arith.constant 4 : i32
    %98 = tpu.dynamic_rotate %89 by %c4_i32_40 dim 0 : vector<16x32xf32>, i32 -> vector<16x32xf32>
    %99 = vector.broadcast %93 : vector<16x1xf32> to vector<16x32xf32>
    %100 = arith.mulf %98, %99 : vector<16x32xf32>
    %c12_i32_41 = arith.constant 12 : i32
    %101 = tpu.dynamic_rotate %89 by %c12_i32_41 dim 0 : vector<16x32xf32>, i32 -> vector<16x32xf32>
    %102 = vector.broadcast %97 : vector<16x1xf32> to vector<16x32xf32>
    %103 = arith.mulf %101, %102 : vector<16x32xf32>
    %104 = tpu.concatenate %100, %89, %103 in 1 : vector<16x32xf32>, vector<16x32xf32>, vector<16x32xf32> -> vector<16x96xf32>
    %105 = arith.truncf %104 : vector<16x96xf32> to vector<16x96xbf16>
    %c2 = arith.constant 2 : index
    %c0_42 = arith.constant 0 : index
    %c0_43 = arith.constant 0 : index
    %106 = vector.load %arg5[%c2, %c0_42, %c0_43] : memref<3x96x32xbf16, #tpu.memory_space<vmem>>, vector<1x96x32xbf16>
    %107 = vector.shape_cast %106 : vector<1x96x32xbf16> to vector<96x32xbf16>
    %cst_44 = arith.constant dense<0.000000e+00> : vector<16x32xf32>
    %108 = tpu.matmul %105, %107, %cst_44 {dimension_numbers = #tpu.dot_dimension_numbers<[1], [0], [0], [1], [0, 0, 1, 1], [], []>} : vector<16x96xbf16>, vector<96x32xbf16>, vector<16x32xf32> -> vector<16x32xf32>
    %c2_45 = arith.constant 2 : index
    %c0_46 = arith.constant 0 : index
    %109 = vector.load %arg6[%c2_45, %c0_46] : memref<3x32xf32, #tpu.memory_space<vmem>>, vector<1x32xf32>
    %110 = vector.broadcast %109 : vector<1x32xf32> to vector<16x32xf32>
    %111 = arith.addf %108, %110 : vector<16x32xf32>
    %cst_47 = arith.constant 0.000000e+00 : f32
    %112 = vector.broadcast %cst_47 : f32 to vector<16x32xf32>
    %113 = arith.maximumf %111, %112 : vector<16x32xf32>
    %114 = arith.truncf %113 : vector<16x32xf32> to vector<16x32xbf16>
    %c2_48 = arith.constant 2 : index
    %c0_49 = arith.constant 0 : index
    %c0_50 = arith.constant 0 : index
    %115 = vector.load %arg7[%c2_48, %c0_49, %c0_50] : memref<3x32x32xbf16, #tpu.memory_space<vmem>>, vector<1x32x32xbf16>
    %116 = vector.shape_cast %115 : vector<1x32x32xbf16> to vector<32x32xbf16>
    %cst_51 = arith.constant dense<0.000000e+00> : vector<16x32xf32>
    %117 = tpu.matmul %114, %116, %cst_51 {dimension_numbers = #tpu.dot_dimension_numbers<[1], [0], [0], [1], [0, 0, 1, 1], [], []>} : vector<16x32xbf16>, vector<32x32xbf16>, vector<16x32xf32> -> vector<16x32xf32>
    %c2_52 = arith.constant 2 : index
    %c0_53 = arith.constant 0 : index
    %118 = vector.load %arg8[%c2_52, %c0_53] : memref<3x32xf32, #tpu.memory_space<vmem>>, vector<1x32xf32>
    %119 = vector.broadcast %118 : vector<1x32xf32> to vector<16x32xf32>
    %120 = arith.addf %117, %119 : vector<16x32xf32>
    %121 = arith.addf %89, %120 : vector<16x32xf32>
    %122 = vector.broadcast %3 : vector<16x1xf32> to vector<16x32xf32>
    %123 = arith.mulf %121, %122 : vector<16x32xf32>
    %124 = arith.truncf %123 : vector<16x32xf32> to vector<16x32xbf16>
    %c0_54 = arith.constant 0 : index
    %c0_55 = arith.constant 0 : index
    %125 = vector.load %arg9[%c0_54, %c0_55] : memref<32x128xbf16, #tpu.memory_space<vmem>>, vector<32x128xbf16>
    %cst_56 = arith.constant dense<0.000000e+00> : vector<16x128xf32>
    %126 = tpu.matmul %124, %125, %cst_56 {dimension_numbers = #tpu.dot_dimension_numbers<[1], [0], [0], [1], [0, 0, 1, 1], [], []>} : vector<16x32xbf16>, vector<32x128xbf16>, vector<16x128xf32> -> vector<16x128xf32>
    %c0_57 = arith.constant 0 : index
    %c0_58 = arith.constant 0 : index
    %127 = vector.load %arg10[%c0_57, %c0_58] : memref<1x128xf32, #tpu.memory_space<vmem>>, vector<1x128xf32>
    %128 = vector.broadcast %127 : vector<1x128xf32> to vector<16x128xf32>
    %129 = arith.addf %126, %128 : vector<16x128xf32>
    %c0_59 = arith.constant 0 : index
    %c0_60 = arith.constant 0 : index
    %c0_61 = arith.constant 0 : index
    %130 = vector.load %arg11[%c0_59, %c0_60, %c0_61] : memref<1x16x128xf32, #tpu.memory_space<vmem>>, vector<1x16x128xf32>
    %131 = vector.shape_cast %130 : vector<1x16x128xf32> to vector<16x128xf32>
    %132 = vector.shape_cast %129 : vector<16x128xf32> to vector<1x16x128xf32>
    tpu.vector_store %arg11[%c0_59, %c0_60, %c0_61], %132 {strides = array<i32>} : memref<1x16x128xf32, #tpu.memory_space<vmem>>, vector<1x16x128xf32>,
    return
  }
  func.func @transform_0(%arg0: i32) -> (i32, i32, i32) {
    %c0_i32 = arith.constant 0 : i32
    %c0_i32_0 = arith.constant 0 : i32
    %c0_i32_1 = arith.constant 0 : i32
    return %arg0, %c0_i32, %c0_i32_0 : i32, i32, i32
  }
  func.func @transform_1(%arg0: i32) -> (i32, i32, i32) {
    %c0_i32 = arith.constant 0 : i32
    %c0_i32_0 = arith.constant 0 : i32
    %c0_i32_1 = arith.constant 0 : i32
    return %arg0, %c0_i32, %c0_i32_0 : i32, i32, i32
  }
  func.func @transform_2(%arg0: i32) -> (i32, i32) {
    %c0_i32 = arith.constant 0 : i32
    %c0_i32_0 = arith.constant 0 : i32
    %c0_i32_1 = arith.constant 0 : i32
    return %c0_i32, %c0_i32_0 : i32, i32
  }
  func.func @transform_3(%arg0: i32) -> (i32, i32) {
    %c0_i32 = arith.constant 0 : i32
    %c0_i32_0 = arith.constant 0 : i32
    %c0_i32_1 = arith.constant 0 : i32
    return %c0_i32, %c0_i32_0 : i32, i32
  }
  func.func @transform_4(%arg0: i32) -> (i32, i32, i32) {
    %c0_i32 = arith.constant 0 : i32
    %c0_i32_0 = arith.constant 0 : i32
    %c0_i32_1 = arith.constant 0 : i32
    %c0_i32_2 = arith.constant 0 : i32
    return %c0_i32, %c0_i32_0, %c0_i32_1 : i32, i32, i32
  }
  func.func @transform_5(%arg0: i32) -> (i32, i32) {
    %c0_i32 = arith.constant 0 : i32
    %c0_i32_0 = arith.constant 0 : i32
    %c0_i32_1 = arith.constant 0 : i32
    return %c0_i32, %c0_i32_0 : i32, i32
  }
  func.func @transform_6(%arg0: i32) -> (i32, i32, i32) {
    %c0_i32 = arith.constant 0 : i32
    %c0_i32_0 = arith.constant 0 : i32
    %c0_i32_1 = arith.constant 0 : i32
    %c0_i32_2 = arith.constant 0 : i32
    return %c0_i32, %c0_i32_0, %c0_i32_1 : i32, i32, i32
  }
  func.func @transform_7(%arg0: i32) -> (i32, i32) {
    %c0_i32 = arith.constant 0 : i32
    %c0_i32_0 = arith.constant 0 : i32
    %c0_i32_1 = arith.constant 0 : i32
    return %c0_i32, %c0_i32_0 : i32, i32
  }
  func.func @transform_8(%arg0: i32) -> (i32, i32) {
    %c0_i32 = arith.constant 0 : i32
    %c0_i32_0 = arith.constant 0 : i32
    %c0_i32_1 = arith.constant 0 : i32
    return %c0_i32, %c0_i32_0 : i32, i32
  }
  func.func @transform_9(%arg0: i32) -> (i32, i32) {
    %c0_i32 = arith.constant 0 : i32
    %c0_i32_0 = arith.constant 0 : i32
    %c0_i32_1 = arith.constant 0 : i32
    return %c0_i32, %c0_i32_0 : i32, i32
  }
  func.func @transform_10(%arg0: i32) -> (i32, i32, i32) {
    %c0_i32 = arith.constant 0 : i32
    %c0_i32_0 = arith.constant 0 : i32
    %c0_i32_1 = arith.constant 0 : i32
    return %arg0, %c0_i32, %c0_i32_0 : i32, i32, i32
  }
}

</mosaic_0001>

<llo_original>
// kernel: multi_stage_forward.4
$region0: #{multi_stage_forward.4}
  #allocation0 [shape = 'u32[]', space=smem, size = 0x4, offset = 0x4, fixed_abs, tag = 'smem constant byte address 0x4 - core index']
  #allocation1 [shape = 'u32[144,128]{1,0:T(1,128)}', space=vmem, size = 0x12000, scoped, tag = 'internal scratch']
  %s0 = inlined_call_operand.vmem [shape: f32[2,16,64], index: 0, kind: input, shape index: {}]
  %s1 = inlined_call_operand.vmem [shape: f32[2,16,1], index: 1, kind: input, shape index: {}]
  %s2 = inlined_call_operand.vmem [shape: bf16[64,32], index: 2, kind: input, shape index: {}]
  %s3 = inlined_call_operand.vmem [shape: f32[1,32], index: 3, kind: input, shape index: {}]
  %s4 = inlined_call_operand.vmem [shape: bf16[3,96,32], index: 4, kind: input, shape index: {}]
  %s5 = inlined_call_operand.hbm [shape: f32[3,32], index: 5, kind: input, shape index: {}]
  %s6 = inlined_call_operand.hbm [shape: bf16[3,32,32], index: 6, kind: input, shape index: {}]
  %s7 = inlined_call_operand.vmem [shape: f32[3,32], index: 7, kind: input, shape index: {}]
  %s8 = inlined_call_operand.vmem [shape: bf16[32,128], index: 8, kind: input, shape index: {}]
  %s9 = inlined_call_operand.vmem [shape: f32[1,128], index: 9, kind: input, shape index: {}]
  %s10 = inlined_call_operand.vmem [shape: f32[2,16,128], index: 10, kind: output, shape index: {}]
  %s11 = sld [smem:[#allocation0]]
  $region81: #{multi_stage_forward.4} parent=0
    _
  %s13 = ssub.s32 1, %s11
  %s14 = scalar_select 0, %s13, %s11
  $region1: #{multi_stage_forward.4} parent=0
    #allocation2 [shape = 'u8[2048]{0}', space=vmem, size = 0x800, scoped, tag = 'input window, operand 5, single buffered']
    #allocation3 [shape = 's32[2]{0}', space=sflag, size = 0x8, scoped, tag = 'scoped memory for multi_stage_forward.4']
    #allocation4 [shape = 'u8[24576]{0}', space=vmem, size = 0x6000, scoped, tag = 'input window, operand 6, single buffered']
    #allocation5 [shape = 's32[1]{0}', space=sflag, size = 0x4, scoped, tag = 'scoped memory for multi_stage_forward.4']
    %15 = vsyncpa [#allocation3], 0
    %16 = vsyncpa [#allocation5], 0
    loop: start=0, step=1, limit=4
    $region2: #{multi_stage_forward.4} parent=1 // loop_pre_header
      _
    $region3: #{multi_stage_forward.4} parent=1 // loop_header
      %s18 = sphi 0, %s22
      %p19 = scmp.ge.s32.totalorder %s18, 4
      %s28 = sphi 0, %s30
      %s31 = sphi 0, %s28
      %s32 = sphi 0, %s31
      %s48 = sphi 0, %s32
      %s54 = sphi 0, %s56
      %s57 = sphi 0, %s54
      %s58 = sphi 0, %s57
      %s74 = sphi 0, %s58
      %s78 = sphi 0, %s78
      %s80 = sphi 0, %s78
      %s81 = sphi 0, %s80
      %s95 = sphi 0, %s81
      %s99 = sphi 0, %s99
      %s101 = sphi 0, %s99
      %s102 = sphi 0, %s101
      %s116 = sphi 0, %s102
      %s120 = sphi 0, %s120
      %s122 = sphi 0, %s120
      %s123 = sphi 0, %s122
      %s137 = sphi 0, %s123
      %s141 = sphi 0, %s141
      %s143 = sphi 0, %s141
      %s144 = sphi 0, %s143
      %s158 = sphi 0, %s144
      %s162 = sphi 0, %s162
      %s164 = sphi 0, %s162
      %s165 = sphi 0, %s164
      %s179 = sphi 0, %s165
      %s183 = sphi 0, %s183
      %s185 = sphi 0, %s183
      %s186 = sphi 0, %s185
      %s200 = sphi 0, %s186
      %s204 = sphi 0, %s204
      %s206 = sphi 0, %s204
      %s207 = sphi 0, %s206
      %s221 = sphi 0, %s207
      %s225 = sphi 0, %s225
      %s227 = sphi 0, %s225
      %s228 = sphi 0, %s227
      %s242 = sphi 0, %s228
      %s248 = sphi 0, %s250
      %s251 = sphi 0, %s248
      %s252 = sphi 0, %s251
      %s268 = sphi 0, %s252
    $region4: #{multi_stage_forward.4} parent=1 // loop_header_branch
      %21 = sbr.rel (%p19) target = $region8
    $region5: #{multi_stage_forward.4} parent=1 // loop_body
      %s23 = ssub.s32 %s18, 1
      %s24 = ssub.s32 %s18, 2
      %s25 = sadd.s32 %s18, 1
      %s26 = ssub.s32 %s18, %s25
      %p27 = scmp.eq.s32.totalorder %s26, 0
      %s29 = sadd.s32 %s28, 1
      %s30 = scalar_select %p27, %s28, %s29
      %p33 = pneg %p27
      %p34 = scmp.eq.s32.totalorder %s18, 1
      %p35 = por %p33, %p34
      %p36 = scmp.ne.s32.totalorder %s28, %s31
      %p37 = scmp.eq.s32.totalorder %s18, 0
      %p38 = por %p36, %p37
      %p39 = scmp.ne.s32.totalorder %s28, %s31
      %p40 = scmp.eq.s32.totalorder %s23, 1
      %p41 = por %p39, %p40
      %p42 = scmp.ne.s32.totalorder %s31, %s32
      %p43 = scmp.eq.s32.totalorder %s23, 0
      %p44 = por %p42, %p43
      %p45 = scmp.ne.s32.totalorder %s31, %s32
      %p46 = scmp.eq.s32.totalorder %s24, 1
      %p47 = por %p45, %p46
      %p49 = scmp.ne.s32.totalorder %s32, %s48
      %p50 = scmp.eq.s32.totalorder %s24, 0
      %p51 = por %p49, %p50
      %s52 = ssub.s32 %s18, %s25
      %p53 = scmp.eq.s32.totalorder %s52, 0
      %s55 = sadd.s32 %s54, 1
      %s56 = scalar_select %p53, %s54, %s55
      %p59 = pneg %p53
      %p60 = scmp.eq.s32.totalorder %s18, 1
      %p61 = por %p59, %p60
      %p62 = scmp.ne.s32.totalorder %s54, %s57
      %p63 = scmp.eq.s32.totalorder %s18, 0
      %p64 = por %p62, %p63
      %p65 = scmp.ne.s32.totalorder %s54, %s57
      %p66 = scmp.eq.s32.totalorder %s23, 1
      %p67 = por %p65, %p66
      %p68 = scmp.ne.s32.totalorder %s57, %s58
      %p69 = scmp.eq.s32.totalorder %s23, 0
      %p70 = por %p68, %p69
      %p71 = scmp.ne.s32.totalorder %s57, %s58
      %p72 = scmp.eq.s32.totalorder %s24, 1
      %p73 = por %p71, %p72
      %p75 = scmp.ne.s32.totalorder %s58, %s74
      %p76 = scmp.eq.s32.totalorder %s24, 0
      %p77 = por %p75, %p76
      %s79 = sadd.s32 %s78, 1
      %p82 = scmp.eq.s32.totalorder %s18, 1
      %p83 = scmp.ne.s32.totalorder %s78, %s80
      %p84 = scmp.eq.s32.totalorder %s18, 0
      %p85 = por %p83, %p84
      %p86 = scmp.ne.s32.totalorder %s78, %s80
      %p87 = scmp.eq.s32.totalorder %s23, 1
      %p88 = por %p86, %p87
      %p89 = scmp.ne.s32.totalorder %s80, %s81
      %p90 = scmp.eq.s32.totalorder %s23, 0
      %p91 = por %p89, %p90
      %p92 = scmp.ne.s32.totalorder %s80, %s81
      %p93 = scmp.eq.s32.totalorder %s24, 1
      %p94 = por %p92, %p93
      %p96 = scmp.ne.s32.totalorder %s81, %s95
      %p97 = scmp.eq.s32.totalorder %s24, 0
      %p98 = por %p96, %p97
      %s100 = sadd.s32 %s99, 1
      %p103 = scmp.eq.s32.totalorder %s18, 1
      %p104 = scmp.ne.s32.totalorder %s99, %s101
      %p105 = scmp.eq.s32.totalorder %s18, 0
      %p106 = por %p104, %p105
      %p107 = scmp.ne.s32.totalorder %s99, %s101
      %p108 = scmp.eq.s32.totalorder %s23, 1
      %p109 = por %p107, %p108
      %p110 = scmp.ne.s32.totalorder %s101, %s102
      %p111 = scmp.eq.s32.totalorder %s23, 0
      %p112 = por %p110, %p111
      %p113 = scmp.ne.s32.totalorder %s101, %s102
      %p114 = scmp.eq.s32.totalorder %s24, 1
      %p115 = por %p113, %p114
      %p117 = scmp.ne.s32.totalorder %s102, %s116
      %p118 = scmp.eq.s32.totalorder %s24, 0
      %p119 = por %p117, %p118
      %s121 = sadd.s32 %s120, 1
      %p124 = scmp.eq.s32.totalorder %s18, 1
      %p125 = scmp.ne.s32.totalorder %s120, %s122
      %p126 = scmp.eq.s32.totalorder %s18, 0
      %p127 = por %p125, %p126
      %p128 = scmp.ne.s32.totalorder %s120, %s122
      %p129 = scmp.eq.s32.totalorder %s23, 1
      %p130 = por %p128, %p129
      %p131 = scmp.ne.s32.totalorder %s122, %s123
      %p132 = scmp.eq.s32.totalorder %s23, 0
      %p133 = por %p131, %p132
      %p134 = scmp.ne.s32.totalorder %s122, %s123
      %p135 = scmp.eq.s32.totalorder %s24, 1
      %p136 = por %p134, %p135
      %p138 = scmp.ne.s32.totalorder %s123, %s137
      %p139 = scmp.eq.s32.totalorder %s24, 0
      %p140 = por %p138, %p139
      %s142 = sadd.s32 %s141, 1
      %p145 = scmp.eq.s32.totalorder %s18, 1
      %p146 = scmp.ne.s32.totalorder %s141, %s143
      %p147 = scmp.eq.s32.totalorder %s18, 0
      %p148 = por %p146, %p147
      %p149 = scmp.ne.s32.totalorder %s141, %s143
      %p150 = scmp.eq.s32.totalorder %s23, 1
      %p151 = por %p149, %p150
      %p152 = scmp.ne.s32.totalorder %s143, %s144
      %p153 = scmp.eq.s32.totalorder %s23, 0
      %p154 = por %p152, %p153
      %p155 = scmp.ne.s32.totalorder %s143, %s144
      %p156 = scmp.eq.s32.totalorder %s24, 1
      %p157 = por %p155, %p156
      %p159 = scmp.ne.s32.totalorder %s144, %s158
      %p160 = scmp.eq.s32.totalorder %s24, 0
      %p161 = por %p159, %p160
      %s163 = sadd.s32 %s162, 1
      %p166 = scmp.eq.s32.totalorder %s18, 1
      %p167 = scmp.ne.s32.totalorder %s162, %s164
      %p168 = scmp.eq.s32.totalorder %s18, 0
      %p169 = por %p167, %p168
      %p170 = scmp.ne.s32.totalorder %s162, %s164
      %p171 = scmp.eq.s32.totalorder %s23, 1
      %p172 = por %p170, %p171
      %p173 = scmp.ne.s32.totalorder %s164, %s165
      %p174 = scmp.eq.s32.totalorder %s23, 0
      %p175 = por %p173, %p174
      %p176 = scmp.ne.s32.totalorder %s164, %s165
      %p177 = scmp.eq.s32.totalorder %s24, 1
      %p178 = por %p176, %p177
      %p180 = scmp.ne.s32.totalorder %s165, %s179
      %p181 = scmp.eq.s32.totalorder %s24, 0
      %p182 = por %p180, %p181
      %s184 = sadd.s32 %s183, 1
      %p187 = scmp.eq.s32.totalorder %s18, 1
      %p188 = scmp.ne.s32.totalorder %s183, %s185
      %p189 = scmp.eq.s32.totalorder %s18, 0
      %p190 = por %p188, %p189
      %p191 = scmp.ne.s32.totalorder %s183, %s185
      %p192 = scmp.eq.s32.totalorder %s23, 1
      %p193 = por %p191, %p192
      %p194 = scmp.ne.s32.totalorder %s185, %s186
      %p195 = scmp.eq.s32.totalorder %s23, 0
      %p196 = por %p194, %p195
      %p197 = scmp.ne.s32.totalorder %s185, %s186
      %p198 = scmp.eq.s32.totalorder %s24, 1
      %p199 = por %p197, %p198
      %p201 = scmp.ne.s32.totalorder %s186, %s200
      %p202 = scmp.eq.s32.totalorder %s24, 0
      %p203 = por %p201, %p202
      %s205 = sadd.s32 %s204, 1
      %p208 = scmp.eq.s32.totalorder %s18, 1
      %p209 = scmp.ne.s32.totalorder %s204, %s206
      %p210 = scmp.eq.s32.totalorder %s18, 0
      %p211 = por %p209, %p210
      %p212 = scmp.ne.s32.totalorder %s204, %s206
      %p213 = scmp.eq.s32.totalorder %s23, 1
      %p214 = por %p212, %p213
      %p215 = scmp.ne.s32.totalorder %s206, %s207
      %p216 = scmp.eq.s32.totalorder %s23, 0
      %p217 = por %p215, %p216
      %p218 = scmp.ne.s32.totalorder %s206, %s207
      %p219 = scmp.eq.s32.totalorder %s24, 1
      %p220 = por %p218, %p219
      %p222 = scmp.ne.s32.totalorder %s207, %s221
      %p223 = scmp.eq.s32.totalorder %s24, 0
      %p224 = por %p222, %p223
      %s226 = sadd.s32 %s225, 1
      %p229 = scmp.eq.s32.totalorder %s18, 1
      %p230 = scmp.ne.s32.totalorder %s225, %s227
      %p231 = scmp.eq.s32.totalorder %s18, 0
      %p232 = por %p230, %p231
      %p233 = scmp.ne.s32.totalorder %s225, %s227
      %p234 = scmp.eq.s32.totalorder %s23, 1
      %p235 = por %p233, %p234
      %p236 = scmp.ne.s32.totalorder %s227, %s228
      %p237 = scmp.eq.s32.totalorder %s23, 0
      %p238 = por %p236, %p237
      %p239 = scmp.ne.s32.totalorder %s227, %s228
      %p240 = scmp.eq.s32.totalorder %s24, 1
      %p241 = por %p239, %p240
      %p243 = scmp.ne.s32.totalorder %s228, %s242
      %p244 = scmp.eq.s32.totalorder %s24, 0
      %p245 = por %p243, %p244
      %s246 = ssub.s32 %s18, %s25
      %p247 = scmp.eq.s32.totalorder %s246, 0
      %s249 = sadd.s32 %s248, 1
      %s250 = scalar_select %p247, %s248, %s249
      %p253 = pneg %p247
      %p254 = scmp.eq.s32.totalorder %s18, 1
      %p255 = por %p253, %p254
      %p256 = scmp.ne.s32.totalorder %s248, %s251
      %p257 = scmp.eq.s32.totalorder %s18, 0
      %p258 = por %p256, %p257
      %p259 = scmp.ne.s32.totalorder %s248, %s251
      %p260 = scmp.eq.s32.totalorder %s23, 1
      %p261 = por %p259, %p260
      %p262 = scmp.ne.s32.totalorder %s251, %s252
      %p263 = scmp.eq.s32.totalorder %s23, 0
      %p264 = por %p262, %p263
      %p265 = scmp.ne.s32.totalorder %s251, %s252
      %p266 = scmp.eq.s32.totalorder %s24, 1
      %p267 = por %p265, %p266
      %p269 = scmp.ne.s32.totalorder %s252, %s268
      %p270 = scmp.eq.s32.totalorder %s24, 0
      %p271 = por %p269, %p270
      %p272 = scmp.le.s32.totalorder 1, %s18
      %p273 = scmp.lt.s32.totalorder %s18, 3
      %p274 = pnand %p272, %p273
      %p275 = pneg %p274
      // Predicated region
      $region9: #{multi_stage_forward.4} parent=5 // pred_check
        _
      $region10: #{multi_stage_forward.4} parent=5 // pred_check_branch
        %277 = sbr.rel (%p274) target = $region12
      $region11: #{multi_stage_forward.4} parent=5 // pred_region
        %s278 = ssub.s32 %s18, 1
        // Predicated region
        $region13: #{multi_stage_forward.4} parent=11 // pred_check
          %p279 = pneg %p91
        $region14: #{multi_stage_forward.4} parent=11 // pred_check_branch
          %281 = sbr.rel (%p279) target = $region16
        $region15: #{multi_stage_forward.4} parent=11 // pred_region
          _
        $region16: #{multi_stage_forward.4} parent=11 // pred_fallthru
          _
        // Predicated region
        $region17: #{multi_stage_forward.4} parent=11 // pred_check
          %p282 = pneg %p112
        $region18: #{multi_stage_forward.4} parent=11 // pred_check_branch
          %284 = sbr.rel (%p282) target = $region20
        $region19: #{multi_stage_forward.4} parent=11 // pred_region
          _
        $region20: #{multi_stage_forward.4} parent=11 // pred_fallthru
          _
        // Predicated region
        $region21: #{multi_stage_forward.4} parent=11 // pred_check
          %p285 = pneg %p133
        $region22: #{multi_stage_forward.4} parent=11 // pred_check_branch
          %287 = sbr.rel (%p285) target = $region24
        $region23: #{multi_stage_forward.4} parent=11 // pred_region
          _
        $region24: #{multi_stage_forward.4} parent=11 // pred_fallthru
          _
        // Predicated region
        $region25: #{multi_stage_forward.4} parent=11 // pred_check
          %p288 = pneg %p154
        $region26: #{multi_stage_forward.4} parent=11 // pred_check_branch
          %290 = sbr.rel (%p288) target = $region28
        $region27: #{multi_stage_forward.4} parent=11 // pred_region
          %s292 = ssub.s32 64, 64
          %293 = vsyncadd [#allocation3], %s292
          %s295 = sshll.u32 [#allocation2], 4
          %s296 = int_to_ptr.vmem [resolvable:$true] %s295
          %298 = dma.hbm_to_vmem [thread:$0]  %s5, 64, %s296, [#allocation3]
        $region28: #{multi_stage_forward.4} parent=11 // pred_fallthru
          _
        // Predicated region
        $region29: #{multi_stage_forward.4} parent=11 // pred_check
          %p299 = pneg %p175
        $region30: #{multi_stage_forward.4} parent=11 // pred_check_branch
          %301 = sbr.rel (%p299) target = $region32
        $region31: #{multi_stage_forward.4} parent=11 // pred_region
          %s303 = ssub.s32 768, 768
          %304 = vsyncadd [#allocation5], %s303
          %s305 = sshll.u32 [#allocation4], 4
          %s306 = int_to_ptr.vmem [resolvable:$true] %s305
          %311 = dma.hbm_to_vmem [thread:$0]  %s6, 768, %s306, [#allocation5], 64, 64, 4
        $region32: #{multi_stage_forward.4} parent=11 // pred_fallthru
          _
        // Predicated region
        $region33: #{multi_stage_forward.4} parent=11 // pred_check
          %p312 = pneg %p196
        $region34: #{multi_stage_forward.4} parent=11 // pred_check_branch
          %314 = sbr.rel (%p312) target = $region36
        $region35: #{multi_stage_forward.4} parent=11 // pred_region
          _
        $region36: #{multi_stage_forward.4} parent=11 // pred_fallthru
          _
        // Predicated region
        $region37: #{multi_stage_forward.4} parent=11 // pred_check
          %p315 = pneg %p217
        $region38: #{multi_stage_forward.4} parent=11 // pred_check_branch
          %317 = sbr.rel (%p315) target = $region40
        $region39: #{multi_stage_forward.4} parent=11 // pred_region
          _
        $region40: #{multi_stage_forward.4} parent=11 // pred_fallthru
          _
        // Predicated region
        $region41: #{multi_stage_forward.4} parent=11 // pred_check
          %p318 = pneg %p238
        $region42: #{multi_stage_forward.4} parent=11 // pred_check_branch
          %320 = sbr.rel (%p318) target = $region44
        $region43: #{multi_stage_forward.4} parent=11 // pred_region
          _
        $region44: #{multi_stage_forward.4} parent=11 // pred_fallthru
          _
      $region12: #{multi_stage_forward.4} parent=5 // pred_fallthru
        _
      %p321 = scmp.lt.s32.totalorder %s18, 2
      // Predicated region
      $region45: #{multi_stage_forward.4} parent=5 // pred_check
        %p322 = pneg %p321
      $region46: #{multi_stage_forward.4} parent=5 // pred_check_branch
        %324 = sbr.rel (%p322) target = $region48
      $region47: #{multi_stage_forward.4} parent=5 // pred_region
        // Predicated region
        $region49: #{multi_stage_forward.4} parent=47 // pred_check
          %p325 = pneg %p38
        $region50: #{multi_stage_forward.4} parent=47 // pred_check_branch
          %327 = sbr.rel (%p325) target = $region52
        $region51: #{multi_stage_forward.4} parent=47 // pred_region
          %p328 = scmp.lt.s32.totalorder %s18, 1
          %s329 = scalar_select %p328, %s18, 1
          %s330 = smul.addr %s329, 2
          %s331 = smul.addr %s330, 8
          %s332 = scalar_lea.vmem %s0, %s331
        $region52: #{multi_stage_forward.4} parent=47 // pred_fallthru
          _
        // Predicated region
        $region53: #{multi_stage_forward.4} parent=47 // pred_check
          %p333 = pneg %p64
        $region54: #{multi_stage_forward.4} parent=47 // pred_check_branch
          %335 = sbr.rel (%p333) target = $region56
        $region55: #{multi_stage_forward.4} parent=47 // pred_region
          %p336 = scmp.lt.s32.totalorder %s18, 1
          %s337 = scalar_select %p336, %s18, 1
          %s338 = smul.addr %s337, 2
          %s339 = smul.addr %s338, 8
          %s340 = scalar_lea.vmem %s1, %s339
        $region56: #{multi_stage_forward.4} parent=47 // pred_fallthru
          _
      $region48: #{multi_stage_forward.4} parent=5 // pred_fallthru
        _
      %p341 = scmp.le.s32.totalorder 1, %s18
      %p342 = scmp.lt.s32.totalorder %s18, 3
      %p343 = pnand %p341, %p342
      %p344 = pneg %p343
      // Predicated region
      $region57: #{multi_stage_forward.4} parent=5 // pred_check
        _
      $region58: #{multi_stage_forward.4} parent=5 // pred_check_branch
        %346 = sbr.rel (%p343) target = $region60
      $region59: #{multi_stage_forward.4} parent=5 // pred_region
        %s347 = ssub.s32 %s18, 1
        // Predicated region
        $region61: #{multi_stage_forward.4} parent=59 // pred_check
          %p348 = pneg %p154
        $region62: #{multi_stage_forward.4} parent=59 // pred_check_branch
          %350 = sbr.rel (%p348) target = $region64
        $region63: #{multi_stage_forward.4} parent=59 // pred_region
          %351 = dma.done [#allocation3], 64
        $region64: #{multi_stage_forward.4} parent=59 // pred_fallthru
          _
        // Predicated region
        $region65: #{multi_stage_forward.4} parent=59 // pred_check
          %p352 = pneg %p175
        $region66: #{multi_stage_forward.4} parent=59 // pred_check_branch
          %354 = sbr.rel (%p352) target = $region68
        $region67: #{multi_stage_forward.4} parent=59 // pred_region
          %355 = dma.done [#allocation5], 768
        $region68: #{multi_stage_forward.4} parent=59 // pred_fallthru
          _
        %p356 = scmp.lt.s32.totalorder %s23, 1
        %s357 = scalar_select %p356, %s23, 1
        %s358 = smul.addr %s357, 2
        %s359 = smul.addr %s358, 8
        %s360 = scalar_lea.vmem %s0, %s359
        %p361 = pneg %p44
        %p362 = pneg %p41
        %p363 = scmp.lt.s32.totalorder %s23, 1
        %s364 = scalar_select %p363, %s23, 1
        %s365 = smul.addr %s364, 2
        %s366 = smul.addr %s365, 8
        %s367 = scalar_lea.vmem %s1, %s366
        %p368 = pneg %p70
        %p369 = pneg %p67
        %p370 = pneg %p91
        %p371 = pneg %p88
        %p372 = pneg %p112
        %p373 = pneg %p109
        %p374 = pneg %p133
        %p375 = pneg %p130
        %p376 = pneg %p154
        %p377 = pneg %p151
        %p378 = pneg %p175
        %p379 = pneg %p172
        %p380 = pneg %p196
        %p381 = pneg %p193
        %p382 = pneg %p217
        %p383 = pneg %p214
        %p384 = pneg %p238
        %p385 = pneg %p235
        %p386 = pneg %p264
        %p387 = pneg %p261
        %p388 = scmp.lt.s32.totalorder %s23, 1
        %s389 = scalar_select %p388, %s23, 1
        %s390 = smul.addr %s389, 2
        %s391 = smul.addr %s390, 8
        %s392 = scalar_lea.vmem %s10, %s391
        %p393 = scmp.lt.s32.totalorder %s23, 1
        %s394 = scalar_select %p393, %s23, 1
        %s395 = smul.addr %s394, 2
        %s396 = smul.addr %s395, 8
        %s397 = scalar_lea.vmem %s0, %s396
        %p398 = scmp.lt.s32.totalorder %s23, 1
        %s399 = scalar_select %p398, %s23, 1
        %s400 = smul.addr %s399, 2
        %s401 = smul.addr %s400, 8
        %s402 = scalar_lea.vmem %s1, %s401
        %p403 = scmp.lt.s32.totalorder %s23, 1
        %s404 = scalar_select %p403, %s23, 1
        %s405 = smul.addr %s404, 2
        %s406 = smul.addr %s405, 8
        %s407 = scalar_lea.vmem %s10, %s406
        %v409 = vld [vmem:[%s397] sm:$0xff]
        %v410 = vld [vmem:[%s397 + $0x8] sm:$0xff]
        %v411 = vld [vmem:[%s402] sm:$0xff]
        %v412 = vld [vmem:[%s402 + $0x8] sm:$0xff]
        %v413 = vpack.c.bf16 %v410, %v409
        %v414 = vld [vmem:[%s2] sm:$0xf]
        %v415 = vld [vmem:[%s2 + $0x4] sm:$0xf]
        %v416 = vld [vmem:[%s2 + $0x8] sm:$0xf]
        %v417 = vld [vmem:[%s2 + $0xc] sm:$0xf]
        %v418 = vld [vmem:[%s2 + $0x10] sm:$0xf]
        %v419 = vld [vmem:[%s2 + $0x14] sm:$0xf]
        %v420 = vld [vmem:[%s2 + $0x18] sm:$0xf]
        %v421 = vld [vmem:[%s2 + $0x1c] sm:$0xf]
        %v422 = vld [vmem:[%s3] sm:$0x1]
        %v424 = vlaneseq
        %v425 = vshrl.u32 %v424, 7
        %v426 = vsub.s32 0, %v425
        %v427 = vrot.slane %v422, %v426
        %v437 = vunpack.c.l.b16 %v414
        %v438 = vunpack.c.l.b16 %v415
        %v439 = vunpack.c.l.b16 %v416
        %v440 = vunpack.c.l.b16 %v417
        %v441 = vunpack.c.l.b16 %v418
        %v442 = vunpack.c.l.b16 %v419
        %v443 = vunpack.c.l.b16 %v420
        %v444 = vunpack.c.l.b16 %v421
        %v445 = vpack.c.b16 %v438, %v437
        %v446 = vpack.c.b16 %v440, %v439
        %v447 = vpack.c.b16 %v442, %v441
        %v448 = vpack.c.b16 %v444, %v443
        %vm453 = vcmask 523264
        %v455 = vsel %vm453, %v413, 0
        %457 = vmatprep.subr.bf16.mxu0 0
        %458 = vmatpush1.bf16.msra.mxu0 %v445
        %459 = vmatprep.subr.bf16.mxu0 0
        %460 = vmatpush1.bf16.msra.mxu0 %v446
        %461 = vmatprep.subr.bf16.mxu0 0
        %462 = vmatpush1.bf16.msra.mxu0 %v447
        %463 = vmatprep.subr.bf16.mxu0 0
        %464 = vmatpush1.bf16.msra.mxu0 %v448
        %465 = vmatprep.subr.bf16.mxu0 0
        %466 = vmatpush1.bf16.msra.mxu0 0
        %467 = vmatprep.subr.bf16.mxu0 0
        %468 = vmatpush1.bf16.msra.mxu0 0
        %469 = vmatprep.subr.bf16.mxu0 0
        %470 = vmatpush1.bf16.msra.mxu0 0
        %471 = vmatprep.subr.bf16.mxu0 0
        %472 = vmatpush1.bf16.msra.mxu0 0
        %473 = vmatprep.subr.bf16.mxu0 0
        %474 = vmatpush1.bf16.msra.mxu0 0
        %475 = vmatprep.subr.bf16.mxu0 0
        %476 = vmatpush1.bf16.msra.mxu0 0
        %477 = vmatprep.subr.bf16.mxu0 0
        %478 = vmatpush1.bf16.msra.mxu0 0
        %479 = vmatprep.subr.bf16.mxu0 0
        %480 = vmatpush1.bf16.msra.mxu0 0
        %481 = vmatprep.subr.bf16.mxu0 0
        %482 = vmatpush1.bf16.msra.mxu0 0
        %483 = vmatprep.subr.bf16.mxu0 0
        %484 = vmatpush1.bf16.msra.mxu0 0
        %485 = vmatprep.subr.bf16.mxu0 0
        %486 = vmatpush1.bf16.msra.mxu0 0
        %487 = vmatprep.subr.bf16.mxu0 0
        %488 = vmatpush1.bf16.msra.mxu0 0
        %489 = vmatprep.mubr.bf16.mxu0 0
        %490 = vmatmul.mubr.bf16.gmra.mrb[0].mxu0 %v455
        %v491 = vpop.f32.mrb[0].mxu0
        %v492 = vadd.f32 %v427, %v491
        %v493 = vpop.f32.mrb[0].mxu0
        %v494 = vpop.f32.mrb[0].mxu0
        %v495 = vadd.f32 %v427, %v494
        %v496 = vpop.f32.mrb[0].mxu0
        %497 = vdwg.mxu0
        %v498 = vlaneseq
        %v499 = vshrl.u32 %v498, 7
        %v500 = vadd.s32 %v499, 8
        %vm501 = vcmp.ge.s32.totalorder %v499, 1
        %vm502 = vcmp.ge.s32.totalorder %v500, 1
        %v503 = vsel %vm501, 1, 0
        %v504 = vsel %vm502, 1, 0
        %v505 = vcvt.s32.f32 %v503
        %v506 = vcvt.s32.f32 %v504
        %vm507 = vcmp.lt.s32.totalorder %v499, 15
        %vm508 = vcmp.lt.s32.totalorder %v500, 15
        %v509 = vsel %vm507, 1, 0
        %v510 = vsel %vm508, 1, 0
        %v511 = vcvt.s32.f32 %v509
        %v512 = vcvt.s32.f32 %v510
        %v513 = vrot.slane %v492, 7
        %v514 = vrot.slane %v495, 7
        %vm515 = vcmp.lt.s32.totalorder %v499, 1
        %v516 = vsel %vm515, %v513, %v514
        %v517 = vsel %vm515, %v514, %v513
        %v518 = vmul.f32 %v517, %v505
        %v519 = vmul.f32 %v516, %v506
        %v520 = vrot.slane %v492, 1
        %v521 = vrot.slane %v495, 1
        %vm522 = vcmp.lt.s32.totalorder %v499, 7
        %v523 = vsel %vm522, %v520, %v521
        %v524 = vsel %vm522, %v521, %v520
        %v525 = vmul.f32 %v523, %v511
        %v526 = vmul.f32 %v524, %v512
        %529 = vrot.lane.b32.xlu0 %v492, 32
        %v530 = vpop.permute.xlu0 %529
        %531 = vrot.lane.b32.xlu0 %v495, 32
        %v532 = vpop.permute.xlu0 %531
        %537 = vrot.lane.b32.xlu0 %v525, 64
        %v538 = vpop.permute.xlu0 %537
        %539 = vrot.lane.b32.xlu0 %v526, 64
        %v540 = vpop.permute.xlu0 %539
        %vm543 = vcmask 261120
        %v544 = vsel %vm543, %v518, %v530
        %v545 = vsel %vm543, %v519, %v532
        %v546 = vsel %vm453, %v544, %v538
        %v547 = vsel %vm453, %v545, %v540
        %v548 = vpack.c.bf16 %v547, %v546
        %v549 = vld [vmem:[%s4] sm:$0xf]
        %v550 = vld [vmem:[%s4 + $0x4] sm:$0xf]
        %v551 = vld [vmem:[%s4 + $0x8] sm:$0xf]
        %v552 = vld [vmem:[%s4 + $0xc] sm:$0xf]
        %v553 = vld [vmem:[%s4 + $0x10] sm:$0xf]
        %v554 = vld [vmem:[%s4 + $0x14] sm:$0xf]
        %v555 = vld [vmem:[%s4 + $0x18] sm:$0xf]
        %v556 = vld [vmem:[%s4 + $0x1c] sm:$0xf]
        %v557 = vld [vmem:[%s4 + $0x20] sm:$0xf]
        %v558 = vld [vmem:[%s4 + $0x24] sm:$0xf]
        %v559 = vld [vmem:[%s4 + $0x28] sm:$0xf]
        %v560 = vld [vmem:[%s4 + $0x2c] sm:$0xf]
        %v561 = vld [vmem:[#allocation2] sm:$0x1]
        %v562 = vlaneseq
        %v563 = vshrl.u32 %v562, 7
        %v564 = vsub.s32 0, %v563
        %v565 = vrot.slane %v561, %v564
        %v578 = vunpack.c.l.b16 %v549
        %v579 = vunpack.c.l.b16 %v550
        %v580 = vunpack.c.l.b16 %v551
        %v581 = vunpack.c.l.b16 %v552
        %v582 = vunpack.c.l.b16 %v553
        %v583 = vunpack.c.l.b16 %v554
        %v584 = vunpack.c.l.b16 %v555
        %v585 = vunpack.c.l.b16 %v556
        %v586 = vunpack.c.l.b16 %v557
        %v587 = vunpack.c.l.b16 %v558
        %v588 = vunpack.c.l.b16 %v559
        %v589 = vunpack.c.l.b16 %v560
        %v590 = vpack.c.b16 %v579, %v578
        %v591 = vpack.c.b16 %v581, %v580
        %v592 = vpack.c.b16 %v583, %v582
        %v593 = vpack.c.b16 %v585, %v584
        %v594 = vpack.c.b16 %v587, %v586
        %v595 = vpack.c.b16 %v589, %v588
        %vm602 = vcmask 785408
        %v604 = vsel %vm602, %v548, 0
        %606 = vmatprep.subr.bf16.mxu0 0
        %607 = vmatpush1.bf16.msra.mxu0 %v590
        %608 = vmatprep.subr.bf16.mxu0 0
        %609 = vmatpush1.bf16.msra.mxu0 %v591
        %610 = vmatprep.subr.bf16.mxu0 0
        %611 = vmatpush1.bf16.msra.mxu0 %v592
        %612 = vmatprep.subr.bf16.mxu0 0
        %613 = vmatpush1.bf16.msra.mxu0 %v593
        %614 = vmatprep.subr.bf16.mxu0 0
        %615 = vmatpush1.bf16.msra.mxu0 %v594
        %616 = vmatprep.subr.bf16.mxu0 0
        %617 = vmatpush1.bf16.msra.mxu0 %v595
        %618 = vmatprep.subr.bf16.mxu0 0
        %619 = vmatpush1.bf16.msra.mxu0 0
        %620 = vmatprep.subr.bf16.mxu0 0
        %621 = vmatpush1.bf16.msra.mxu0 0
        %622 = vmatprep.subr.bf16.mxu0 0
        %623 = vmatpush1.bf16.msra.mxu0 0
        %624 = vmatprep.subr.bf16.mxu0 0
        %625 = vmatpush1.bf16.msra.mxu0 0
        %626 = vmatprep.subr.bf16.mxu0 0
        %627 = vmatpush1.bf16.msra.mxu0 0
        %628 = vmatprep.subr.bf16.mxu0 0
        %629 = vmatpush1.bf16.msra.mxu0 0
        %630 = vmatprep.subr.bf16.mxu0 0
        %631 = vmatpush1.bf16.msra.mxu0 0
        %632 = vmatprep.subr.bf16.mxu0 0
        %633 = vmatpush1.bf16.msra.mxu0 0
        %634 = vmatprep.subr.bf16.mxu0 0
        %635 = vmatpush1.bf16.msra.mxu0 0
        %636 = vmatprep.subr.bf16.mxu0 0
        %637 = vmatpush1.bf16.msra.mxu0 0
        %638 = vmatprep.mubr.bf16.mxu0 0
        %639 = vmatmul.mubr.bf16.gmra.mrb[0].mxu0 %v604
        %v640 = vpop.f32.mrb[0].mxu0
        %v641 = vadd.f32 %v565, %v640
        %v642 = vpop.f32.mrb[0].mxu0
        %v643 = vpop.f32.mrb[0].mxu0
        %v644 = vadd.f32 %v565, %v643
        %v645 = vpop.f32.mrb[0].mxu0
        %646 = vdwg.mxu0
        %v647 = vmax.f32 %v641, 0.0
        %v648 = vmax.f32 %v644, 0.0
        %v649 = vpack.c.bf16 %v648, %v647
        %v650 = vld [vmem:[#allocation4] sm:$0xf]
        %v651 = vld [vmem:[#allocation4 + $0x4] sm:$0xf]
        %v652 = vld [vmem:[#allocation4 + $0x8] sm:$0xf]
        %v653 = vld [vmem:[#allocation4 + $0xc] sm:$0xf]
        %v654 = vld [vmem:[%s7] sm:$0x1]
        %v655 = vlaneseq
        %v656 = vshrl.u32 %v655, 7
        %v657 = vsub.s32 0, %v656
        %v658 = vrot.slane %v654, %v657
        %v663 = vunpack.c.l.b16 %v650
        %v664 = vunpack.c.l.b16 %v651
        %v665 = vunpack.c.l.b16 %v652
        %v666 = vunpack.c.l.b16 %v653
        %v667 = vpack.c.b16 %v664, %v663
        %v668 = vpack.c.b16 %v666, %v665
        %v672 = vsel %vm543, %v649, 0
        %674 = vmatprep.subr.bf16.mxu0 0
        %675 = vmatpush1.bf16.msra.mxu0 %v667
        %676 = vmatprep.subr.bf16.mxu0 0
        %677 = vmatpush1.bf16.msra.mxu0 %v668
        %678 = vmatprep.subr.bf16.mxu0 0
        %679 = vmatpush1.bf16.msra.mxu0 0
        %680 = vmatprep.subr.bf16.mxu0 0
        %681 = vmatpush1.bf16.msra.mxu0 0
        %682 = vmatprep.subr.bf16.mxu0 0
        %683 = vmatpush1.bf16.msra.mxu0 0
        %684 = vmatprep.subr.bf16.mxu0 0
        %685 = vmatpush1.bf16.msra.mxu0 0
        %686 = vmatprep.subr.bf16.mxu0 0
        %687 = vmatpush1.bf16.msra.mxu0 0
        %688 = vmatprep.subr.bf16.mxu0 0
        %689 = vmatpush1.bf16.msra.mxu0 0
        %690 = vmatprep.subr.bf16.mxu0 0
        %691 = vmatpush1.bf16.msra.mxu0 0
        %692 = vmatprep.subr.bf16.mxu0 0
        %693 = vmatpush1.bf16.msra.mxu0 0
        %694 = vmatprep.subr.bf16.mxu0 0
        %695 = vmatpush1.bf16.msra.mxu0 0
        %696 = vmatprep.subr.bf16.mxu0 0
        %697 = vmatpush1.bf16.msra.mxu0 0
        %698 = vmatprep.subr.bf16.mxu0 0
        %699 = vmatpush1.bf16.msra.mxu0 0
        %700 = vmatprep.subr.bf16.mxu0 0
        %701 = vmatpush1.bf16.msra.mxu0 0
        %702 = vmatprep.subr.bf16.mxu0 0
        %703 = vmatpush1.bf16.msra.mxu0 0
        %704 = vmatprep.subr.bf16.mxu0 0
        %705 = vmatpush1.bf16.msra.mxu0 0
        %706 = vmatprep.mubr.bf16.mxu0 0
        %707 = vmatmul.mubr.bf16.gmra.mrb[0].mxu0 %v672
        %v708 = vpop.f32.mrb[0].mxu0
        %v709 = vadd.f32 %v658, %v708
        %v710 = vpop.f32.mrb[0].mxu0
        %v711 = vpop.f32.mrb[0].mxu0
        %v712 = vadd.f32 %v658, %v711
        %v713 = vpop.f32.mrb[0].mxu0
        %714 = vdwg.mxu0
        %v715 = vadd.f32 %v492, %v709
        %v716 = vadd.f32 %v495, %v712
        %718 = vset.pattern.permute.xlu0 0
        %719 = vperm.xlu0 %718, %v411
        %v720 = vpop.permute.xlu0 %719
        %723 = vset.pattern.permute.xlu0 0
        %724 = vperm.xlu0 %723, %v412
        %v725 = vpop.permute.xlu0 %724
        %v727 = vmul.f32 %v715, %v720
        %v728 = vmul.f32 %v716, %v725
        %vm729 = vcmp.ge.s32.totalorder %v499, 2
        %vm730 = vcmp.ge.s32.totalorder %v500, 2
        %v731 = vsel %vm729, 1, 0
        %v732 = vsel %vm730, 1, 0
        %v733 = vcvt.s32.f32 %v731
        %v734 = vcvt.s32.f32 %v732
        %vm735 = vcmp.lt.s32.totalorder %v499, 14
        %vm736 = vcmp.lt.s32.totalorder %v500, 14
        %v737 = vsel %vm735, 1, 0
        %v738 = vsel %vm736, 1, 0
        %v739 = vcvt.s32.f32 %v737
        %v740 = vcvt.s32.f32 %v738
        %v741 = vrot.slane %v727, 6
        %v742 = vrot.slane %v728, 6
        %vm743 = vcmp.lt.s32.totalorder %v499, 2
        %v744 = vsel %vm743, %v741, %v742
        %v745 = vsel %vm743, %v742, %v741
        %v746 = vmul.f32 %v745, %v733
        %v747 = vmul.f32 %v744, %v734
        %v748 = vrot.slane %v727, 2
        %v749 = vrot.slane %v728, 2
        %vm750 = vcmp.lt.s32.totalorder %v499, 6
        %v751 = vsel %vm750, %v748, %v749
        %v752 = vsel %vm750, %v749, %v748
        %v753 = vmul.f32 %v751, %v739
        %v754 = vmul.f32 %v752, %v740
        %757 = vrot.lane.b32.xlu0 %v727, 32
        %v758 = vpop.permute.xlu0 %757
        %759 = vrot.lane.b32.xlu0 %v728, 32
        %v760 = vpop.permute.xlu0 %759
        %765 = vrot.lane.b32.xlu0 %v753, 64
        %v766 = vpop.permute.xlu0 %765
        %767 = vrot.lane.b32.xlu0 %v754, 64
        %v768 = vpop.permute.xlu0 %767
        %v771 = vsel %vm543, %v746, %v758
        %v772 = vsel %vm543, %v747, %v760
        %v773 = vsel %vm453, %v771, %v766
        %v774 = vsel %vm453, %v772, %v768
        %v775 = vpack.c.bf16 %v774, %v773
        %s776 = scalar_lea.vmem %s4, 48
        %v777 = vld [vmem:[%s776] sm:$0xf]
        %v778 = vld [vmem:[%s776 + $0x4] sm:$0xf]
        %v779 = vld [vmem:[%s776 + $0x8] sm:$0xf]
        %v780 = vld [vmem:[%s776 + $0xc] sm:$0xf]
        %v781 = vld [vmem:[%s776 + $0x10] sm:$0xf]
        %v782 = vld [vmem:[%s776 + $0x14] sm:$0xf]
        %v783 = vld [vmem:[%s776 + $0x18] sm:$0xf]
        %v784 = vld [vmem:[%s776 + $0x1c] sm:$0xf]
        %v785 = vld [vmem:[%s776 + $0x20] sm:$0xf]
        %v786 = vld [vmem:[%s776 + $0x24] sm:$0xf]
        %v787 = vld [vmem:[%s776 + $0x28] sm:$0xf]
        %v788 = vld [vmem:[%s776 + $0x2c] sm:$0xf]
        %v789 = vld [vmem:[#allocation2 + $0x1] sm:$0x1]
        %v790 = vlaneseq
        %v791 = vshrl.u32 %v790, 7
        %v792 = vsub.s32 0, %v791
        %v793 = vrot.slane %v789, %v792
        %v806 = vunpack.c.l.b16 %v777
        %v807 = vunpack.c.l.b16 %v778
        %v808 = vunpack.c.l.b16 %v779
        %v809 = vunpack.c.l.b16 %v780
        %v810 = vunpack.c.l.b16 %v781
        %v811 = vunpack.c.l.b16 %v782
        %v812 = vunpack.c.l.b16 %v783
        %v813 = vunpack.c.l.b16 %v784
        %v814 = vunpack.c.l.b16 %v785
        %v815 = vunpack.c.l.b16 %v786
        %v816 = vunpack.c.l.b16 %v787
        %v817 = vunpack.c.l.b16 %v788
        %v818 = vpack.c.b16 %v807, %v806
        %v819 = vpack.c.b16 %v809, %v808
        %v820 = vpack.c.b16 %v811, %v810
        %v821 = vpack.c.b16 %v813, %v812
        %v822 = vpack.c.b16 %v815, %v814
        %v823 = vpack.c.b16 %v817, %v816
        %v831 = vsel %vm602, %v775, 0
        %833 = vmatprep.subr.bf16.mxu0 0
        %834 = vmatpush1.bf16.msra.mxu0 %v818
        %835 = vmatprep.subr.bf16.mxu0 0
        %836 = vmatpush1.bf16.msra.mxu0 %v819
        %837 = vmatprep.subr.bf16.mxu0 0
        %838 = vmatpush1.bf16.msra.mxu0 %v820
        %839 = vmatprep.subr.bf16.mxu0 0
        %840 = vmatpush1.bf16.msra.mxu0 %v821
        %841 = vmatprep.subr.bf16.mxu0 0
        %842 = vmatpush1.bf16.msra.mxu0 %v822
        %843 = vmatprep.subr.bf16.mxu0 0
        %844 = vmatpush1.bf16.msra.mxu0 %v823
        %845 = vmatprep.subr.bf16.mxu0 0
        %846 = vmatpush1.bf16.msra.mxu0 0
        %847 = vmatprep.subr.bf16.mxu0 0
        %848 = vmatpush1.bf16.msra.mxu0 0
        %849 = vmatprep.subr.bf16.mxu0 0
        %850 = vmatpush1.bf16.msra.mxu0 0
        %851 = vmatprep.subr.bf16.mxu0 0
        %852 = vmatpush1.bf16.msra.mxu0 0
        %853 = vmatprep.subr.bf16.mxu0 0
        %854 = vmatpush1.bf16.msra.mxu0 0
        %855 = vmatprep.subr.bf16.mxu0 0
        %856 = vmatpush1.bf16.msra.mxu0 0
        %857 = vmatprep.subr.bf16.mxu0 0
        %858 = vmatpush1.bf16.msra.mxu0 0
        %859 = vmatprep.subr.bf16.mxu0 0
        %860 = vmatpush1.bf16.msra.mxu0 0
        %861 = vmatprep.subr.bf16.mxu0 0
        %862 = vmatpush1.bf16.msra.mxu0 0
        %863 = vmatprep.subr.bf16.mxu0 0
        %864 = vmatpush1.bf16.msra.mxu0 0
        %865 = vmatprep.mubr.bf16.mxu0 0
        %866 = vmatmul.mubr.bf16.gmra.mrb[0].mxu0 %v831
        %v867 = vpop.f32.mrb[0].mxu0
        %v868 = vadd.f32 %v793, %v867
        %v869 = vpop.f32.mrb[0].mxu0
        %v870 = vpop.f32.mrb[0].mxu0
        %v871 = vadd.f32 %v793, %v870
        %v872 = vpop.f32.mrb[0].mxu0
        %873 = vdwg.mxu0
        %v874 = vmax.f32 %v868, 0.0
        %v875 = vmax.f32 %v871, 0.0
        %v876 = vpack.c.bf16 %v875, %v874
        %s877 = scalar_lea.vmem [#allocation4], 16
        %v878 = vld [vmem:[%s877] sm:$0xf]
        %v879 = vld [vmem:[%s877 + $0x4] sm:$0xf]
        %v880 = vld [vmem:[%s877 + $0x8] sm:$0xf]
        %v881 = vld [vmem:[%s877 + $0xc] sm:$0xf]
        %v882 = vld [vmem:[%s7 + $0x1] sm:$0x1]
        %v883 = vlaneseq
        %v884 = vshrl.u32 %v883, 7
        %v885 = vsub.s32 0, %v884
        %v886 = vrot.slane %v882, %v885
        %v891 = vunpack.c.l.b16 %v878
        %v892 = vunpack.c.l.b16 %v879
        %v893 = vunpack.c.l.b16 %v880
        %v894 = vunpack.c.l.b16 %v881
        %v895 = vpack.c.b16 %v892, %v891
        %v896 = vpack.c.b16 %v894, %v893
        %v900 = vsel %vm543, %v876, 0
        %902 = vmatprep.subr.bf16.mxu0 0
        %903 = vmatpush1.bf16.msra.mxu0 %v895
        %904 = vmatprep.subr.bf16.mxu0 0
        %905 = vmatpush1.bf16.msra.mxu0 %v896
        %906 = vmatprep.subr.bf16.mxu0 0
        %907 = vmatpush1.bf16.msra.mxu0 0
        %908 = vmatprep.subr.bf16.mxu0 0
        %909 = vmatpush1.bf16.msra.mxu0 0
        %910 = vmatprep.subr.bf16.mxu0 0
        %911 = vmatpush1.bf16.msra.mxu0 0
        %912 = vmatprep.subr.bf16.mxu0 0
        %913 = vmatpush1.bf16.msra.mxu0 0
        %914 = vmatprep.subr.bf16.mxu0 0
        %915 = vmatpush1.bf16.msra.mxu0 0
        %916 = vmatprep.subr.bf16.mxu0 0
        %917 = vmatpush1.bf16.msra.mxu0 0
        %918 = vmatprep.subr.bf16.mxu0 0
        %919 = vmatpush1.bf16.msra.mxu0 0
        %920 = vmatprep.subr.bf16.mxu0 0
        %921 = vmatpush1.bf16.msra.mxu0 0
        %922 = vmatprep.subr.bf16.mxu0 0
        %923 = vmatpush1.bf16.msra.mxu0 0
        %924 = vmatprep.subr.bf16.mxu0 0
        %925 = vmatpush1.bf16.msra.mxu0 0
        %926 = vmatprep.subr.bf16.mxu0 0
        %927 = vmatpush1.bf16.msra.mxu0 0
        %928 = vmatprep.subr.bf16.mxu0 0
        %929 = vmatpush1.bf16.msra.mxu0 0
        %930 = vmatprep.subr.bf16.mxu0 0
        %931 = vmatpush1.bf16.msra.mxu0 0
        %932 = vmatprep.subr.bf16.mxu0 0
        %933 = vmatpush1.bf16.msra.mxu0 0
        %934 = vmatprep.mubr.bf16.mxu0 0
        %935 = vmatmul.mubr.bf16.gmra.mrb[0].mxu0 %v900
        %v936 = vpop.f32.mrb[0].mxu0
        %v937 = vadd.f32 %v886, %v936
        %v938 = vpop.f32.mrb[0].mxu0
        %v939 = vpop.f32.mrb[0].mxu0
        %v940 = vadd.f32 %v886, %v939
        %v941 = vpop.f32.mrb[0].mxu0
        %942 = vdwg.mxu0
        %v943 = vadd.f32 %v727, %v937
        %v944 = vadd.f32 %v728, %v940
        %v945 = vmul.f32 %v943, %v720
        %v946 = vmul.f32 %v944, %v725
        %vm947 = vcmp.ge.s32.totalorder %v499, 4
        %vm948 = vcmp.ge.s32.totalorder %v500, 4
        %v949 = vsel %vm947, 1, 0
        %v950 = vsel %vm948, 1, 0
        %v951 = vcvt.s32.f32 %v949
        %v952 = vcvt.s32.f32 %v950
        %vm953 = vcmp.lt.s32.totalorder %v499, 12
        %vm954 = vcmp.lt.s32.totalorder %v500, 12
        %v955 = vsel %vm953, 1, 0
        %v956 = vsel %vm954, 1, 0
        %v957 = vcvt.s32.f32 %v955
        %v958 = vcvt.s32.f32 %v956
        %v959 = vrot.slane %v945, 4
        %v960 = vrot.slane %v946, 4
        %vm961 = vcmp.lt.s32.totalorder %v499, 4
        %v962 = vsel %vm961, %v959, %v960
        %v963 = vsel %vm961, %v960, %v959
        %v964 = vmul.f32 %v963, %v951
        %v965 = vmul.f32 %v962, %v952
        %v966 = vmul.f32 %v962, %v957
        %v967 = vmul.f32 %v963, %v958
        %970 = vrot.lane.b32.xlu0 %v945, 32
        %v971 = vpop.permute.xlu0 %970
        %972 = vrot.lane.b32.xlu0 %v946, 32
        %v973 = vpop.permute.xlu0 %972
        %978 = vrot.lane.b32.xlu0 %v966, 64
        %v979 = vpop.permute.xlu0 %978
        %980 = vrot.lane.b32.xlu0 %v967, 64
        %v981 = vpop.permute.xlu0 %980
        %v984 = vsel %vm543, %v964, %v971
        %v985 = vsel %vm543, %v965, %v973
        %v986 = vsel %vm453, %v984, %v979
        %v987 = vsel %vm453, %v985, %v981
        %v988 = vpack.c.bf16 %v987, %v986
        %s989 = scalar_lea.vmem %s4, 96
        %v990 = vld [vmem:[%s989] sm:$0xf]
        %v991 = vld [vmem:[%s989 + $0x4] sm:$0xf]
        %v992 = vld [vmem:[%s989 + $0x8] sm:$0xf]
        %v993 = vld [vmem:[%s989 + $0xc] sm:$0xf]
        %v994 = vld [vmem:[%s989 + $0x10] sm:$0xf]
        %v995 = vld [vmem:[%s989 + $0x14] sm:$0xf]
        %v996 = vld [vmem:[%s989 + $0x18] sm:$0xf]
        %v997 = vld [vmem:[%s989 + $0x1c] sm:$0xf]
        %v998 = vld [vmem:[%s989 + $0x20] sm:$0xf]
        %v999 = vld [vmem:[%s989 + $0x24] sm:$0xf]
        %v1000 = vld [vmem:[%s989 + $0x28] sm:$0xf]
        %v1001 = vld [vmem:[%s989 + $0x2c] sm:$0xf]
        %v1002 = vld [vmem:[#allocation2 + $0x2] sm:$0x1]
        %v1003 = vlaneseq
        %v1004 = vshrl.u32 %v1003, 7
        %v1005 = vsub.s32 0, %v1004
        %v1006 = vrot.slane %v1002, %v1005
        %v1019 = vunpack.c.l.b16 %v990
        %v1020 = vunpack.c.l.b16 %v991
        %v1021 = vunpack.c.l.b16 %v992
        %v1022 = vunpack.c.l.b16 %v993
        %v1023 = vunpack.c.l.b16 %v994
        %v1024 = vunpack.c.l.b16 %v995
        %v1025 = vunpack.c.l.b16 %v996
        %v1026 = vunpack.c.l.b16 %v997
        %v1027 = vunpack.c.l.b16 %v998
        %v1028 = vunpack.c.l.b16 %v999
        %v1029 = vunpack.c.l.b16 %v1000
        %v1030 = vunpack.c.l.b16 %v1001
        %v1031 = vpack.c.b16 %v1020, %v1019
        %v1032 = vpack.c.b16 %v1022, %v1021
        %v1033 = vpack.c.b16 %v1024, %v1023
        %v1034 = vpack.c.b16 %v1026, %v1025
        %v1035 = vpack.c.b16 %v1028, %v1027
        %v1036 = vpack.c.b16 %v1030, %v1029
        %v1044 = vsel %vm602, %v988, 0
        %1046 = vmatprep.subr.bf16.mxu0 0
        %1047 = vmatpush1.bf16.msra.mxu0 %v1031
        %1048 = vmatprep.subr.bf16.mxu0 0
        %1049 = vmatpush1.bf16.msra.mxu0 %v1032
        %1050 = vmatprep.subr.bf16.mxu0 0
        %1051 = vmatpush1.bf16.msra.mxu0 %v1033
        %1052 = vmatprep.subr.bf16.mxu0 0
        %1053 = vmatpush1.bf16.msra.mxu0 %v1034
        %1054 = vmatprep.subr.bf16.mxu0 0
        %1055 = vmatpush1.bf16.msra.mxu0 %v1035
        %1056 = vmatprep.subr.bf16.mxu0 0
        %1057 = vmatpush1.bf16.msra.mxu0 %v1036
        %1058 = vmatprep.subr.bf16.mxu0 0
        %1059 = vmatpush1.bf16.msra.mxu0 0
        %1060 = vmatprep.subr.bf16.mxu0 0
        %1061 = vmatpush1.bf16.msra.mxu0 0
        %1062 = vmatprep.subr.bf16.mxu0 0
        %1063 = vmatpush1.bf16.msra.mxu0 0
        %1064 = vmatprep.subr.bf16.mxu0 0
        %1065 = vmatpush1.bf16.msra.mxu0 0
        %1066 = vmatprep.subr.bf16.mxu0 0
        %1067 = vmatpush1.bf16.msra.mxu0 0
        %1068 = vmatprep.subr.bf16.mxu0 0
        %1069 = vmatpush1.bf16.msra.mxu0 0
        %1070 = vmatprep.subr.bf16.mxu0 0
        %1071 = vmatpush1.bf16.msra.mxu0 0
        %1072 = vmatprep.subr.bf16.mxu0 0
        %1073 = vmatpush1.bf16.msra.mxu0 0
        %1074 = vmatprep.subr.bf16.mxu0 0
        %1075 = vmatpush1.bf16.msra.mxu0 0
        %1076 = vmatprep.subr.bf16.mxu0 0
        %1077 = vmatpush1.bf16.msra.mxu0 0
        %1078 = vmatprep.mubr.bf16.mxu0 0
        %1079 = vmatmul.mubr.bf16.gmra.mrb[0].mxu0 %v1044
        %v1080 = vpop.f32.mrb[0].mxu0
        %v1081 = vadd.f32 %v1006, %v1080
        %v1082 = vpop.f32.mrb[0].mxu0
        %v1083 = vpop.f32.mrb[0].mxu0
        %v1084 = vadd.f32 %v1006, %v1083
        %v1085 = vpop.f32.mrb[0].mxu0
        %1086 = vdwg.mxu0
        %v1087 = vmax.f32 %v1081, 0.0
        %v1088 = vmax.f32 %v1084, 0.0
        %v1089 = vpack.c.bf16 %v1088, %v1087
        %s1090 = scalar_lea.vmem [#allocation4], 32
        %v1091 = vld [vmem:[%s1090] sm:$0xf]
        %v1092 = vld [vmem:[%s1090 + $0x4] sm:$0xf]
        %v1093 = vld [vmem:[%s1090 + $0x8] sm:$0xf]
        %v1094 = vld [vmem:[%s1090 + $0xc] sm:$0xf]
        %v1095 = vld [vmem:[%s7 + $0x2] sm:$0x1]
        %v1096 = vlaneseq
        %v1097 = vshrl.u32 %v1096, 7
        %v1098 = vsub.s32 0, %v1097
        %v1099 = vrot.slane %v1095, %v1098
        %v1104 = vunpack.c.l.b16 %v1091
        %v1105 = vunpack.c.l.b16 %v1092
        %v1106 = vunpack.c.l.b16 %v1093
        %v1107 = vunpack.c.l.b16 %v1094
        %v1108 = vpack.c.b16 %v1105, %v1104
        %v1109 = vpack.c.b16 %v1107, %v1106
        %v1113 = vsel %vm543, %v1089, 0
        %1115 = vmatprep.subr.bf16.mxu0 0
        %1116 = vmatpush1.bf16.msra.mxu0 %v1108
        %1117 = vmatprep.subr.bf16.mxu0 0
        %1118 = vmatpush1.bf16.msra.mxu0 %v1109
        %1119 = vmatprep.subr.bf16.mxu0 0
        %1120 = vmatpush1.bf16.msra.mxu0 0
        %1121 = vmatprep.subr.bf16.mxu0 0
        %1122 = vmatpush1.bf16.msra.mxu0 0
        %1123 = vmatprep.subr.bf16.mxu0 0
        %1124 = vmatpush1.bf16.msra.mxu0 0
        %1125 = vmatprep.subr.bf16.mxu0 0
        %1126 = vmatpush1.bf16.msra.mxu0 0
        %1127 = vmatprep.subr.bf16.mxu0 0
        %1128 = vmatpush1.bf16.msra.mxu0 0
        %1129 = vmatprep.subr.bf16.mxu0 0
        %1130 = vmatpush1.bf16.msra.mxu0 0
        %1131 = vmatprep.subr.bf16.mxu0 0
        %1132 = vmatpush1.bf16.msra.mxu0 0
        %1133 = vmatprep.subr.bf16.mxu0 0
        %1134 = vmatpush1.bf16.msra.mxu0 0
        %1135 = vmatprep.subr.bf16.mxu0 0
        %1136 = vmatpush1.bf16.msra.mxu0 0
        %1137 = vmatprep.subr.bf16.mxu0 0
        %1138 = vmatpush1.bf16.msra.mxu0 0
        %1139 = vmatprep.subr.bf16.mxu0 0
        %1140 = vmatpush1.bf16.msra.mxu0 0
        %1141 = vmatprep.subr.bf16.mxu0 0
        %1142 = vmatpush1.bf16.msra.mxu0 0
        %1143 = vmatprep.subr.bf16.mxu0 0
        %1144 = vmatpush1.bf16.msra.mxu0 0
        %1145 = vmatprep.subr.bf16.mxu0 0
        %1146 = vmatpush1.bf16.msra.mxu0 0
        %1147 = vmatprep.mubr.bf16.mxu0 0
        %1148 = vmatmul.mubr.bf16.gmra.mrb[0].mxu0 %v1113
        %v1149 = vpop.f32.mrb[0].mxu0
        %v1150 = vadd.f32 %v1099, %v1149
        %v1151 = vpop.f32.mrb[0].mxu0
        %v1152 = vpop.f32.mrb[0].mxu0
        %v1153 = vadd.f32 %v1099, %v1152
        %v1154 = vpop.f32.mrb[0].mxu0
        %1155 = vdwg.mxu0
        %v1156 = vadd.f32 %v945, %v1150
        %v1157 = vadd.f32 %v946, %v1153
        %v1158 = vmul.f32 %v1156, %v720
        %v1159 = vmul.f32 %v1157, %v725
        %v1160 = vpack.c.bf16 %v1159, %v1158
        %v1161 = vld [vmem:[%s8] sm:$0xf]
        %v1162 = vld [vmem:[%s8 + $0x4] sm:$0xf]
        %v1163 = vld [vmem:[%s8 + $0x8] sm:$0xf]
        %v1164 = vld [vmem:[%s8 + $0xc] sm:$0xf]
        %v1165 = vld [vmem:[%s9] sm:$0x1]
        %v1167 = vlaneseq
        %v1168 = vshrl.u32 %v1167, 7
        %v1169 = vsub.s32 0, %v1168
        %v1170 = vrot.slane %v1165, %v1169
        %v1176 = vunpack.c.l.b16 %v1161
        %v1177 = vunpack.c.l.b16 %v1162
        %v1178 = vunpack.c.l.b16 %v1163
        %v1179 = vunpack.c.l.b16 %v1164
        %v1180 = vpack.c.b16 %v1177, %v1176
        %v1181 = vpack.c.b16 %v1179, %v1178
        %v1185 = vsel %vm543, %v1160, 0
        %1187 = vmatprep.subr.bf16.mxu0 0
        %1188 = vmatpush1.bf16.msra.mxu0 %v1180
        %1189 = vmatprep.subr.bf16.mxu0 0
        %1190 = vmatpush1.bf16.msra.mxu0 %v1181
        %1191 = vmatprep.subr.bf16.mxu0 0
        %1192 = vmatpush1.bf16.msra.mxu0 0
        %1193 = vmatprep.subr.bf16.mxu0 0
        %1194 = vmatpush1.bf16.msra.mxu0 0
        %1195 = vmatprep.subr.bf16.mxu0 0
        %1196 = vmatpush1.bf16.msra.mxu0 0
        %1197 = vmatprep.subr.bf16.mxu0 0
        %1198 = vmatpush1.bf16.msra.mxu0 0
        %1199 = vmatprep.subr.bf16.mxu0 0
        %1200 = vmatpush1.bf16.msra.mxu0 0
        %1201 = vmatprep.subr.bf16.mxu0 0
        %1202 = vmatpush1.bf16.msra.mxu0 0
        %1203 = vmatprep.subr.bf16.mxu0 0
        %1204 = vmatpush1.bf16.msra.mxu0 0
        %1205 = vmatprep.subr.bf16.mxu0 0
        %1206 = vmatpush1.bf16.msra.mxu0 0
        %1207 = vmatprep.subr.bf16.mxu0 0
        %1208 = vmatpush1.bf16.msra.mxu0 0
        %1209 = vmatprep.subr.bf16.mxu0 0
        %1210 = vmatpush1.bf16.msra.mxu0 0
        %1211 = vmatprep.subr.bf16.mxu0 0
        %1212 = vmatpush1.bf16.msra.mxu0 0
        %1213 = vmatprep.subr.bf16.mxu0 0
        %1214 = vmatpush1.bf16.msra.mxu0 0
        %1215 = vmatprep.subr.bf16.mxu0 0
        %1216 = vmatpush1.bf16.msra.mxu0 0
        %1217 = vmatprep.subr.bf16.mxu0 0
        %1218 = vmatpush1.bf16.msra.mxu0 0
        %1219 = vmatprep.mubr.bf16.mxu0 0
        %1220 = vmatmul.mubr.bf16.gmra.mrb[0].mxu0 %v1185
        %v1221 = vpop.f32.mrb[0].mxu0
        %v1222 = vadd.f32 %v1170, %v1221
        %v1223 = vpop.f32.mrb[0].mxu0
        %v1224 = vpop.f32.mrb[0].mxu0
        %v1225 = vadd.f32 %v1170, %v1224
        %v1226 = vpop.f32.mrb[0].mxu0
        %1227 = vdwg.mxu0
        %1228 = vst [vmem:[%s407] sm:$0xff] %v1222
        %1229 = vst [vmem:[%s407 + $0x8] sm:$0xff] %v1225
        %p1230 = scmp.lt.s32.totalorder %s23, 1
        %s1231 = scalar_select %p1230, %s23, 1
        %s1232 = smul.addr %s1231, 2
        %s1233 = smul.addr %s1232, 8
        %s1234 = scalar_lea.vmem %s10, %s1233
        // Predicated region
        $region69: #{multi_stage_forward.4} parent=59 // pred_check
          %p1235 = pneg %p261
        $region70: #{multi_stage_forward.4} parent=59 // pred_check_branch
          %1237 = sbr.rel (%p1235) target = $region72
        $region71: #{multi_stage_forward.4} parent=59 // pred_region
          _
        $region72: #{multi_stage_forward.4} parent=59 // pred_fallthru
          _
      $region60: #{multi_stage_forward.4} parent=5 // pred_fallthru
        _
      %p1238 = scmp.le.s32.totalorder 2, %s18
      // Predicated region
      $region73: #{multi_stage_forward.4} parent=5 // pred_check
        %p1239 = pneg %p1238
      $region74: #{multi_stage_forward.4} parent=5 // pred_check_branch
        %1241 = sbr.rel (%p1239) target = $region76
      $region75: #{multi_stage_forward.4} parent=5 // pred_region
        %s1242 = ssub.s32 %s18, 2
        // Predicated region
        $region77: #{multi_stage_forward.4} parent=75 // pred_check
          %p1243 = pneg %p267
        $region78: #{multi_stage_forward.4} parent=75 // pred_check_branch
          %1245 = sbr.rel (%p1243) target = $region80
        $region79: #{multi_stage_forward.4} parent=75 // pred_region
          %p1246 = scmp.lt.s32.totalorder %s24, 1
          %s1247 = scalar_select %p1246, %s24, 1
          %s1248 = smul.addr %s1247, 2
          %s1249 = smul.addr %s1248, 8
          %s1250 = scalar_lea.vmem %s10, %s1249
        $region80: #{multi_stage_forward.4} parent=75 // pred_fallthru
          _
      $region76: #{multi_stage_forward.4} parent=5 // pred_fallthru
        _
    $region6: #{multi_stage_forward.4} parent=1 // loop_footer
      %s22 = sadd.s32 1, %s18
    $region7: #{multi_stage_forward.4} parent=1 // loop_footer_branch
      %17 = sbr.rel target = $region3
    $region8: #{multi_stage_forward.4} parent=1 // loop_exit
      _
    %1251 = vsyncpa [#allocation3], 1
    %s1252 = scalar_lea.sflag [#allocation3], 1
    %1253 = vsyncpa %s1252, 1
    %1254 = vsyncpa [#allocation5], 1

// kernel: multi_stage_forward.5
$region0: #{multi_stage_forward.5}
  #allocation0 [shape = 'u32[]', space=smem, size = 0x4, offset = 0x4, fixed_abs, tag = 'smem constant byte address 0x4 - core index']
  #allocation1 [shape = 'u32[144,128]{1,0:T(1,128)}', space=vmem, size = 0x12000, scoped, tag = 'internal scratch']
  %s0 = inlined_call_operand.vmem [shape: bf16[2,16,512], index: 0, kind: input, shape index: {}]
  %s1 = inlined_call_operand.vmem [shape: bf16[512,64], index: 1, kind: input, shape index: {}]
  %s2 = inlined_call_operand.vmem [shape: f32[1,64], index: 2, kind: input, shape index: {}]
  %s3 = inlined_call_operand.vmem [shape: bf16[3,192,64], index: 3, kind: input, shape index: {}]
  %s4 = inlined_call_operand.vmem [shape: f32[3,64], index: 4, kind: input, shape index: {}]
  %s5 = inlined_call_operand.vmem [shape: bf16[3,64,64], index: 5, kind: input, shape index: {}]
  %s6 = inlined_call_operand.vmem [shape: f32[3,64], index: 6, kind: input, shape index: {}]
  %s7 = inlined_call_operand.vmem [shape: bf16[64,128], index: 7, kind: input, shape index: {}]
  %s8 = inlined_call_operand.vmem [shape: f32[1,128], index: 8, kind: input, shape index: {}]
  %s9 = inlined_call_operand.vmem [shape: f32[2,16,128], index: 9, kind: output, shape index: {}]
  %s10 = sld [smem:[#allocation0]]
  $region69: #{multi_stage_forward.5} parent=0
    _
  %s12 = ssub.s32 1, %s10
  %s13 = scalar_select 0, %s12, %s10
  loop: start=0, step=1, limit=4
  $region2: #{multi_stage_forward.5} parent=0 // loop_pre_header
    _
  $region3: #{multi_stage_forward.5} parent=0 // loop_header
    %s15 = sphi 0, %s19
    %p16 = scmp.ge.s32.totalorder %s15, 4
    %s25 = sphi 0, %s27
    %s28 = sphi 0, %s25
    %s29 = sphi 0, %s28
    %s45 = sphi 0, %s29
    %s49 = sphi 0, %s49
    %s51 = sphi 0, %s49
    %s52 = sphi 0, %s51
    %s66 = sphi 0, %s52
    %s70 = sphi 0, %s70
    %s72 = sphi 0, %s70
    %s73 = sphi 0, %s72
    %s87 = sphi 0, %s73
    %s91 = sphi 0, %s91
    %s93 = sphi 0, %s91
    %s94 = sphi 0, %s93
    %s108 = sphi 0, %s94
    %s112 = sphi 0, %s112
    %s114 = sphi 0, %s112
    %s115 = sphi 0, %s114
    %s129 = sphi 0, %s115
    %s133 = sphi 0, %s133
    %s135 = sphi 0, %s133
    %s136 = sphi 0, %s135
    %s150 = sphi 0, %s136
    %s154 = sphi 0, %s154
    %s156 = sphi 0, %s154
    %s157 = sphi 0, %s156
    %s171 = sphi 0, %s157
    %s175 = sphi 0, %s175
    %s177 = sphi 0, %s175
    %s178 = sphi 0, %s177
    %s192 = sphi 0, %s178
    %s196 = sphi 0, %s196
    %s198 = sphi 0, %s196
    %s199 = sphi 0, %s198
    %s213 = sphi 0, %s199
    %s219 = sphi 0, %s221
    %s222 = sphi 0, %s219
    %s223 = sphi 0, %s222
    %s239 = sphi 0, %s223
  $region4: #{multi_stage_forward.5} parent=0 // loop_header_branch
    %18 = sbr.rel (%p16) target = $region8
  $region5: #{multi_stage_forward.5} parent=0 // loop_body
    %s20 = ssub.s32 %s15, 1
    %s21 = ssub.s32 %s15, 2
    %s22 = sadd.s32 %s15, 1
    %s23 = ssub.s32 %s15, %s22
    %p24 = scmp.eq.s32.totalorder %s23, 0
    %s26 = sadd.s32 %s25, 1
    %s27 = scalar_select %p24, %s25, %s26
    %p30 = pneg %p24
    %p31 = scmp.eq.s32.totalorder %s15, 1
    %p32 = por %p30, %p31
    %p33 = scmp.ne.s32.totalorder %s25, %s28
    %p34 = scmp.eq.s32.totalorder %s15, 0
    %p35 = por %p33, %p34
    %p36 = scmp.ne.s32.totalorder %s25, %s28
    %p37 = scmp.eq.s32.totalorder %s20, 1
    %p38 = por %p36, %p37
    %p39 = scmp.ne.s32.totalorder %s28, %s29
    %p40 = scmp.eq.s32.totalorder %s20, 0
    %p41 = por %p39, %p40
    %p42 = scmp.ne.s32.totalorder %s28, %s29
    %p43 = scmp.eq.s32.totalorder %s21, 1
    %p44 = por %p42, %p43
    %p46 = scmp.ne.s32.totalorder %s29, %s45
    %p47 = scmp.eq.s32.totalorder %s21, 0
    %p48 = por %p46, %p47
    %s50 = sadd.s32 %s49, 1
    %p53 = scmp.eq.s32.totalorder %s15, 1
    %p54 = scmp.ne.s32.totalorder %s49, %s51
    %p55 = scmp.eq.s32.totalorder %s15, 0
    %p56 = por %p54, %p55
    %p57 = scmp.ne.s32.totalorder %s49, %s51
    %p58 = scmp.eq.s32.totalorder %s20, 1
    %p59 = por %p57, %p58
    %p60 = scmp.ne.s32.totalorder %s51, %s52
    %p61 = scmp.eq.s32.totalorder %s20, 0
    %p62 = por %p60, %p61
    %p63 = scmp.ne.s32.totalorder %s51, %s52
    %p64 = scmp.eq.s32.totalorder %s21, 1
    %p65 = por %p63, %p64
    %p67 = scmp.ne.s32.totalorder %s52, %s66
    %p68 = scmp.eq.s32.totalorder %s21, 0
    %p69 = por %p67, %p68
    %s71 = sadd.s32 %s70, 1
    %p74 = scmp.eq.s32.totalorder %s15, 1
    %p75 = scmp.ne.s32.totalorder %s70, %s72
    %p76 = scmp.eq.s32.totalorder %s15, 0
    %p77 = por %p75, %p76
    %p78 = scmp.ne.s32.totalorder %s70, %s72
    %p79 = scmp.eq.s32.totalorder %s20, 1
    %p80 = por %p78, %p79
    %p81 = scmp.ne.s32.totalorder %s72, %s73
    %p82 = scmp.eq.s32.totalorder %s20, 0
    %p83 = por %p81, %p82
    %p84 = scmp.ne.s32.totalorder %s72, %s73
    %p85 = scmp.eq.s32.totalorder %s21, 1
    %p86 = por %p84, %p85
    %p88 = scmp.ne.s32.totalorder %s73, %s87
    %p89 = scmp.eq.s32.totalorder %s21, 0
    %p90 = por %p88, %p89
    %s92 = sadd.s32 %s91, 1
    %p95 = scmp.eq.s32.totalorder %s15, 1
    %p96 = scmp.ne.s32.totalorder %s91, %s93
    %p97 = scmp.eq.s32.totalorder %s15, 0
    %p98 = por %p96, %p97
    %p99 = scmp.ne.s32.totalorder %s91, %s93
    %p100 = scmp.eq.s32.totalorder %s20, 1
    %p101 = por %p99, %p100
    %p102 = scmp.ne.s32.totalorder %s93, %s94
    %p103 = scmp.eq.s32.totalorder %s20, 0
    %p104 = por %p102, %p103
    %p105 = scmp.ne.s32.totalorder %s93, %s94
    %p106 = scmp.eq.s32.totalorder %s21, 1
    %p107 = por %p105, %p106
    %p109 = scmp.ne.s32.totalorder %s94, %s108
    %p110 = scmp.eq.s32.totalorder %s21, 0
    %p111 = por %p109, %p110
    %s113 = sadd.s32 %s112, 1
    %p116 = scmp.eq.s32.totalorder %s15, 1
    %p117 = scmp.ne.s32.totalorder %s112, %s114
    %p118 = scmp.eq.s32.totalorder %s15, 0
    %p119 = por %p117, %p118
    %p120 = scmp.ne.s32.totalorder %s112, %s114
    %p121 = scmp.eq.s32.totalorder %s20, 1
    %p122 = por %p120, %p121
    %p123 = scmp.ne.s32.totalorder %s114, %s115
    %p124 = scmp.eq.s32.totalorder %s20, 0
    %p125 = por %p123, %p124
    %p126 = scmp.ne.s32.totalorder %s114, %s115
    %p127 = scmp.eq.s32.totalorder %s21, 1
    %p128 = por %p126, %p127
    %p130 = scmp.ne.s32.totalorder %s115, %s129
    %p131 = scmp.eq.s32.totalorder %s21, 0
    %p132 = por %p130, %p131
    %s134 = sadd.s32 %s133, 1
    %p137 = scmp.eq.s32.totalorder %s15, 1
    %p138 = scmp.ne.s32.totalorder %s133, %s135
    %p139 = scmp.eq.s32.totalorder %s15, 0
    %p140 = por %p138, %p139
    %p141 = scmp.ne.s32.totalorder %s133, %s135
    %p142 = scmp.eq.s32.totalorder %s20, 1
    %p143 = por %p141, %p142
    %p144 = scmp.ne.s32.totalorder %s135, %s136
    %p145 = scmp.eq.s32.totalorder %s20, 0
    %p146 = por %p144, %p145
    %p147 = scmp.ne.s32.totalorder %s135, %s136
    %p148 = scmp.eq.s32.totalorder %s21, 1
    %p149 = por %p147, %p148
    %p151 = scmp.ne.s32.totalorder %s136, %s150
    %p152 = scmp.eq.s32.totalorder %s21, 0
    %p153 = por %p151, %p152
    %s155 = sadd.s32 %s154, 1
    %p158 = scmp.eq.s32.totalorder %s15, 1
    %p159 = scmp.ne.s32.totalorder %s154, %s156
    %p160 = scmp.eq.s32.totalorder %s15, 0
    %p161 = por %p159, %p160
    %p162 = scmp.ne.s32.totalorder %s154, %s156
    %p163 = scmp.eq.s32.totalorder %s20, 1
    %p164 = por %p162, %p163
    %p165 = scmp.ne.s32.totalorder %s156, %s157
    %p166 = scmp.eq.s32.totalorder %s20, 0
    %p167 = por %p165, %p166
    %p168 = scmp.ne.s32.totalorder %s156, %s157
    %p169 = scmp.eq.s32.totalorder %s21, 1
    %p170 = por %p168, %p169
    %p172 = scmp.ne.s32.totalorder %s157, %s171
    %p173 = scmp.eq.s32.totalorder %s21, 0
    %p174 = por %p172, %p173
    %s176 = sadd.s32 %s175, 1
    %p179 = scmp.eq.s32.totalorder %s15, 1
    %p180 = scmp.ne.s32.totalorder %s175, %s177
    %p181 = scmp.eq.s32.totalorder %s15, 0
    %p182 = por %p180, %p181
    %p183 = scmp.ne.s32.totalorder %s175, %s177
    %p184 = scmp.eq.s32.totalorder %s20, 1
    %p185 = por %p183, %p184
    %p186 = scmp.ne.s32.totalorder %s177, %s178
    %p187 = scmp.eq.s32.totalorder %s20, 0
    %p188 = por %p186, %p187
    %p189 = scmp.ne.s32.totalorder %s177, %s178
    %p190 = scmp.eq.s32.totalorder %s21, 1
    %p191 = por %p189, %p190
    %p193 = scmp.ne.s32.totalorder %s178, %s192
    %p194 = scmp.eq.s32.totalorder %s21, 0
    %p195 = por %p193, %p194
    %s197 = sadd.s32 %s196, 1
    %p200 = scmp.eq.s32.totalorder %s15, 1
    %p201 = scmp.ne.s32.totalorder %s196, %s198
    %p202 = scmp.eq.s32.totalorder %s15, 0
    %p203 = por %p201, %p202
    %p204 = scmp.ne.s32.totalorder %s196, %s198
    %p205 = scmp.eq.s32.totalorder %s20, 1
    %p206 = por %p204, %p205
    %p207 = scmp.ne.s32.totalorder %s198, %s199
    %p208 = scmp.eq.s32.totalorder %s20, 0
    %p209 = por %p207, %p208
    %p210 = scmp.ne.s32.totalorder %s198, %s199
    %p211 = scmp.eq.s32.totalorder %s21, 1
    %p212 = por %p210, %p211
    %p214 = scmp.ne.s32.totalorder %s199, %s213
    %p215 = scmp.eq.s32.totalorder %s21, 0
    %p216 = por %p214, %p215
    %s217 = ssub.s32 %s15, %s22
    %p218 = scmp.eq.s32.totalorder %s217, 0
    %s220 = sadd.s32 %s219, 1
    %s221 = scalar_select %p218, %s219, %s220
    %p224 = pneg %p218
    %p225 = scmp.eq.s32.totalorder %s15, 1
    %p226 = por %p224, %p225
    %p227 = scmp.ne.s32.totalorder %s219, %s222
    %p228 = scmp.eq.s32.totalorder %s15, 0
    %p229 = por %p227, %p228
    %p230 = scmp.ne.s32.totalorder %s219, %s222
    %p231 = scmp.eq.s32.totalorder %s20, 1
    %p232 = por %p230, %p231
    %p233 = scmp.ne.s32.totalorder %s222, %s223
    %p234 = scmp.eq.s32.totalorder %s20, 0
    %p235 = por %p233, %p234
    %p236 = scmp.ne.s32.totalorder %s222, %s223
    %p237 = scmp.eq.s32.totalorder %s21, 1
    %p238 = por %p236, %p237
    %p240 = scmp.ne.s32.totalorder %s223, %s239
    %p241 = scmp.eq.s32.totalorder %s21, 0
    %p242 = por %p240, %p241
    %p243 = scmp.le.s32.totalorder 1, %s15
    %p244 = scmp.lt.s32.totalorder %s15, 3
    %p245 = pnand %p243, %p244
    %p246 = pneg %p245
    // Predicated region
    $region9: #{multi_stage_forward.5} parent=5 // pred_check
      _
    $region10: #{multi_stage_forward.5} parent=5 // pred_check_branch
      %248 = sbr.rel (%p245) target = $region12
    $region11: #{multi_stage_forward.5} parent=5 // pred_region
      %s249 = ssub.s32 %s15, 1
      // Predicated region
      $region13: #{multi_stage_forward.5} parent=11 // pred_check
        %p250 = pneg %p62
      $region14: #{multi_stage_forward.5} parent=11 // pred_check_branch
        %252 = sbr.rel (%p250) target = $region16
      $region15: #{multi_stage_forward.5} parent=11 // pred_region
        _
      $region16: #{multi_stage_forward.5} parent=11 // pred_fallthru
        _
      // Predicated region
      $region17: #{multi_stage_forward.5} parent=11 // pred_check
        %p253 = pneg %p83
      $region18: #{multi_stage_forward.5} parent=11 // pred_check_branch
        %255 = sbr.rel (%p253) target = $region20
      $region19: #{multi_stage_forward.5} parent=11 // pred_region
        _
      $region20: #{multi_stage_forward.5} parent=11 // pred_fallthru
        _
      // Predicated region
      $region21: #{multi_stage_forward.5} parent=11 // pred_check
        %p256 = pneg %p104
      $region22: #{multi_stage_forward.5} parent=11 // pred_check_branch
        %258 = sbr.rel (%p256) target = $region24
      $region23: #{multi_stage_forward.5} parent=11 // pred_region
        _
      $region24: #{multi_stage_forward.5} parent=11 // pred_fallthru
        _
      // Predicated region
      $region25: #{multi_stage_forward.5} parent=11 // pred_check
        %p259 = pneg %p125
      $region26: #{multi_stage_forward.5} parent=11 // pred_check_branch
        %261 = sbr.rel (%p259) target = $region28
      $region27: #{multi_stage_forward.5} parent=11 // pred_region
        _
      $region28: #{multi_stage_forward.5} parent=11 // pred_fallthru
        _
      // Predicated region
      $region29: #{multi_stage_forward.5} parent=11 // pred_check
        %p262 = pneg %p146
      $region30: #{multi_stage_forward.5} parent=11 // pred_check_branch
        %264 = sbr.rel (%p262) target = $region32
      $region31: #{multi_stage_forward.5} parent=11 // pred_region
        _
      $region32: #{multi_stage_forward.5} parent=11 // pred_fallthru
        _
      // Predicated region
      $region33: #{multi_stage_forward.5} parent=11 // pred_check
        %p265 = pneg %p167
      $region34: #{multi_stage_forward.5} parent=11 // pred_check_branch
        %267 = sbr.rel (%p265) target = $region36
      $region35: #{multi_stage_forward.5} parent=11 // pred_region
        _
      $region36: #{multi_stage_forward.5} parent=11 // pred_fallthru
        _
      // Predicated region
      $region37: #{multi_stage_forward.5} parent=11 // pred_check
        %p268 = pneg %p188
      $region38: #{multi_stage_forward.5} parent=11 // pred_check_branch
        %270 = sbr.rel (%p268) target = $region40
      $region39: #{multi_stage_forward.5} parent=11 // pred_region
        _
      $region40: #{multi_stage_forward.5} parent=11 // pred_fallthru
        _
      // Predicated region
      $region41: #{multi_stage_forward.5} parent=11 // pred_check
        %p271 = pneg %p209
      $region42: #{multi_stage_forward.5} parent=11 // pred_check_branch
        %273 = sbr.rel (%p271) target = $region44
      $region43: #{multi_stage_forward.5} parent=11 // pred_region
        _
      $region44: #{multi_stage_forward.5} parent=11 // pred_fallthru
        _
    $region12: #{multi_stage_forward.5} parent=5 // pred_fallthru
      _
    %p274 = scmp.lt.s32.totalorder %s15, 2
    // Predicated region
    $region45: #{multi_stage_forward.5} parent=5 // pred_check
      %p275 = pneg %p274
    $region46: #{multi_stage_forward.5} parent=5 // pred_check_branch
      %277 = sbr.rel (%p275) target = $region48
    $region47: #{multi_stage_forward.5} parent=5 // pred_region
      // Predicated region
      $region49: #{multi_stage_forward.5} parent=47 // pred_check
        %p278 = pneg %p35
      $region50: #{multi_stage_forward.5} parent=47 // pred_check_branch
        %280 = sbr.rel (%p278) target = $region52
      $region51: #{multi_stage_forward.5} parent=47 // pred_region
        %p281 = scmp.lt.s32.totalorder %s15, 1
        %s282 = scalar_select %p281, %s15, 1
        %s283 = smul.addr %s282, 8
        %s284 = smul.addr %s283, 4
        %s285 = scalar_lea.vmem %s0, %s284
      $region52: #{multi_stage_forward.5} parent=47 // pred_fallthru
        _
    $region48: #{multi_stage_forward.5} parent=5 // pred_fallthru
      _
    %p286 = scmp.le.s32.totalorder 1, %s15
    %p287 = scmp.lt.s32.totalorder %s15, 3
    %p288 = pnand %p286, %p287
    %p289 = pneg %p288
    // Predicated region
    $region53: #{multi_stage_forward.5} parent=5 // pred_check
      _
    $region54: #{multi_stage_forward.5} parent=5 // pred_check_branch
      %291 = sbr.rel (%p288) target = $region56
    $region55: #{multi_stage_forward.5} parent=5 // pred_region
      %s292 = ssub.s32 %s15, 1
      %p293 = scmp.lt.s32.totalorder %s20, 1
      %s294 = scalar_select %p293, %s20, 1
      %s295 = smul.addr %s294, 8
      %s296 = smul.addr %s295, 4
      %s297 = scalar_lea.vmem %s0, %s296
      %p298 = pneg %p41
      %p299 = pneg %p38
      %p300 = pneg %p62
      %p301 = pneg %p59
      %p302 = pneg %p83
      %p303 = pneg %p80
      %p304 = pneg %p104
      %p305 = pneg %p101
      %p306 = pneg %p125
      %p307 = pneg %p122
      %p308 = pneg %p146
      %p309 = pneg %p143
      %p310 = pneg %p167
      %p311 = pneg %p164
      %p312 = pneg %p188
      %p313 = pneg %p185
      %p314 = pneg %p209
      %p315 = pneg %p206
      %p316 = pneg %p235
      %p317 = pneg %p232
      %p318 = scmp.lt.s32.totalorder %s20, 1
      %s319 = scalar_select %p318, %s20, 1
      %s320 = smul.addr %s319, 2
      %s321 = smul.addr %s320, 8
      %s322 = scalar_lea.vmem %s9, %s321
      %p323 = scmp.lt.s32.totalorder %s20, 1
      %s324 = scalar_select %p323, %s20, 1
      %s325 = smul.addr %s324, 8
      %s326 = smul.addr %s325, 4
      %s327 = scalar_lea.vmem %s0, %s326
      %p328 = scmp.lt.s32.totalorder %s20, 1
      %s329 = scalar_select %p328, %s20, 1
      %s330 = smul.addr %s329, 2
      %s331 = smul.addr %s330, 8
      %s332 = scalar_lea.vmem %s9, %s331
      %v334 = vld [vmem:[%s327] sm:$0xff]
      %v335 = vld [vmem:[%s327 + $0x8] sm:$0xff]
      %v336 = vld [vmem:[%s327 + $0x10] sm:$0xff]
      %v337 = vld [vmem:[%s327 + $0x18] sm:$0xff]
      %v338 = vld [vmem:[%s1] sm:$0xf]
      %v339 = vld [vmem:[%s1 + $0x4] sm:$0xf]
      %v340 = vld [vmem:[%s1 + $0x8] sm:$0xf]
      %v341 = vld [vmem:[%s1 + $0xc] sm:$0xf]
      %v342 = vld [vmem:[%s1 + $0x10] sm:$0xf]
      %v343 = vld [vmem:[%s1 + $0x14] sm:$0xf]
      %v344 = vld [vmem:[%s1 + $0x18] sm:$0xf]
      %v345 = vld [vmem:[%s1 + $0x1c] sm:$0xf]
      %v346 = vld [vmem:[%s1 + $0x20] sm:$0xf]
      %v347 = vld [vmem:[%s1 + $0x24] sm:$0xf]
      %v348 = vld [vmem:[%s1 + $0x28] sm:$0xf]
      %v349 = vld [vmem:[%s1 + $0x2c] sm:$0xf]
      %v350 = vld [vmem:[%s1 + $0x30] sm:$0xf]
      %v351 = vld [vmem:[%s1 + $0x34] sm:$0xf]
      %v352 = vld [vmem:[%s1 + $0x38] sm:$0xf]
      %v353 = vld [vmem:[%s1 + $0x3c] sm:$0xf]
      %v354 = vld [vmem:[%s1 + $0x40] sm:$0xf]
      %v355 = vld [vmem:[%s1 + $0x44] sm:$0xf]
      %v356 = vld [vmem:[%s1 + $0x48] sm:$0xf]
      %v357 = vld [vmem:[%s1 + $0x4c] sm:$0xf]
      %v358 = vld [vmem:[%s1 + $0x50] sm:$0xf]
      %v359 = vld [vmem:[%s1 + $0x54] sm:$0xf]
      %v360 = vld [vmem:[%s1 + $0x58] sm:$0xf]
      %v361 = vld [vmem:[%s1 + $0x5c] sm:$0xf]
      %v362 = vld [vmem:[%s1 + $0x60] sm:$0xf]
      %v363 = vld [vmem:[%s1 + $0x64] sm:$0xf]
      %v364 = vld [vmem:[%s1 + $0x68] sm:$0xf]
      %v365 = vld [vmem:[%s1 + $0x6c] sm:$0xf]
      %v366 = vld [vmem:[%s1 + $0x70] sm:$0xf]
      %v367 = vld [vmem:[%s1 + $0x74] sm:$0xf]
      %v368 = vld [vmem:[%s1 + $0x78] sm:$0xf]
      %v369 = vld [vmem:[%s1 + $0x7c] sm:$0xf]
      %v370 = vld [vmem:[%s1 + $0x80] sm:$0xf]
      %v371 = vld [vmem:[%s1 + $0x84] sm:$0xf]
      %v372 = vld [vmem:[%s1 + $0x88] sm:$0xf]
      %v373 = vld [vmem:[%s1 + $0x8c] sm:$0xf]
      %v374 = vld [vmem:[%s1 + $0x90] sm:$0xf]
      %v375 = vld [vmem:[%s1 + $0x94] sm:$0xf]
      %v376 = vld [vmem:[%s1 + $0x98] sm:$0xf]
      %v377 = vld [vmem:[%s1 + $0x9c] sm:$0xf]
      %v378 = vld [vmem:[%s1 + $0xa0] sm:$0xf]
      %v379 = vld [vmem:[%s1 + $0xa4] sm:$0xf]
      %v380 = vld [vmem:[%s1 + $0xa8] sm:$0xf]
      %v381 = vld [vmem:[%s1 + $0xac] sm:$0xf]
      %v382 = vld [vmem:[%s1 + $0xb0] sm:$0xf]
      %v383 = vld [vmem:[%s1 + $0xb4] sm:$0xf]
      %v384 = vld [vmem:[%s1 + $0xb8] sm:$0xf]
      %v385 = vld [vmem:[%s1 + $0xbc] sm:$0xf]
      %v386 = vld [vmem:[%s1 + $0xc0] sm:$0xf]
      %v387 = vld [vmem:[%s1 + $0xc4] sm:$0xf]
      %v388 = vld [vmem:[%s1 + $0xc8] sm:$0xf]
      %v389 = vld [vmem:[%s1 + $0xcc] sm:$0xf]
      %v390 = vld [vmem:[%s1 + $0xd0] sm:$0xf]
      %v391 = vld [vmem:[%s1 + $0xd4] sm:$0xf]
      %v392 = vld [vmem:[%s1 + $0xd8] sm:$0xf]
      %v393 = vld [vmem:[%s1 + $0xdc] sm:$0xf]
      %v394 = vld [vmem:[%s1 + $0xe0] sm:$0xf]
      %v395 = vld [vmem:[%s1 + $0xe4] sm:$0xf]
      %v396 = vld [vmem:[%s1 + $0xe8] sm:$0xf]
      %v397 = vld [vmem:[%s1 + $0xec] sm:$0xf]
      %v398 = vld [vmem:[%s1 + $0xf0] sm:$0xf]
      %v399 = vld [vmem:[%s1 + $0xf4] sm:$0xf]
      %v400 = vld [vmem:[%s1 + $0xf8] sm:$0xf]
      %v401 = vld [vmem:[%s1 + $0xfc] sm:$0xf]
      %v402 = vld [vmem:[%s2] sm:$0x1]
      %v404 = vlaneseq
      %v405 = vshrl.u32 %v404, 7
      %v406 = vsub.s32 0, %v405
      %v407 = vrot.slane %v402, %v406
      %v413 = vunpack.c.l.b16 %v334
      %v414 = vunpack.c.h.b16 %v334
      %v415 = vunpack.c.l.b16 %v335
      %v416 = vunpack.c.h.b16 %v335
      %v417 = vunpack.c.l.b16 %v336
      %v418 = vunpack.c.h.b16 %v336
      %v419 = vunpack.c.l.b16 %v337
      %v420 = vunpack.c.h.b16 %v337
      %v421 = vpack.c.b16 %v417, %v413
      %v422 = vpack.c.b16 %v418, %v414
      %v423 = vpack.c.b16 %v419, %v415
      %v424 = vpack.c.b16 %v420, %v416
      %v493 = vunpack.c.l.b16 %v338
      %v494 = vunpack.c.l.b16 %v339
      %v495 = vunpack.c.l.b16 %v340
      %v496 = vunpack.c.l.b16 %v341
      %v497 = vunpack.c.l.b16 %v342
      %v498 = vunpack.c.l.b16 %v343
      %v499 = vunpack.c.l.b16 %v344
      %v500 = vunpack.c.l.b16 %v345
      %v501 = vunpack.c.l.b16 %v346
      %v502 = vunpack.c.l.b16 %v347
      %v503 = vunpack.c.l.b16 %v348
      %v504 = vunpack.c.l.b16 %v349
      %v505 = vunpack.c.l.b16 %v350
      %v506 = vunpack.c.l.b16 %v351
      %v507 = vunpack.c.l.b16 %v352
      %v508 = vunpack.c.l.b16 %v353
      %v509 = vunpack.c.l.b16 %v354
      %v510 = vunpack.c.l.b16 %v355
      %v511 = vunpack.c.l.b16 %v356
      %v512 = vunpack.c.l.b16 %v357
      %v513 = vunpack.c.l.b16 %v358
      %v514 = vunpack.c.l.b16 %v359
      %v515 = vunpack.c.l.b16 %v360
      %v516 = vunpack.c.l.b16 %v361
      %v517 = vunpack.c.l.b16 %v362
      %v518 = vunpack.c.l.b16 %v363
      %v519 = vunpack.c.l.b16 %v364
      %v520 = vunpack.c.l.b16 %v365
      %v521 = vunpack.c.l.b16 %v366
      %v522 = vunpack.c.l.b16 %v367
      %v523 = vunpack.c.l.b16 %v368
      %v524 = vunpack.c.l.b16 %v369
      %v525 = vunpack.c.l.b16 %v370
      %v526 = vunpack.c.l.b16 %v371
      %v527 = vunpack.c.l.b16 %v372
      %v528 = vunpack.c.l.b16 %v373
      %v529 = vunpack.c.l.b16 %v374
      %v530 = vunpack.c.l.b16 %v375
      %v531 = vunpack.c.l.b16 %v376
      %v532 = vunpack.c.l.b16 %v377
      %v533 = vunpack.c.l.b16 %v378
      %v534 = vunpack.c.l.b16 %v379
      %v535 = vunpack.c.l.b16 %v380
      %v536 = vunpack.c.l.b16 %v381
      %v537 = vunpack.c.l.b16 %v382
      %v538 = vunpack.c.l.b16 %v383
      %v539 = vunpack.c.l.b16 %v384
      %v540 = vunpack.c.l.b16 %v385
      %v541 = vunpack.c.l.b16 %v386
      %v542 = vunpack.c.l.b16 %v387
      %v543 = vunpack.c.l.b16 %v388
      %v544 = vunpack.c.l.b16 %v389
      %v545 = vunpack.c.l.b16 %v390
      %v546 = vunpack.c.l.b16 %v391
      %v547 = vunpack.c.l.b16 %v392
      %v548 = vunpack.c.l.b16 %v393
      %v549 = vunpack.c.l.b16 %v394
      %v550 = vunpack.c.l.b16 %v395
      %v551 = vunpack.c.l.b16 %v396
      %v552 = vunpack.c.l.b16 %v397
      %v553 = vunpack.c.l.b16 %v398
      %v554 = vunpack.c.l.b16 %v399
      %v555 = vunpack.c.l.b16 %v400
      %v556 = vunpack.c.l.b16 %v401
      %v557 = vpack.c.b16 %v494, %v493
      %v558 = vpack.c.b16 %v496, %v495
      %v559 = vpack.c.b16 %v498, %v497
      %v560 = vpack.c.b16 %v500, %v499
      %v561 = vpack.c.b16 %v502, %v501
      %v562 = vpack.c.b16 %v504, %v503
      %v563 = vpack.c.b16 %v506, %v505
      %v564 = vpack.c.b16 %v508, %v507
      %v565 = vpack.c.b16 %v510, %v509
      %v566 = vpack.c.b16 %v512, %v511
      %v567 = vpack.c.b16 %v514, %v513
      %v568 = vpack.c.b16 %v516, %v515
      %v569 = vpack.c.b16 %v518, %v517
      %v570 = vpack.c.b16 %v520, %v519
      %v571 = vpack.c.b16 %v522, %v521
      %v572 = vpack.c.b16 %v524, %v523
      %v573 = vpack.c.b16 %v526, %v525
      %v574 = vpack.c.b16 %v528, %v527
      %v575 = vpack.c.b16 %v530, %v529
      %v576 = vpack.c.b16 %v532, %v531
      %v577 = vpack.c.b16 %v534, %v533
      %v578 = vpack.c.b16 %v536, %v535
      %v579 = vpack.c.b16 %v538, %v537
      %v580 = vpack.c.b16 %v540, %v539
      %v581 = vpack.c.b16 %v542, %v541
      %v582 = vpack.c.b16 %v544, %v543
      %v583 = vpack.c.b16 %v546, %v545
      %v584 = vpack.c.b16 %v548, %v547
      %v585 = vpack.c.b16 %v550, %v549
      %v586 = vpack.c.b16 %v552, %v551
      %v587 = vpack.c.b16 %v554, %v553
      %v588 = vpack.c.b16 %v556, %v555
      %621 = vmatprep.subr.bf16.mxu0 0
      %622 = vmatpush1.bf16.msra.mxu0 %v557
      %623 = vmatprep.subr.bf16.mxu0 0
      %624 = vmatpush1.bf16.msra.mxu0 %v558
      %625 = vmatprep.subr.bf16.mxu0 0
      %626 = vmatpush1.bf16.msra.mxu0 %v559
      %627 = vmatprep.subr.bf16.mxu0 0
      %628 = vmatpush1.bf16.msra.mxu0 %v560
      %629 = vmatprep.subr.bf16.mxu0 0
      %630 = vmatpush1.bf16.msra.mxu0 %v561
      %631 = vmatprep.subr.bf16.mxu0 0
      %632 = vmatpush1.bf16.msra.mxu0 %v562
      %633 = vmatprep.subr.bf16.mxu0 0
      %634 = vmatpush1.bf16.msra.mxu0 %v563
      %635 = vmatprep.subr.bf16.mxu0 0
      %636 = vmatpush1.bf16.msra.mxu0 %v564
      %637 = vmatprep.subr.bf16.mxu0 0
      %638 = vmatpush1.bf16.msra.mxu0 %v565
      %639 = vmatprep.subr.bf16.mxu0 0
      %640 = vmatpush1.bf16.msra.mxu0 %v566
      %641 = vmatprep.subr.bf16.mxu0 0
      %642 = vmatpush1.bf16.msra.mxu0 %v567
      %643 = vmatprep.subr.bf16.mxu0 0
      %644 = vmatpush1.bf16.msra.mxu0 %v568
      %645 = vmatprep.subr.bf16.mxu0 0
      %646 = vmatpush1.bf16.msra.mxu0 %v569
      %647 = vmatprep.subr.bf16.mxu0 0
      %648 = vmatpush1.bf16.msra.mxu0 %v570
      %649 = vmatprep.subr.bf16.mxu0 0
      %650 = vmatpush1.bf16.msra.mxu0 %v571
      %651 = vmatprep.subr.bf16.mxu0 0
      %652 = vmatpush1.bf16.msra.mxu0 %v572
      %653 = vmatprep.mubr.bf16.mxu0 %v422
      %654 = vmatmul.mubr.bf16.gmra.mrb[0].mxu0 %v421
      %v655 = vpop.f32.mrb[0].mxu0
      %v656 = vadd.f32 %v407, %v655
      %v657 = vpop.f32.mrb[0].mxu0
      %v658 = vpop.f32.mrb[0].mxu0
      %v659 = vadd.f32 %v407, %v658
      %v660 = vpop.f32.mrb[0].mxu0
      %661 = vdwg.mxu0
      %662 = vmatprep.subr.bf16.mxu0 0
      %663 = vmatpush1.bf16.msra.mxu0 %v573
      %664 = vmatprep.subr.bf16.mxu0 0
      %665 = vmatpush1.bf16.msra.mxu0 %v574
      %666 = vmatprep.subr.bf16.mxu0 0
      %667 = vmatpush1.bf16.msra.mxu0 %v575
      %668 = vmatprep.subr.bf16.mxu0 0
      %669 = vmatpush1.bf16.msra.mxu0 %v576
      %670 = vmatprep.subr.bf16.mxu0 0
      %671 = vmatpush1.bf16.msra.mxu0 %v577
      %672 = vmatprep.subr.bf16.mxu0 0
      %673 = vmatpush1.bf16.msra.mxu0 %v578
      %674 = vmatprep.subr.bf16.mxu0 0
      %675 = vmatpush1.bf16.msra.mxu0 %v579
      %676 = vmatprep.subr.bf16.mxu0 0
      %677 = vmatpush1.bf16.msra.mxu0 %v580
      %678 = vmatprep.subr.bf16.mxu0 0
      %679 = vmatpush1.bf16.msra.mxu0 %v581
      %680 = vmatprep.subr.bf16.mxu0 0
      %681 = vmatpush1.bf16.msra.mxu0 %v582
      %682 = vmatprep.subr.bf16.mxu0 0
      %683 = vmatpush1.bf16.msra.mxu0 %v583
      %684 = vmatprep.subr.bf16.mxu0 0
      %685 = vmatpush1.bf16.msra.mxu0 %v584
      %686 = vmatprep.subr.bf16.mxu0 0
      %687 = vmatpush1.bf16.msra.mxu0 %v585
      %688 = vmatprep.subr.bf16.mxu0 0
      %689 = vmatpush1.bf16.msra.mxu0 %v586
      %690 = vmatprep.subr.bf16.mxu0 0
      %691 = vmatpush1.bf16.msra.mxu0 %v587
      %692 = vmatprep.subr.bf16.mxu0 0
      %693 = vmatpush1.bf16.msra.mxu0 %v588
      %694 = vmatprep.mubr.bf16.mxu0 %v424
      %695 = vmatmul.mubr.bf16.gmra.mrb[0].mxu0 %v423
      %v696 = vpop.f32.mrb[0].mxu0
      %v697 = vadd.f32 %v656, %v696
      %v698 = vpop.f32.mrb[0].mxu0
      %v699 = vpop.f32.mrb[0].mxu0
      %v700 = vadd.f32 %v659, %v699
      %v701 = vpop.f32.mrb[0].mxu0
      %702 = vdwg.mxu0
      %v703 = vlaneseq
      %v704 = vshrl.u32 %v703, 7
      %v705 = vadd.s32 %v704, 8
      %vm706 = vcmp.ge.s32.totalorder %v704, 1
      %vm707 = vcmp.ge.s32.totalorder %v705, 1
      %v708 = vsel %vm706, 1, 0
      %v709 = vsel %vm707, 1, 0
      %v710 = vcvt.s32.f32 %v708
      %v711 = vcvt.s32.f32 %v709
      %vm712 = vcmp.lt.s32.totalorder %v704, 15
      %vm713 = vcmp.lt.s32.totalorder %v705, 15
      %v714 = vsel %vm712, 1, 0
      %v715 = vsel %vm713, 1, 0
      %v716 = vcvt.s32.f32 %v714
      %v717 = vcvt.s32.f32 %v715
      %v718 = vrot.slane %v697, 7
      %v719 = vrot.slane %v700, 7
      %vm720 = vcmp.lt.s32.totalorder %v704, 1
      %v721 = vsel %vm720, %v718, %v719
      %v722 = vsel %vm720, %v719, %v718
      %v723 = vmul.f32 %v722, %v710
      %v724 = vmul.f32 %v721, %v711
      %v725 = vrot.slane %v697, 1
      %v726 = vrot.slane %v700, 1
      %vm727 = vcmp.lt.s32.totalorder %v704, 7
      %v728 = vsel %vm727, %v725, %v726
      %v729 = vsel %vm727, %v726, %v725
      %v730 = vmul.f32 %v728, %v716
      %v731 = vmul.f32 %v729, %v717
      %734 = vrot.lane.b32.xlu0 %v697, 64
      %v735 = vpop.permute.xlu0 %734
      %736 = vrot.lane.b32.xlu0 %v700, 64
      %v737 = vpop.permute.xlu0 %736
      %vm740 = vcmask 523264
      %v741 = vsel %vm740, %v723, %v735
      %v742 = vsel %vm740, %v724, %v737
      %v743 = vpack.c.bf16 %v742, %v741
      %v744 = vpack.c.bf16 %v731, %v730
      %v745 = vld [vmem:[%s3] sm:$0xf]
      %v746 = vld [vmem:[%s3 + $0x4] sm:$0xf]
      %v747 = vld [vmem:[%s3 + $0x8] sm:$0xf]
      %v748 = vld [vmem:[%s3 + $0xc] sm:$0xf]
      %v749 = vld [vmem:[%s3 + $0x10] sm:$0xf]
      %v750 = vld [vmem:[%s3 + $0x14] sm:$0xf]
      %v751 = vld [vmem:[%s3 + $0x18] sm:$0xf]
      %v752 = vld [vmem:[%s3 + $0x1c] sm:$0xf]
      %v753 = vld [vmem:[%s3 + $0x20] sm:$0xf]
      %v754 = vld [vmem:[%s3 + $0x24] sm:$0xf]
      %v755 = vld [vmem:[%s3 + $0x28] sm:$0xf]
      %v756 = vld [vmem:[%s3 + $0x2c] sm:$0xf]
      %v757 = vld [vmem:[%s3 + $0x30] sm:$0xf]
      %v758 = vld [vmem:[%s3 + $0x34] sm:$0xf]
      %v759 = vld [vmem:[%s3 + $0x38] sm:$0xf]
      %v760 = vld [vmem:[%s3 + $0x3c] sm:$0xf]
      %v761 = vld [vmem:[%s3 + $0x40] sm:$0xf]
      %v762 = vld [vmem:[%s3 + $0x44] sm:$0xf]
      %v763 = vld [vmem:[%s3 + $0x48] sm:$0xf]
      %v764 = vld [vmem:[%s3 + $0x4c] sm:$0xf]
      %v765 = vld [vmem:[%s3 + $0x50] sm:$0xf]
      %v766 = vld [vmem:[%s3 + $0x54] sm:$0xf]
      %v767 = vld [vmem:[%s3 + $0x58] sm:$0xf]
      %v768 = vld [vmem:[%s3 + $0x5c] sm:$0xf]
      %v769 = vld [vmem:[%s4] sm:$0x1]
      %v770 = vlaneseq
      %v771 = vshrl.u32 %v770, 7
      %v772 = vsub.s32 0, %v771
      %v773 = vrot.slane %v769, %v772
      %v798 = vunpack.c.l.b16 %v745
      %v799 = vunpack.c.l.b16 %v746
      %v800 = vunpack.c.l.b16 %v747
      %v801 = vunpack.c.l.b16 %v748
      %v802 = vunpack.c.l.b16 %v749
      %v803 = vunpack.c.l.b16 %v750
      %v804 = vunpack.c.l.b16 %v751
      %v805 = vunpack.c.l.b16 %v752
      %v806 = vunpack.c.l.b16 %v753
      %v807 = vunpack.c.l.b16 %v754
      %v808 = vunpack.c.l.b16 %v755
      %v809 = vunpack.c.l.b16 %v756
      %v810 = vunpack.c.l.b16 %v757
      %v811 = vunpack.c.l.b16 %v758
      %v812 = vunpack.c.l.b16 %v759
      %v813 = vunpack.c.l.b16 %v760
      %v814 = vunpack.c.l.b16 %v761
      %v815 = vunpack.c.l.b16 %v762
      %v816 = vunpack.c.l.b16 %v763
      %v817 = vunpack.c.l.b16 %v764
      %v818 = vunpack.c.l.b16 %v765
      %v819 = vunpack.c.l.b16 %v766
      %v820 = vunpack.c.l.b16 %v767
      %v821 = vunpack.c.l.b16 %v768
      %v822 = vpack.c.b16 %v799, %v798
      %v823 = vpack.c.b16 %v801, %v800
      %v824 = vpack.c.b16 %v803, %v802
      %v825 = vpack.c.b16 %v805, %v804
      %v826 = vpack.c.b16 %v807, %v806
      %v827 = vpack.c.b16 %v809, %v808
      %v828 = vpack.c.b16 %v811, %v810
      %v829 = vpack.c.b16 %v813, %v812
      %v830 = vpack.c.b16 %v815, %v814
      %v831 = vpack.c.b16 %v817, %v816
      %v832 = vpack.c.b16 %v819, %v818
      %v833 = vpack.c.b16 %v821, %v820
      %v847 = vsel %vm740, %v744, 0
      %849 = vmatprep.subr.bf16.mxu0 0
      %850 = vmatpush1.bf16.msra.mxu0 %v822
      %851 = vmatprep.subr.bf16.mxu0 0
      %852 = vmatpush1.bf16.msra.mxu0 %v823
      %853 = vmatprep.subr.bf16.mxu0 0
      %854 = vmatpush1.bf16.msra.mxu0 %v824
      %855 = vmatprep.subr.bf16.mxu0 0
      %856 = vmatpush1.bf16.msra.mxu0 %v825
      %857 = vmatprep.subr.bf16.mxu0 0
      %858 = vmatpush1.bf16.msra.mxu0 %v826
      %859 = vmatprep.subr.bf16.mxu0 0
      %860 = vmatpush1.bf16.msra.mxu0 %v827
      %861 = vmatprep.subr.bf16.mxu0 0
      %862 = vmatpush1.bf16.msra.mxu0 %v828
      %863 = vmatprep.subr.bf16.mxu0 0
      %864 = vmatpush1.bf16.msra.mxu0 %v829
      %865 = vmatprep.subr.bf16.mxu0 0
      %866 = vmatpush1.bf16.msra.mxu0 %v830
      %867 = vmatprep.subr.bf16.mxu0 0
      %868 = vmatpush1.bf16.msra.mxu0 %v831
      %869 = vmatprep.subr.bf16.mxu0 0
      %870 = vmatpush1.bf16.msra.mxu0 %v832
      %871 = vmatprep.subr.bf16.mxu0 0
      %872 = vmatpush1.bf16.msra.mxu0 %v833
      %873 = vmatprep.subr.bf16.mxu0 0
      %874 = vmatpush1.bf16.msra.mxu0 0
      %875 = vmatprep.subr.bf16.mxu0 0
      %876 = vmatpush1.bf16.msra.mxu0 0
      %877 = vmatprep.subr.bf16.mxu0 0
      %878 = vmatpush1.bf16.msra.mxu0 0
      %879 = vmatprep.subr.bf16.mxu0 0
      %880 = vmatpush1.bf16.msra.mxu0 0
      %881 = vmatprep.mubr.bf16.mxu0 %v847
      %882 = vmatmul.mubr.bf16.gmra.mrb[0].mxu0 %v743
      %v883 = vpop.f32.mrb[0].mxu0
      %v884 = vadd.f32 %v773, %v883
      %v885 = vpop.f32.mrb[0].mxu0
      %v886 = vpop.f32.mrb[0].mxu0
      %v887 = vadd.f32 %v773, %v886
      %v888 = vpop.f32.mrb[0].mxu0
      %889 = vdwg.mxu0
      %v890 = vmax.f32 %v884, 0.0
      %v891 = vmax.f32 %v887, 0.0
      %v892 = vpack.c.bf16 %v891, %v890
      %v893 = vld [vmem:[%s5] sm:$0xf]
      %v894 = vld [vmem:[%s5 + $0x4] sm:$0xf]
      %v895 = vld [vmem:[%s5 + $0x8] sm:$0xf]
      %v896 = vld [vmem:[%s5 + $0xc] sm:$0xf]
      %v897 = vld [vmem:[%s5 + $0x10] sm:$0xf]
      %v898 = vld [vmem:[%s5 + $0x14] sm:$0xf]
      %v899 = vld [vmem:[%s5 + $0x18] sm:$0xf]
      %v900 = vld [vmem:[%s5 + $0x1c] sm:$0xf]
      %v901 = vld [vmem:[%s6] sm:$0x1]
      %v902 = vlaneseq
      %v903 = vshrl.u32 %v902, 7
      %v904 = vsub.s32 0, %v903
      %v905 = vrot.slane %v901, %v904
      %v914 = vunpack.c.l.b16 %v893
      %v915 = vunpack.c.l.b16 %v894
      %v916 = vunpack.c.l.b16 %v895
      %v917 = vunpack.c.l.b16 %v896
      %v918 = vunpack.c.l.b16 %v897
      %v919 = vunpack.c.l.b16 %v898
      %v920 = vunpack.c.l.b16 %v899
      %v921 = vunpack.c.l.b16 %v900
      %v922 = vpack.c.b16 %v915, %v914
      %v923 = vpack.c.b16 %v917, %v916
      %v924 = vpack.c.b16 %v919, %v918
      %v925 = vpack.c.b16 %v921, %v920
      %v931 = vsel %vm740, %v892, 0
      %933 = vmatprep.subr.bf16.mxu0 0
      %934 = vmatpush1.bf16.msra.mxu0 %v922
      %935 = vmatprep.subr.bf16.mxu0 0
      %936 = vmatpush1.bf16.msra.mxu0 %v923
      %937 = vmatprep.subr.bf16.mxu0 0
      %938 = vmatpush1.bf16.msra.mxu0 %v924
      %939 = vmatprep.subr.bf16.mxu0 0
      %940 = vmatpush1.bf16.msra.mxu0 %v925
      %941 = vmatprep.subr.bf16.mxu0 0
      %942 = vmatpush1.bf16.msra.mxu0 0
      %943 = vmatprep.subr.bf16.mxu0 0
      %944 = vmatpush1.bf16.msra.mxu0 0
      %945 = vmatprep.subr.bf16.mxu0 0
      %946 = vmatpush1.bf16.msra.mxu0 0
      %947 = vmatprep.subr.bf16.mxu0 0
      %948 = vmatpush1.bf16.msra.mxu0 0
      %949 = vmatprep.subr.bf16.mxu0 0
      %950 = vmatpush1.bf16.msra.mxu0 0
      %951 = vmatprep.subr.bf16.mxu0 0
      %952 = vmatpush1.bf16.msra.mxu0 0
      %953 = vmatprep.subr.bf16.mxu0 0
      %954 = vmatpush1.bf16.msra.mxu0 0
      %955 = vmatprep.subr.bf16.mxu0 0
      %956 = vmatpush1.bf16.msra.mxu0 0
      %957 = vmatprep.subr.bf16.mxu0 0
      %958 = vmatpush1.bf16.msra.mxu0 0
      %959 = vmatprep.subr.bf16.mxu0 0
      %960 = vmatpush1.bf16.msra.mxu0 0
      %961 = vmatprep.subr.bf16.mxu0 0
      %962 = vmatpush1.bf16.msra.mxu0 0
      %963 = vmatprep.subr.bf16.mxu0 0
      %964 = vmatpush1.bf16.msra.mxu0 0
      %965 = vmatprep.mubr.bf16.mxu0 0
      %966 = vmatmul.mubr.bf16.gmra.mrb[0].mxu0 %v931
      %v967 = vpop.f32.mrb[0].mxu0
      %v968 = vadd.f32 %v905, %v967
      %v969 = vpop.f32.mrb[0].mxu0
      %v970 = vpop.f32.mrb[0].mxu0
      %v971 = vadd.f32 %v905, %v970
      %v972 = vpop.f32.mrb[0].mxu0
      %973 = vdwg.mxu0
      %v974 = vadd.f32 %v697, %v968
      %v975 = vadd.f32 %v700, %v971
      %vm976 = vcmp.ge.s32.totalorder %v704, 2
      %vm977 = vcmp.ge.s32.totalorder %v705, 2
      %v978 = vsel %vm976, 1, 0
      %v979 = vsel %vm977, 1, 0
      %v980 = vcvt.s32.f32 %v978
      %v981 = vcvt.s32.f32 %v979
      %vm982 = vcmp.lt.s32.totalorder %v704, 14
      %vm983 = vcmp.lt.s32.totalorder %v705, 14
      %v984 = vsel %vm982, 1, 0
      %v985 = vsel %vm983, 1, 0
      %v986 = vcvt.s32.f32 %v984
      %v987 = vcvt.s32.f32 %v985
      %v988 = vrot.slane %v974, 6
      %v989 = vrot.slane %v975, 6
      %vm990 = vcmp.lt.s32.totalorder %v704, 2
      %v991 = vsel %vm990, %v988, %v989
      %v992 = vsel %vm990, %v989, %v988
      %v993 = vmul.f32 %v992, %v980
      %v994 = vmul.f32 %v991, %v981
      %v995 = vrot.slane %v974, 2
      %v996 = vrot.slane %v975, 2
      %vm997 = vcmp.lt.s32.totalorder %v704, 6
      %v998 = vsel %vm997, %v995, %v996
      %v999 = vsel %vm997, %v996, %v995
      %v1000 = vmul.f32 %v998, %v986
      %v1001 = vmul.f32 %v999, %v987
      %1004 = vrot.lane.b32.xlu0 %v974, 64
      %v1005 = vpop.permute.xlu0 %1004
      %1006 = vrot.lane.b32.xlu0 %v975, 64
      %v1007 = vpop.permute.xlu0 %1006
      %v1010 = vsel %vm740, %v993, %v1005
      %v1011 = vsel %vm740, %v994, %v1007
      %v1012 = vpack.c.bf16 %v1011, %v1010
      %v1013 = vpack.c.bf16 %v1001, %v1000
      %s1014 = scalar_lea.vmem %s3, 96
      %v1015 = vld [vmem:[%s1014] sm:$0xf]
      %v1016 = vld [vmem:[%s1014 + $0x4] sm:$0xf]
      %v1017 = vld [vmem:[%s1014 + $0x8] sm:$0xf]
      %v1018 = vld [vmem:[%s1014 + $0xc] sm:$0xf]
      %v1019 = vld [vmem:[%s1014 + $0x10] sm:$0xf]
      %v1020 = vld [vmem:[%s1014 + $0x14] sm:$0xf]
      %v1021 = vld [vmem:[%s1014 + $0x18] sm:$0xf]
      %v1022 = vld [vmem:[%s1014 + $0x1c] sm:$0xf]
      %v1023 = vld [vmem:[%s1014 + $0x20] sm:$0xf]
      %v1024 = vld [vmem:[%s1014 + $0x24] sm:$0xf]
      %v1025 = vld [vmem:[%s1014 + $0x28] sm:$0xf]
      %v1026 = vld [vmem:[%s1014 + $0x2c] sm:$0xf]
      %v1027 = vld [vmem:[%s1014 + $0x30] sm:$0xf]
      %v1028 = vld [vmem:[%s1014 + $0x34] sm:$0xf]
      %v1029 = vld [vmem:[%s1014 + $0x38] sm:$0xf]
      %v1030 = vld [vmem:[%s1014 + $0x3c] sm:$0xf]
      %v1031 = vld [vmem:[%s1014 + $0x40] sm:$0xf]
      %v1032 = vld [vmem:[%s1014 + $0x44] sm:$0xf]
      %v1033 = vld [vmem:[%s1014 + $0x48] sm:$0xf]
      %v1034 = vld [vmem:[%s1014 + $0x4c] sm:$0xf]
      %v1035 = vld [vmem:[%s1014 + $0x50] sm:$0xf]
      %v1036 = vld [vmem:[%s1014 + $0x54] sm:$0xf]
      %v1037 = vld [vmem:[%s1014 + $0x58] sm:$0xf]
      %v1038 = vld [vmem:[%s1014 + $0x5c] sm:$0xf]
      %v1039 = vld [vmem:[%s4 + $0x1] sm:$0x1]
      %v1040 = vlaneseq
      %v1041 = vshrl.u32 %v1040, 7
      %v1042 = vsub.s32 0, %v1041
      %v1043 = vrot.slane %v1039, %v1042
      %v1068 = vunpack.c.l.b16 %v1015
      %v1069 = vunpack.c.l.b16 %v1016
      %v1070 = vunpack.c.l.b16 %v1017
      %v1071 = vunpack.c.l.b16 %v1018
      %v1072 = vunpack.c.l.b16 %v1019
      %v1073 = vunpack.c.l.b16 %v1020
      %v1074 = vunpack.c.l.b16 %v1021
      %v1075 = vunpack.c.l.b16 %v1022
      %v1076 = vunpack.c.l.b16 %v1023
      %v1077 = vunpack.c.l.b16 %v1024
      %v1078 = vunpack.c.l.b16 %v1025
      %v1079 = vunpack.c.l.b16 %v1026
      %v1080 = vunpack.c.l.b16 %v1027
      %v1081 = vunpack.c.l.b16 %v1028
      %v1082 = vunpack.c.l.b16 %v1029
      %v1083 = vunpack.c.l.b16 %v1030
      %v1084 = vunpack.c.l.b16 %v1031
      %v1085 = vunpack.c.l.b16 %v1032
      %v1086 = vunpack.c.l.b16 %v1033
      %v1087 = vunpack.c.l.b16 %v1034
      %v1088 = vunpack.c.l.b16 %v1035
      %v1089 = vunpack.c.l.b16 %v1036
      %v1090 = vunpack.c.l.b16 %v1037
      %v1091 = vunpack.c.l.b16 %v1038
      %v1092 = vpack.c.b16 %v1069, %v1068
      %v1093 = vpack.c.b16 %v1071, %v1070
      %v1094 = vpack.c.b16 %v1073, %v1072
      %v1095 = vpack.c.b16 %v1075, %v1074
      %v1096 = vpack.c.b16 %v1077, %v1076
      %v1097 = vpack.c.b16 %v1079, %v1078
      %v1098 = vpack.c.b16 %v1081, %v1080
      %v1099 = vpack.c.b16 %v1083, %v1082
      %v1100 = vpack.c.b16 %v1085, %v1084
      %v1101 = vpack.c.b16 %v1087, %v1086
      %v1102 = vpack.c.b16 %v1089, %v1088
      %v1103 = vpack.c.b16 %v1091, %v1090
      %v1117 = vsel %vm740, %v1013, 0
      %1119 = vmatprep.subr.bf16.mxu0 0
      %1120 = vmatpush1.bf16.msra.mxu0 %v1092
      %1121 = vmatprep.subr.bf16.mxu0 0
      %1122 = vmatpush1.bf16.msra.mxu0 %v1093
      %1123 = vmatprep.subr.bf16.mxu0 0
      %1124 = vmatpush1.bf16.msra.mxu0 %v1094
      %1125 = vmatprep.subr.bf16.mxu0 0
      %1126 = vmatpush1.bf16.msra.mxu0 %v1095
      %1127 = vmatprep.subr.bf16.mxu0 0
      %1128 = vmatpush1.bf16.msra.mxu0 %v1096
      %1129 = vmatprep.subr.bf16.mxu0 0
      %1130 = vmatpush1.bf16.msra.mxu0 %v1097
      %1131 = vmatprep.subr.bf16.mxu0 0
      %1132 = vmatpush1.bf16.msra.mxu0 %v1098
      %1133 = vmatprep.subr.bf16.mxu0 0
      %1134 = vmatpush1.bf16.msra.mxu0 %v1099
      %1135 = vmatprep.subr.bf16.mxu0 0
      %1136 = vmatpush1.bf16.msra.mxu0 %v1100
      %1137 = vmatprep.subr.bf16.mxu0 0
      %1138 = vmatpush1.bf16.msra.mxu0 %v1101
      %1139 = vmatprep.subr.bf16.mxu0 0
      %1140 = vmatpush1.bf16.msra.mxu0 %v1102
      %1141 = vmatprep.subr.bf16.mxu0 0
      %1142 = vmatpush1.bf16.msra.mxu0 %v1103
      %1143 = vmatprep.subr.bf16.mxu0 0
      %1144 = vmatpush1.bf16.msra.mxu0 0
      %1145 = vmatprep.subr.bf16.mxu0 0
      %1146 = vmatpush1.bf16.msra.mxu0 0
      %1147 = vmatprep.subr.bf16.mxu0 0
      %1148 = vmatpush1.bf16.msra.mxu0 0
      %1149 = vmatprep.subr.bf16.mxu0 0
      %1150 = vmatpush1.bf16.msra.mxu0 0
      %1151 = vmatprep.mubr.bf16.mxu0 %v1117
      %1152 = vmatmul.mubr.bf16.gmra.mrb[0].mxu0 %v1012
      %v1153 = vpop.f32.mrb[0].mxu0
      %v1154 = vadd.f32 %v1043, %v1153
      %v1155 = vpop.f32.mrb[0].mxu0
      %v1156 = vpop.f32.mrb[0].mxu0
      %v1157 = vadd.f32 %v1043, %v1156
      %v1158 = vpop.f32.mrb[0].mxu0
      %1159 = vdwg.mxu0
      %v1160 = vmax.f32 %v1154, 0.0
      %v1161 = vmax.f32 %v1157, 0.0
      %v1162 = vpack.c.bf16 %v1161, %v1160
      %s1163 = scalar_lea.vmem %s5, 32
      %v1164 = vld [vmem:[%s1163] sm:$0xf]
      %v1165 = vld [vmem:[%s1163 + $0x4] sm:$0xf]
      %v1166 = vld [vmem:[%s1163 + $0x8] sm:$0xf]
      %v1167 = vld [vmem:[%s1163 + $0xc] sm:$0xf]
      %v1168 = vld [vmem:[%s1163 + $0x10] sm:$0xf]
      %v1169 = vld [vmem:[%s1163 + $0x14] sm:$0xf]
      %v1170 = vld [vmem:[%s1163 + $0x18] sm:$0xf]
      %v1171 = vld [vmem:[%s1163 + $0x1c] sm:$0xf]
      %v1172 = vld [vmem:[%s6 + $0x1] sm:$0x1]
      %v1173 = vlaneseq
      %v1174 = vshrl.u32 %v1173, 7
      %v1175 = vsub.s32 0, %v1174
      %v1176 = vrot.slane %v1172, %v1175
      %v1185 = vunpack.c.l.b16 %v1164
      %v1186 = vunpack.c.l.b16 %v1165
      %v1187 = vunpack.c.l.b16 %v1166
      %v1188 = vunpack.c.l.b16 %v1167
      %v1189 = vunpack.c.l.b16 %v1168
      %v1190 = vunpack.c.l.b16 %v1169
      %v1191 = vunpack.c.l.b16 %v1170
      %v1192 = vunpack.c.l.b16 %v1171
      %v1193 = vpack.c.b16 %v1186, %v1185
      %v1194 = vpack.c.b16 %v1188, %v1187
      %v1195 = vpack.c.b16 %v1190, %v1189
      %v1196 = vpack.c.b16 %v1192, %v1191
      %v1202 = vsel %vm740, %v1162, 0
      %1204 = vmatprep.subr.bf16.mxu0 0
      %1205 = vmatpush1.bf16.msra.mxu0 %v1193
      %1206 = vmatprep.subr.bf16.mxu0 0
      %1207 = vmatpush1.bf16.msra.mxu0 %v1194
      %1208 = vmatprep.subr.bf16.mxu0 0
      %1209 = vmatpush1.bf16.msra.mxu0 %v1195
      %1210 = vmatprep.subr.bf16.mxu0 0
      %1211 = vmatpush1.bf16.msra.mxu0 %v1196
      %1212 = vmatprep.subr.bf16.mxu0 0
      %1213 = vmatpush1.bf16.msra.mxu0 0
      %1214 = vmatprep.subr.bf16.mxu0 0
      %1215 = vmatpush1.bf16.msra.mxu0 0
      %1216 = vmatprep.subr.bf16.mxu0 0
      %1217 = vmatpush1.bf16.msra.mxu0 0
      %1218 = vmatprep.subr.bf16.mxu0 0
      %1219 = vmatpush1.bf16.msra.mxu0 0
      %1220 = vmatprep.subr.bf16.mxu0 0
      %1221 = vmatpush1.bf16.msra.mxu0 0
      %1222 = vmatprep.subr.bf16.mxu0 0
      %1223 = vmatpush1.bf16.msra.mxu0 0
      %1224 = vmatprep.subr.bf16.mxu0 0
      %1225 = vmatpush1.bf16.msra.mxu0 0
      %1226 = vmatprep.subr.bf16.mxu0 0
      %1227 = vmatpush1.bf16.msra.mxu0 0
      %1228 = vmatprep.subr.bf16.mxu0 0
      %1229 = vmatpush1.bf16.msra.mxu0 0
      %1230 = vmatprep.subr.bf16.mxu0 0
      %1231 = vmatpush1.bf16.msra.mxu0 0
      %1232 = vmatprep.subr.bf16.mxu0 0
      %1233 = vmatpush1.bf16.msra.mxu0 0
      %1234 = vmatprep.subr.bf16.mxu0 0
      %1235 = vmatpush1.bf16.msra.mxu0 0
      %1236 = vmatprep.mubr.bf16.mxu0 0
      %1237 = vmatmul.mubr.bf16.gmra.mrb[0].mxu0 %v1202
      %v1238 = vpop.f32.mrb[0].mxu0
      %v1239 = vadd.f32 %v1176, %v1238
      %v1240 = vpop.f32.mrb[0].mxu0
      %v1241 = vpop.f32.mrb[0].mxu0
      %v1242 = vadd.f32 %v1176, %v1241
      %v1243 = vpop.f32.mrb[0].mxu0
      %1244 = vdwg.mxu0
      %v1245 = vadd.f32 %v974, %v1239
      %v1246 = vadd.f32 %v975, %v1242
      %vm1247 = vcmp.ge.s32.totalorder %v704, 4
      %vm1248 = vcmp.ge.s32.totalorder %v705, 4
      %v1249 = vsel %vm1247, 1, 0
      %v1250 = vsel %vm1248, 1, 0
      %v1251 = vcvt.s32.f32 %v1249
      %v1252 = vcvt.s32.f32 %v1250
      %vm1253 = vcmp.lt.s32.totalorder %v704, 12
      %vm1254 = vcmp.lt.s32.totalorder %v705, 12
      %v1255 = vsel %vm1253, 1, 0
      %v1256 = vsel %vm1254, 1, 0
      %v1257 = vcvt.s32.f32 %v1255
      %v1258 = vcvt.s32.f32 %v1256
      %v1259 = vrot.slane %v1245, 4
      %v1260 = vrot.slane %v1246, 4
      %vm1261 = vcmp.lt.s32.totalorder %v704, 4
      %v1262 = vsel %vm1261, %v1259, %v1260
      %v1263 = vsel %vm1261, %v1260, %v1259
      %v1264 = vmul.f32 %v1263, %v1251
      %v1265 = vmul.f32 %v1262, %v1252
      %v1266 = vmul.f32 %v1262, %v1257
      %v1267 = vmul.f32 %v1263, %v1258
      %1270 = vrot.lane.b32.xlu0 %v1245, 64
      %v1271 = vpop.permute.xlu0 %1270
      %1272 = vrot.lane.b32.xlu0 %v1246, 64
      %v1273 = vpop.permute.xlu0 %1272
      %v1276 = vsel %vm740, %v1264, %v1271
      %v1277 = vsel %vm740, %v1265, %v1273
      %v1278 = vpack.c.bf16 %v1277, %v1276
      %v1279 = vpack.c.bf16 %v1267, %v1266
      %s1280 = scalar_lea.vmem %s3, 192
      %v1281 = vld [vmem:[%s1280] sm:$0xf]
      %v1282 = vld [vmem:[%s1280 + $0x4] sm:$0xf]
      %v1283 = vld [vmem:[%s1280 + $0x8] sm:$0xf]
      %v1284 = vld [vmem:[%s1280 + $0xc] sm:$0xf]
      %v1285 = vld [vmem:[%s1280 + $0x10] sm:$0xf]
      %v1286 = vld [vmem:[%s1280 + $0x14] sm:$0xf]
      %v1287 = vld [vmem:[%s1280 + $0x18] sm:$0xf]
      %v1288 = vld [vmem:[%s1280 + $0x1c] sm:$0xf]
      %v1289 = vld [vmem:[%s1280 + $0x20] sm:$0xf]
      %v1290 = vld [vmem:[%s1280 + $0x24] sm:$0xf]
      %v1291 = vld [vmem:[%s1280 + $0x28] sm:$0xf]
      %v1292 = vld [vmem:[%s1280 + $0x2c] sm:$0xf]
      %v1293 = vld [vmem:[%s1280 + $0x30] sm:$0xf]
      %v1294 = vld [vmem:[%s1280 + $0x34] sm:$0xf]
      %v1295 = vld [vmem:[%s1280 + $0x38] sm:$0xf]
      %v1296 = vld [vmem:[%s1280 + $0x3c] sm:$0xf]
      %v1297 = vld [vmem:[%s1280 + $0x40] sm:$0xf]
      %v1298 = vld [vmem:[%s1280 + $0x44] sm:$0xf]
      %v1299 = vld [vmem:[%s1280 + $0x48] sm:$0xf]
      %v1300 = vld [vmem:[%s1280 + $0x4c] sm:$0xf]
      %v1301 = vld [vmem:[%s1280 + $0x50] sm:$0xf]
      %v1302 = vld [vmem:[%s1280 + $0x54] sm:$0xf]
      %v1303 = vld [vmem:[%s1280 + $0x58] sm:$0xf]
      %v1304 = vld [vmem:[%s1280 + $0x5c] sm:$0xf]
      %v1305 = vld [vmem:[%s4 + $0x2] sm:$0x1]
      %v1306 = vlaneseq
      %v1307 = vshrl.u32 %v1306, 7
      %v1308 = vsub.s32 0, %v1307
      %v1309 = vrot.slane %v1305, %v1308
      %v1334 = vunpack.c.l.b16 %v1281
      %v1335 = vunpack.c.l.b16 %v1282
      %v1336 = vunpack.c.l.b16 %v1283
      %v1337 = vunpack.c.l.b16 %v1284
      %v1338 = vunpack.c.l.b16 %v1285
      %v1339 = vunpack.c.l.b16 %v1286
      %v1340 = vunpack.c.l.b16 %v1287
      %v1341 = vunpack.c.l.b16 %v1288
      %v1342 = vunpack.c.l.b16 %v1289
      %v1343 = vunpack.c.l.b16 %v1290
      %v1344 = vunpack.c.l.b16 %v1291
      %v1345 = vunpack.c.l.b16 %v1292
      %v1346 = vunpack.c.l.b16 %v1293
      %v1347 = vunpack.c.l.b16 %v1294
      %v1348 = vunpack.c.l.b16 %v1295
      %v1349 = vunpack.c.l.b16 %v1296
      %v1350 = vunpack.c.l.b16 %v1297
      %v1351 = vunpack.c.l.b16 %v1298
      %v1352 = vunpack.c.l.b16 %v1299
      %v1353 = vunpack.c.l.b16 %v1300
      %v1354 = vunpack.c.l.b16 %v1301
      %v1355 = vunpack.c.l.b16 %v1302
      %v1356 = vunpack.c.l.b16 %v1303
      %v1357 = vunpack.c.l.b16 %v1304
      %v1358 = vpack.c.b16 %v1335, %v1334
      %v1359 = vpack.c.b16 %v1337, %v1336
      %v1360 = vpack.c.b16 %v1339, %v1338
      %v1361 = vpack.c.b16 %v1341, %v1340
      %v1362 = vpack.c.b16 %v1343, %v1342
      %v1363 = vpack.c.b16 %v1345, %v1344
      %v1364 = vpack.c.b16 %v1347, %v1346
      %v1365 = vpack.c.b16 %v1349, %v1348
      %v1366 = vpack.c.b16 %v1351, %v1350
      %v1367 = vpack.c.b16 %v1353, %v1352
      %v1368 = vpack.c.b16 %v1355, %v1354
      %v1369 = vpack.c.b16 %v1357, %v1356
      %v1383 = vsel %vm740, %v1279, 0
      %1385 = vmatprep.subr.bf16.mxu0 0
      %1386 = vmatpush1.bf16.msra.mxu0 %v1358
      %1387 = vmatprep.subr.bf16.mxu0 0
      %1388 = vmatpush1.bf16.msra.mxu0 %v1359
      %1389 = vmatprep.subr.bf16.mxu0 0
      %1390 = vmatpush1.bf16.msra.mxu0 %v1360
      %1391 = vmatprep.subr.bf16.mxu0 0
      %1392 = vmatpush1.bf16.msra.mxu0 %v1361
      %1393 = vmatprep.subr.bf16.mxu0 0
      %1394 = vmatpush1.bf16.msra.mxu0 %v1362
      %1395 = vmatprep.subr.bf16.mxu0 0
      %1396 = vmatpush1.bf16.msra.mxu0 %v1363
      %1397 = vmatprep.subr.bf16.mxu0 0
      %1398 = vmatpush1.bf16.msra.mxu0 %v1364
      %1399 = vmatprep.subr.bf16.mxu0 0
      %1400 = vmatpush1.bf16.msra.mxu0 %v1365
      %1401 = vmatprep.subr.bf16.mxu0 0
      %1402 = vmatpush1.bf16.msra.mxu0 %v1366
      %1403 = vmatprep.subr.bf16.mxu0 0
      %1404 = vmatpush1.bf16.msra.mxu0 %v1367
      %1405 = vmatprep.subr.bf16.mxu0 0
      %1406 = vmatpush1.bf16.msra.mxu0 %v1368
      %1407 = vmatprep.subr.bf16.mxu0 0
      %1408 = vmatpush1.bf16.msra.mxu0 %v1369
      %1409 = vmatprep.subr.bf16.mxu0 0
      %1410 = vmatpush1.bf16.msra.mxu0 0
      %1411 = vmatprep.subr.bf16.mxu0 0
      %1412 = vmatpush1.bf16.msra.mxu0 0
      %1413 = vmatprep.subr.bf16.mxu0 0
      %1414 = vmatpush1.bf16.msra.mxu0 0
      %1415 = vmatprep.subr.bf16.mxu0 0
      %1416 = vmatpush1.bf16.msra.mxu0 0
      %1417 = vmatprep.mubr.bf16.mxu0 %v1383
      %1418 = vmatmul.mubr.bf16.gmra.mrb[0].mxu0 %v1278
      %v1419 = vpop.f32.mrb[0].mxu0
      %v1420 = vadd.f32 %v1309, %v1419
      %v1421 = vpop.f32.mrb[0].mxu0
      %v1422 = vpop.f32.mrb[0].mxu0
      %v1423 = vadd.f32 %v1309, %v1422
      %v1424 = vpop.f32.mrb[0].mxu0
      %1425 = vdwg.mxu0
      %v1426 = vmax.f32 %v1420, 0.0
      %v1427 = vmax.f32 %v1423, 0.0
      %v1428 = vpack.c.bf16 %v1427, %v1426
      %s1429 = scalar_lea.vmem %s5, 64
      %v1430 = vld [vmem:[%s1429] sm:$0xf]
      %v1431 = vld [vmem:[%s1429 + $0x4] sm:$0xf]
      %v1432 = vld [vmem:[%s1429 + $0x8] sm:$0xf]
      %v1433 = vld [vmem:[%s1429 + $0xc] sm:$0xf]
      %v1434 = vld [vmem:[%s1429 + $0x10] sm:$0xf]
      %v1435 = vld [vmem:[%s1429 + $0x14] sm:$0xf]
      %v1436 = vld [vmem:[%s1429 + $0x18] sm:$0xf]
      %v1437 = vld [vmem:[%s1429 + $0x1c] sm:$0xf]
      %v1438 = vld [vmem:[%s6 + $0x2] sm:$0x1]
      %v1439 = vlaneseq
      %v1440 = vshrl.u32 %v1439, 7
      %v1441 = vsub.s32 0, %v1440
      %v1442 = vrot.slane %v1438, %v1441
      %v1451 = vunpack.c.l.b16 %v1430
      %v1452 = vunpack.c.l.b16 %v1431
      %v1453 = vunpack.c.l.b16 %v1432
      %v1454 = vunpack.c.l.b16 %v1433
      %v1455 = vunpack.c.l.b16 %v1434
      %v1456 = vunpack.c.l.b16 %v1435
      %v1457 = vunpack.c.l.b16 %v1436
      %v1458 = vunpack.c.l.b16 %v1437
      %v1459 = vpack.c.b16 %v1452, %v1451
      %v1460 = vpack.c.b16 %v1454, %v1453
      %v1461 = vpack.c.b16 %v1456, %v1455
      %v1462 = vpack.c.b16 %v1458, %v1457
      %v1468 = vsel %vm740, %v1428, 0
      %1470 = vmatprep.subr.bf16.mxu0 0
      %1471 = vmatpush1.bf16.msra.mxu0 %v1459
      %1472 = vmatprep.subr.bf16.mxu0 0
      %1473 = vmatpush1.bf16.msra.mxu0 %v1460
      %1474 = vmatprep.subr.bf16.mxu0 0
      %1475 = vmatpush1.bf16.msra.mxu0 %v1461
      %1476 = vmatprep.subr.bf16.mxu0 0
      %1477 = vmatpush1.bf16.msra.mxu0 %v1462
      %1478 = vmatprep.subr.bf16.mxu0 0
      %1479 = vmatpush1.bf16.msra.mxu0 0
      %1480 = vmatprep.subr.bf16.mxu0 0
      %1481 = vmatpush1.bf16.msra.mxu0 0
      %1482 = vmatprep.subr.bf16.mxu0 0
      %1483 = vmatpush1.bf16.msra.mxu0 0
      %1484 = vmatprep.subr.bf16.mxu0 0
      %1485 = vmatpush1.bf16.msra.mxu0 0
      %1486 = vmatprep.subr.bf16.mxu0 0
      %1487 = vmatpush1.bf16.msra.mxu0 0
      %1488 = vmatprep.subr.bf16.mxu0 0
      %1489 = vmatpush1.bf16.msra.mxu0 0
      %1490 = vmatprep.subr.bf16.mxu0 0
      %1491 = vmatpush1.bf16.msra.mxu0 0
      %1492 = vmatprep.subr.bf16.mxu0 0
      %1493 = vmatpush1.bf16.msra.mxu0 0
      %1494 = vmatprep.subr.bf16.mxu0 0
      %1495 = vmatpush1.bf16.msra.mxu0 0
      %1496 = vmatprep.subr.bf16.mxu0 0
      %1497 = vmatpush1.bf16.msra.mxu0 0
      %1498 = vmatprep.subr.bf16.mxu0 0
      %1499 = vmatpush1.bf16.msra.mxu0 0
      %1500 = vmatprep.subr.bf16.mxu0 0
      %1501 = vmatpush1.bf16.msra.mxu0 0
      %1502 = vmatprep.mubr.bf16.mxu0 0
      %1503 = vmatmul.mubr.bf16.gmra.mrb[0].mxu0 %v1468
      %v1504 = vpop.f32.mrb[0].mxu0
      %v1505 = vadd.f32 %v1442, %v1504
      %v1506 = vpop.f32.mrb[0].mxu0
      %v1507 = vpop.f32.mrb[0].mxu0
      %v1508 = vadd.f32 %v1442, %v1507
      %v1509 = vpop.f32.mrb[0].mxu0
      %1510 = vdwg.mxu0
      %v1511 = vadd.f32 %v1245, %v1505
      %v1512 = vadd.f32 %v1246, %v1508
      %v1513 = vpack.c.bf16 %v1512, %v1511
      %v1514 = vld [vmem:[%s7] sm:$0xf]
      %v1515 = vld [vmem:[%s7 + $0x4] sm:$0xf]
      %v1516 = vld [vmem:[%s7 + $0x8] sm:$0xf]
      %v1517 = vld [vmem:[%s7 + $0xc] sm:$0xf]
      %v1518 = vld [vmem:[%s7 + $0x10] sm:$0xf]
      %v1519 = vld [vmem:[%s7 + $0x14] sm:$0xf]
      %v1520 = vld [vmem:[%s7 + $0x18] sm:$0xf]
      %v1521 = vld [vmem:[%s7 + $0x1c] sm:$0xf]
      %v1522 = vld [vmem:[%s8] sm:$0x1]
      %v1524 = vlaneseq
      %v1525 = vshrl.u32 %v1524, 7
      %v1526 = vsub.s32 0, %v1525
      %v1527 = vrot.slane %v1522, %v1526
      %v1537 = vunpack.c.l.b16 %v1514
      %v1538 = vunpack.c.l.b16 %v1515
      %v1539 = vunpack.c.l.b16 %v1516
      %v1540 = vunpack.c.l.b16 %v1517
      %v1541 = vunpack.c.l.b16 %v1518
      %v1542 = vunpack.c.l.b16 %v1519
      %v1543 = vunpack.c.l.b16 %v1520
      %v1544 = vunpack.c.l.b16 %v1521
      %v1545 = vpack.c.b16 %v1538, %v1537
      %v1546 = vpack.c.b16 %v1540, %v1539
      %v1547 = vpack.c.b16 %v1542, %v1541
      %v1548 = vpack.c.b16 %v1544, %v1543
      %v1554 = vsel %vm740, %v1513, 0
      %1556 = vmatprep.subr.bf16.mxu0 0
      %1557 = vmatpush1.bf16.msra.mxu0 %v1545
      %1558 = vmatprep.subr.bf16.mxu0 0
      %1559 = vmatpush1.bf16.msra.mxu0 %v1546
      %1560 = vmatprep.subr.bf16.mxu0 0
      %1561 = vmatpush1.bf16.msra.mxu0 %v1547
      %1562 = vmatprep.subr.bf16.mxu0 0
      %1563 = vmatpush1.bf16.msra.mxu0 %v1548
      %1564 = vmatprep.subr.bf16.mxu0 0
      %1565 = vmatpush1.bf16.msra.mxu0 0
      %1566 = vmatprep.subr.bf16.mxu0 0
      %1567 = vmatpush1.bf16.msra.mxu0 0
      %1568 = vmatprep.subr.bf16.mxu0 0
      %1569 = vmatpush1.bf16.msra.mxu0 0
      %1570 = vmatprep.subr.bf16.mxu0 0
      %1571 = vmatpush1.bf16.msra.mxu0 0
      %1572 = vmatprep.subr.bf16.mxu0 0
      %1573 = vmatpush1.bf16.msra.mxu0 0
      %1574 = vmatprep.subr.bf16.mxu0 0
      %1575 = vmatpush1.bf16.msra.mxu0 0
      %1576 = vmatprep.subr.bf16.mxu0 0
      %1577 = vmatpush1.bf16.msra.mxu0 0
      %1578 = vmatprep.subr.bf16.mxu0 0
      %1579 = vmatpush1.bf16.msra.mxu0 0
      %1580 = vmatprep.subr.bf16.mxu0 0
      %1581 = vmatpush1.bf16.msra.mxu0 0
      %1582 = vmatprep.subr.bf16.mxu0 0
      %1583 = vmatpush1.bf16.msra.mxu0 0
      %1584 = vmatprep.subr.bf16.mxu0 0
      %1585 = vmatpush1.bf16.msra.mxu0 0
      %1586 = vmatprep.subr.bf16.mxu0 0
      %1587 = vmatpush1.bf16.msra.mxu0 0
      %1588 = vmatprep.mubr.bf16.mxu0 0
      %1589 = vmatmul.mubr.bf16.gmra.mrb[0].mxu0 %v1554
      %v1590 = vpop.f32.mrb[0].mxu0
      %v1591 = vadd.f32 %v1527, %v1590
      %v1592 = vpop.f32.mrb[0].mxu0
      %v1593 = vpop.f32.mrb[0].mxu0
      %v1594 = vadd.f32 %v1527, %v1593
      %v1595 = vpop.f32.mrb[0].mxu0
      %1596 = vdwg.mxu0
      %1597 = vst [vmem:[%s332] sm:$0xff] %v1591
      %1598 = vst [vmem:[%s332 + $0x8] sm:$0xff] %v1594
      %p1599 = scmp.lt.s32.totalorder %s20, 1
      %s1600 = scalar_select %p1599, %s20, 1
      %s1601 = smul.addr %s1600, 2
      %s1602 = smul.addr %s1601, 8
      %s1603 = scalar_lea.vmem %s9, %s1602
      // Predicated region
      $region57: #{multi_stage_forward.5} parent=55 // pred_check
        %p1604 = pneg %p232
      $region58: #{multi_stage_forward.5} parent=55 // pred_check_branch
        %1606 = sbr.rel (%p1604) target = $region60
      $region59: #{multi_stage_forward.5} parent=55 // pred_region
        _
      $region60: #{multi_stage_forward.5} parent=55 // pred_fallthru
        _
    $region56: #{multi_stage_forward.5} parent=5 // pred_fallthru
      _
    %p1607 = scmp.le.s32.totalorder 2, %s15
    // Predicated region
    $region61: #{multi_stage_forward.5} parent=5 // pred_check
      %p1608 = pneg %p1607
    $region62: #{multi_stage_forward.5} parent=5 // pred_check_branch
      %1610 = sbr.rel (%p1608) target = $region64
    $region63: #{multi_stage_forward.5} parent=5 // pred_region
      %s1611 = ssub.s32 %s15, 2
      // Predicated region
      $region65: #{multi_stage_forward.5} parent=63 // pred_check
        %p1612 = pneg %p238
      $region66: #{multi_stage_forward.5} parent=63 // pred_check_branch
        %1614 = sbr.rel (%p1612) target = $region68
      $region67: #{multi_stage_forward.5} parent=63 // pred_region
        %p1615 = scmp.lt.s32.totalorder %s21, 1
        %s1616 = scalar_select %p1615, %s21, 1
        %s1617 = smul.addr %s1616, 2
        %s1618 = smul.addr %s1617, 8
        %s1619 = scalar_lea.vmem %s9, %s1618
      $region68: #{multi_stage_forward.5} parent=63 // pred_fallthru
        _
    $region64: #{multi_stage_forward.5} parent=5 // pred_fallthru
      _
  $region6: #{multi_stage_forward.5} parent=0 // loop_footer
    %s19 = sadd.s32 1, %s15
  $region7: #{multi_stage_forward.5} parent=0 // loop_footer_branch
    %14 = sbr.rel target = $region3
  $region8: #{multi_stage_forward.5} parent=0 // loop_exit
    _

// kernel: multi_stage_forward.6
$region0: #{multi_stage_forward.6}
  #allocation0 [shape = 'u32[]', space=smem, size = 0x4, offset = 0x4, fixed_abs, tag = 'smem constant byte address 0x4 - core index']
  #allocation1 [shape = 'u32[144,128]{1,0:T(1,128)}', space=vmem, size = 0x12000, scoped, tag = 'internal scratch']
  %s0 = inlined_call_operand.vmem [shape: f32[2,16,6], index: 0, kind: input, shape index: {}]
  %s1 = inlined_call_operand.vmem [shape: f32[2,16,1], index: 1, kind: input, shape index: {}]
  %s2 = inlined_call_operand.vmem [shape: bf16[6,32], index: 2, kind: input, shape index: {}]
  %s3 = inlined_call_operand.vmem [shape: f32[1,32], index: 3, kind: input, shape index: {}]
  %s4 = inlined_call_operand.vmem [shape: bf16[3,96,32], index: 4, kind: input, shape index: {}]
  %s5 = inlined_call_operand.vmem [shape: f32[3,32], index: 5, kind: input, shape index: {}]
  %s6 = inlined_call_operand.vmem [shape: bf16[3,32,32], index: 6, kind: input, shape index: {}]
  %s7 = inlined_call_operand.vmem [shape: f32[3,32], index: 7, kind: input, shape index: {}]
  %s8 = inlined_call_operand.vmem [shape: bf16[32,128], index: 8, kind: input, shape index: {}]
  %s9 = inlined_call_operand.vmem [shape: f32[1,128], index: 9, kind: input, shape index: {}]
  %s10 = inlined_call_operand.vmem [shape: f32[2,16,128], index: 10, kind: output, shape index: {}]
  %s11 = sld [smem:[#allocation0]]
  $region73: #{multi_stage_forward.6} parent=0
    _
  %s13 = ssub.s32 1, %s11
  %s14 = scalar_select 0, %s13, %s11
  loop: start=0, step=1, limit=4
  $region2: #{multi_stage_forward.6} parent=0 // loop_pre_header
    _
  $region3: #{multi_stage_forward.6} parent=0 // loop_header
    %s16 = sphi 0, %s20
    %p17 = scmp.ge.s32.totalorder %s16, 4
    %s26 = sphi 0, %s28
    %s29 = sphi 0, %s26
    %s30 = sphi 0, %s29
    %s46 = sphi 0, %s30
    %s52 = sphi 0, %s54
    %s55 = sphi 0, %s52
    %s56 = sphi 0, %s55
    %s72 = sphi 0, %s56
    %s76 = sphi 0, %s76
    %s78 = sphi 0, %s76
    %s79 = sphi 0, %s78
    %s93 = sphi 0, %s79
    %s97 = sphi 0, %s97
    %s99 = sphi 0, %s97
    %s100 = sphi 0, %s99
    %s114 = sphi 0, %s100
    %s118 = sphi 0, %s118
    %s120 = sphi 0, %s118
    %s121 = sphi 0, %s120
    %s135 = sphi 0, %s121
    %s139 = sphi 0, %s139
    %s141 = sphi 0, %s139
    %s142 = sphi 0, %s141
    %s156 = sphi 0, %s142
    %s160 = sphi 0, %s160
    %s162 = sphi 0, %s160
    %s163 = sphi 0, %s162
    %s177 = sphi 0, %s163
    %s181 = sphi 0, %s181
    %s183 = sphi 0, %s181
    %s184 = sphi 0, %s183
    %s198 = sphi 0, %s184
    %s202 = sphi 0, %s202
    %s204 = sphi 0, %s202
    %s205 = sphi 0, %s204
    %s219 = sphi 0, %s205
    %s223 = sphi 0, %s223
    %s225 = sphi 0, %s223
    %s226 = sphi 0, %s225
    %s240 = sphi 0, %s226
    %s246 = sphi 0, %s248
    %s249 = sphi 0, %s246
    %s250 = sphi 0, %s249
    %s266 = sphi 0, %s250
  $region4: #{multi_stage_forward.6} parent=0 // loop_header_branch
    %19 = sbr.rel (%p17) target = $region8
  $region5: #{multi_stage_forward.6} parent=0 // loop_body
    %s21 = ssub.s32 %s16, 1
    %s22 = ssub.s32 %s16, 2
    %s23 = sadd.s32 %s16, 1
    %s24 = ssub.s32 %s16, %s23
    %p25 = scmp.eq.s32.totalorder %s24, 0
    %s27 = sadd.s32 %s26, 1
    %s28 = scalar_select %p25, %s26, %s27
    %p31 = pneg %p25
    %p32 = scmp.eq.s32.totalorder %s16, 1
    %p33 = por %p31, %p32
    %p34 = scmp.ne.s32.totalorder %s26, %s29
    %p35 = scmp.eq.s32.totalorder %s16, 0
    %p36 = por %p34, %p35
    %p37 = scmp.ne.s32.totalorder %s26, %s29
    %p38 = scmp.eq.s32.totalorder %s21, 1
    %p39 = por %p37, %p38
    %p40 = scmp.ne.s32.totalorder %s29, %s30
    %p41 = scmp.eq.s32.totalorder %s21, 0
    %p42 = por %p40, %p41
    %p43 = scmp.ne.s32.totalorder %s29, %s30
    %p44 = scmp.eq.s32.totalorder %s22, 1
    %p45 = por %p43, %p44
    %p47 = scmp.ne.s32.totalorder %s30, %s46
    %p48 = scmp.eq.s32.totalorder %s22, 0
    %p49 = por %p47, %p48
    %s50 = ssub.s32 %s16, %s23
    %p51 = scmp.eq.s32.totalorder %s50, 0
    %s53 = sadd.s32 %s52, 1
    %s54 = scalar_select %p51, %s52, %s53
    %p57 = pneg %p51
    %p58 = scmp.eq.s32.totalorder %s16, 1
    %p59 = por %p57, %p58
    %p60 = scmp.ne.s32.totalorder %s52, %s55
    %p61 = scmp.eq.s32.totalorder %s16, 0
    %p62 = por %p60, %p61
    %p63 = scmp.ne.s32.totalorder %s52, %s55
    %p64 = scmp.eq.s32.totalorder %s21, 1
    %p65 = por %p63, %p64
    %p66 = scmp.ne.s32.totalorder %s55, %s56
    %p67 = scmp.eq.s32.totalorder %s21, 0
    %p68 = por %p66, %p67
    %p69 = scmp.ne.s32.totalorder %s55, %s56
    %p70 = scmp.eq.s32.totalorder %s22, 1
    %p71 = por %p69, %p70
    %p73 = scmp.ne.s32.totalorder %s56, %s72
    %p74 = scmp.eq.s32.totalorder %s22, 0
    %p75 = por %p73, %p74
    %s77 = sadd.s32 %s76, 1
    %p80 = scmp.eq.s32.totalorder %s16, 1
    %p81 = scmp.ne.s32.totalorder %s76, %s78
    %p82 = scmp.eq.s32.totalorder %s16, 0
    %p83 = por %p81, %p82
    %p84 = scmp.ne.s32.totalorder %s76, %s78
    %p85 = scmp.eq.s32.totalorder %s21, 1
    %p86 = por %p84, %p85
    %p87 = scmp.ne.s32.totalorder %s78, %s79
    %p88 = scmp.eq.s32.totalorder %s21, 0
    %p89 = por %p87, %p88
    %p90 = scmp.ne.s32.totalorder %s78, %s79
    %p91 = scmp.eq.s32.totalorder %s22, 1
    %p92 = por %p90, %p91
    %p94 = scmp.ne.s32.totalorder %s79, %s93
    %p95 = scmp.eq.s32.totalorder %s22, 0
    %p96 = por %p94, %p95
    %s98 = sadd.s32 %s97, 1
    %p101 = scmp.eq.s32.totalorder %s16, 1
    %p102 = scmp.ne.s32.totalorder %s97, %s99
    %p103 = scmp.eq.s32.totalorder %s16, 0
    %p104 = por %p102, %p103
    %p105 = scmp.ne.s32.totalorder %s97, %s99
    %p106 = scmp.eq.s32.totalorder %s21, 1
    %p107 = por %p105, %p106
    %p108 = scmp.ne.s32.totalorder %s99, %s100
    %p109 = scmp.eq.s32.totalorder %s21, 0
    %p110 = por %p108, %p109
    %p111 = scmp.ne.s32.totalorder %s99, %s100
    %p112 = scmp.eq.s32.totalorder %s22, 1
    %p113 = por %p111, %p112
    %p115 = scmp.ne.s32.totalorder %s100, %s114
    %p116 = scmp.eq.s32.totalorder %s22, 0
    %p117 = por %p115, %p116
    %s119 = sadd.s32 %s118, 1
    %p122 = scmp.eq.s32.totalorder %s16, 1
    %p123 = scmp.ne.s32.totalorder %s118, %s120
    %p124 = scmp.eq.s32.totalorder %s16, 0
    %p125 = por %p123, %p124
    %p126 = scmp.ne.s32.totalorder %s118, %s120
    %p127 = scmp.eq.s32.totalorder %s21, 1
    %p128 = por %p126, %p127
    %p129 = scmp.ne.s32.totalorder %s120, %s121
    %p130 = scmp.eq.s32.totalorder %s21, 0
    %p131 = por %p129, %p130
    %p132 = scmp.ne.s32.totalorder %s120, %s121
    %p133 = scmp.eq.s32.totalorder %s22, 1
    %p134 = por %p132, %p133
    %p136 = scmp.ne.s32.totalorder %s121, %s135
    %p137 = scmp.eq.s32.totalorder %s22, 0
    %p138 = por %p136, %p137
    %s140 = sadd.s32 %s139, 1
    %p143 = scmp.eq.s32.totalorder %s16, 1
    %p144 = scmp.ne.s32.totalorder %s139, %s141
    %p145 = scmp.eq.s32.totalorder %s16, 0
    %p146 = por %p144, %p145
    %p147 = scmp.ne.s32.totalorder %s139, %s141
    %p148 = scmp.eq.s32.totalorder %s21, 1
    %p149 = por %p147, %p148
    %p150 = scmp.ne.s32.totalorder %s141, %s142
    %p151 = scmp.eq.s32.totalorder %s21, 0
    %p152 = por %p150, %p151
    %p153 = scmp.ne.s32.totalorder %s141, %s142
    %p154 = scmp.eq.s32.totalorder %s22, 1
    %p155 = por %p153, %p154
    %p157 = scmp.ne.s32.totalorder %s142, %s156
    %p158 = scmp.eq.s32.totalorder %s22, 0
    %p159 = por %p157, %p158
    %s161 = sadd.s32 %s160, 1
    %p164 = scmp.eq.s32.totalorder %s16, 1
    %p165 = scmp.ne.s32.totalorder %s160, %s162
    %p166 = scmp.eq.s32.totalorder %s16, 0
    %p167 = por %p165, %p166
    %p168 = scmp.ne.s32.totalorder %s160, %s162
    %p169 = scmp.eq.s32.totalorder %s21, 1
    %p170 = por %p168, %p169
    %p171 = scmp.ne.s32.totalorder %s162, %s163
    %p172 = scmp.eq.s32.totalorder %s21, 0
    %p173 = por %p171, %p172
    %p174 = scmp.ne.s32.totalorder %s162, %s163
    %p175 = scmp.eq.s32.totalorder %s22, 1
    %p176 = por %p174, %p175
    %p178 = scmp.ne.s32.totalorder %s163, %s177
    %p179 = scmp.eq.s32.totalorder %s22, 0
    %p180 = por %p178, %p179
    %s182 = sadd.s32 %s181, 1
    %p185 = scmp.eq.s32.totalorder %s16, 1
    %p186 = scmp.ne.s32.totalorder %s181, %s183
    %p187 = scmp.eq.s32.totalorder %s16, 0
    %p188 = por %p186, %p187
    %p189 = scmp.ne.s32.totalorder %s181, %s183
    %p190 = scmp.eq.s32.totalorder %s21, 1
    %p191 = por %p189, %p190
    %p192 = scmp.ne.s32.totalorder %s183, %s184
    %p193 = scmp.eq.s32.totalorder %s21, 0
    %p194 = por %p192, %p193
    %p195 = scmp.ne.s32.totalorder %s183, %s184
    %p196 = scmp.eq.s32.totalorder %s22, 1
    %p197 = por %p195, %p196
    %p199 = scmp.ne.s32.totalorder %s184, %s198
    %p200 = scmp.eq.s32.totalorder %s22, 0
    %p201 = por %p199, %p200
    %s203 = sadd.s32 %s202, 1
    %p206 = scmp.eq.s32.totalorder %s16, 1
    %p207 = scmp.ne.s32.totalorder %s202, %s204
    %p208 = scmp.eq.s32.totalorder %s16, 0
    %p209 = por %p207, %p208
    %p210 = scmp.ne.s32.totalorder %s202, %s204
    %p211 = scmp.eq.s32.totalorder %s21, 1
    %p212 = por %p210, %p211
    %p213 = scmp.ne.s32.totalorder %s204, %s205
    %p214 = scmp.eq.s32.totalorder %s21, 0
    %p215 = por %p213, %p214
    %p216 = scmp.ne.s32.totalorder %s204, %s205
    %p217 = scmp.eq.s32.totalorder %s22, 1
    %p218 = por %p216, %p217
    %p220 = scmp.ne.s32.totalorder %s205, %s219
    %p221 = scmp.eq.s32.totalorder %s22, 0
    %p222 = por %p220, %p221
    %s224 = sadd.s32 %s223, 1
    %p227 = scmp.eq.s32.totalorder %s16, 1
    %p228 = scmp.ne.s32.totalorder %s223, %s225
    %p229 = scmp.eq.s32.totalorder %s16, 0
    %p230 = por %p228, %p229
    %p231 = scmp.ne.s32.totalorder %s223, %s225
    %p232 = scmp.eq.s32.totalorder %s21, 1
    %p233 = por %p231, %p232
    %p234 = scmp.ne.s32.totalorder %s225, %s226
    %p235 = scmp.eq.s32.totalorder %s21, 0
    %p236 = por %p234, %p235
    %p237 = scmp.ne.s32.totalorder %s225, %s226
    %p238 = scmp.eq.s32.totalorder %s22, 1
    %p239 = por %p237, %p238
    %p241 = scmp.ne.s32.totalorder %s226, %s240
    %p242 = scmp.eq.s32.totalorder %s22, 0
    %p243 = por %p241, %p242
    %s244 = ssub.s32 %s16, %s23
    %p245 = scmp.eq.s32.totalorder %s244, 0
    %s247 = sadd.s32 %s246, 1
    %s248 = scalar_select %p245, %s246, %s247
    %p251 = pneg %p245
    %p252 = scmp.eq.s32.totalorder %s16, 1
    %p253 = por %p251, %p252
    %p254 = scmp.ne.s32.totalorder %s246, %s249
    %p255 = scmp.eq.s32.totalorder %s16, 0
    %p256 = por %p254, %p255
    %p257 = scmp.ne.s32.totalorder %s246, %s249
    %p258 = scmp.eq.s32.totalorder %s21, 1
    %p259 = por %p257, %p258
    %p260 = scmp.ne.s32.totalorder %s249, %s250
    %p261 = scmp.eq.s32.totalorder %s21, 0
    %p262 = por %p260, %p261
    %p263 = scmp.ne.s32.totalorder %s249, %s250
    %p264 = scmp.eq.s32.totalorder %s22, 1
    %p265 = por %p263, %p264
    %p267 = scmp.ne.s32.totalorder %s250, %s266
    %p268 = scmp.eq.s32.totalorder %s22, 0
    %p269 = por %p267, %p268
    %p270 = scmp.le.s32.totalorder 1, %s16
    %p271 = scmp.lt.s32.totalorder %s16, 3
    %p272 = pnand %p270, %p271
    %p273 = pneg %p272
    // Predicated region
    $region9: #{multi_stage_forward.6} parent=5 // pred_check
      _
    $region10: #{multi_stage_forward.6} parent=5 // pred_check_branch
      %275 = sbr.rel (%p272) target = $region12
    $region11: #{multi_stage_forward.6} parent=5 // pred_region
      %s276 = ssub.s32 %s16, 1
      // Predicated region
      $region13: #{multi_stage_forward.6} parent=11 // pred_check
        %p277 = pneg %p89
      $region14: #{multi_stage_forward.6} parent=11 // pred_check_branch
        %279 = sbr.rel (%p277) target = $region16
      $region15: #{multi_stage_forward.6} parent=11 // pred_region
        _
      $region16: #{multi_stage_forward.6} parent=11 // pred_fallthru
        _
      // Predicated region
      $region17: #{multi_stage_forward.6} parent=11 // pred_check
        %p280 = pneg %p110
      $region18: #{multi_stage_forward.6} parent=11 // pred_check_branch
        %282 = sbr.rel (%p280) target = $region20
      $region19: #{multi_stage_forward.6} parent=11 // pred_region
        _
      $region20: #{multi_stage_forward.6} parent=11 // pred_fallthru
        _
      // Predicated region
      $region21: #{multi_stage_forward.6} parent=11 // pred_check
        %p283 = pneg %p131
      $region22: #{multi_stage_forward.6} parent=11 // pred_check_branch
        %285 = sbr.rel (%p283) target = $region24
      $region23: #{multi_stage_forward.6} parent=11 // pred_region
        _
      $region24: #{multi_stage_forward.6} parent=11 // pred_fallthru
        _
      // Predicated region
      $region25: #{multi_stage_forward.6} parent=11 // pred_check
        %p286 = pneg %p152
      $region26: #{multi_stage_forward.6} parent=11 // pred_check_branch
        %288 = sbr.rel (%p286) target = $region28
      $region27: #{multi_stage_forward.6} parent=11 // pred_region
        _
      $region28: #{multi_stage_forward.6} parent=11 // pred_fallthru
        _
      // Predicated region
      $region29: #{multi_stage_forward.6} parent=11 // pred_check
        %p289 = pneg %p173
      $region30: #{multi_stage_forward.6} parent=11 // pred_check_branch
        %291 = sbr.rel (%p289) target = $region32
      $region31: #{multi_stage_forward.6} parent=11 // pred_region
        _
      $region32: #{multi_stage_forward.6} parent=11 // pred_fallthru
        _
      // Predicated region
      $region33: #{multi_stage_forward.6} parent=11 // pred_check
        %p292 = pneg %p194
      $region34: #{multi_stage_forward.6} parent=11 // pred_check_branch
        %294 = sbr.rel (%p292) target = $region36
      $region35: #{multi_stage_forward.6} parent=11 // pred_region
        _
      $region36: #{multi_stage_forward.6} parent=11 // pred_fallthru
        _
      // Predicated region
      $region37: #{multi_stage_forward.6} parent=11 // pred_check
        %p295 = pneg %p215
      $region38: #{multi_stage_forward.6} parent=11 // pred_check_branch
        %297 = sbr.rel (%p295) target = $region40
      $region39: #{multi_stage_forward.6} parent=11 // pred_region
        _
      $region40: #{multi_stage_forward.6} parent=11 // pred_fallthru
        _
      // Predicated region
      $region41: #{multi_stage_forward.6} parent=11 // pred_check
        %p298 = pneg %p236
      $region42: #{multi_stage_forward.6} parent=11 // pred_check_branch
        %300 = sbr.rel (%p298) target = $region44
      $region43: #{multi_stage_forward.6} parent=11 // pred_region
        _
      $region44: #{multi_stage_forward.6} parent=11 // pred_fallthru
        _
    $region12: #{multi_stage_forward.6} parent=5 // pred_fallthru
      _
    %p301 = scmp.lt.s32.totalorder %s16, 2
    // Predicated region
    $region45: #{multi_stage_forward.6} parent=5 // pred_check
      %p302 = pneg %p301
    $region46: #{multi_stage_forward.6} parent=5 // pred_check_branch
      %304 = sbr.rel (%p302) target = $region48
    $region47: #{multi_stage_forward.6} parent=5 // pred_region
      // Predicated region
      $region49: #{multi_stage_forward.6} parent=47 // pred_check
        %p305 = pneg %p36
      $region50: #{multi_stage_forward.6} parent=47 // pred_check_branch
        %307 = sbr.rel (%p305) target = $region52
      $region51: #{multi_stage_forward.6} parent=47 // pred_region
        %p308 = scmp.lt.s32.totalorder %s16, 1
        %s309 = scalar_select %p308, %s16, 1
        %s310 = smul.addr %s309, 2
        %s311 = smul.addr %s310, 8
        %s312 = scalar_lea.vmem %s0, %s311
      $region52: #{multi_stage_forward.6} parent=47 // pred_fallthru
        _
      // Predicated region
      $region53: #{multi_stage_forward.6} parent=47 // pred_check
        %p313 = pneg %p62
      $region54: #{multi_stage_forward.6} parent=47 // pred_check_branch
        %315 = sbr.rel (%p313) target = $region56
      $region55: #{multi_stage_forward.6} parent=47 // pred_region
        %p316 = scmp.lt.s32.totalorder %s16, 1
        %s317 = scalar_select %p316, %s16, 1
        %s318 = smul.addr %s317, 2
        %s319 = smul.addr %s318, 8
        %s320 = scalar_lea.vmem %s1, %s319
      $region56: #{multi_stage_forward.6} parent=47 // pred_fallthru
        _
    $region48: #{multi_stage_forward.6} parent=5 // pred_fallthru
      _
    %p321 = scmp.le.s32.totalorder 1, %s16
    %p322 = scmp.lt.s32.totalorder %s16, 3
    %p323 = pnand %p321, %p322
    %p324 = pneg %p323
    // Predicated region
    $region57: #{multi_stage_forward.6} parent=5 // pred_check
      _
    $region58: #{multi_stage_forward.6} parent=5 // pred_check_branch
      %326 = sbr.rel (%p323) target = $region60
    $region59: #{multi_stage_forward.6} parent=5 // pred_region
      %s327 = ssub.s32 %s16, 1
      %p328 = scmp.lt.s32.totalorder %s21, 1
      %s329 = scalar_select %p328, %s21, 1
      %s330 = smul.addr %s329, 2
      %s331 = smul.addr %s330, 8
      %s332 = scalar_lea.vmem %s0, %s331
      %p333 = pneg %p42
      %p334 = pneg %p39
      %p335 = scmp.lt.s32.totalorder %s21, 1
      %s336 = scalar_select %p335, %s21, 1
      %s337 = smul.addr %s336, 2
      %s338 = smul.addr %s337, 8
      %s339 = scalar_lea.vmem %s1, %s338
      %p340 = pneg %p68
      %p341 = pneg %p65
      %p342 = pneg %p89
      %p343 = pneg %p86
      %p344 = pneg %p110
      %p345 = pneg %p107
      %p346 = pneg %p131
      %p347 = pneg %p128
      %p348 = pneg %p152
      %p349 = pneg %p149
      %p350 = pneg %p173
      %p351 = pneg %p170
      %p352 = pneg %p194
      %p353 = pneg %p191
      %p354 = pneg %p215
      %p355 = pneg %p212
      %p356 = pneg %p236
      %p357 = pneg %p233
      %p358 = pneg %p262
      %p359 = pneg %p259
      %p360 = scmp.lt.s32.totalorder %s21, 1
      %s361 = scalar_select %p360, %s21, 1
      %s362 = smul.addr %s361, 2
      %s363 = smul.addr %s362, 8
      %s364 = scalar_lea.vmem %s10, %s363
      %p365 = scmp.lt.s32.totalorder %s21, 1
      %s366 = scalar_select %p365, %s21, 1
      %s367 = smul.addr %s366, 2
      %s368 = smul.addr %s367, 8
      %s369 = scalar_lea.vmem %s0, %s368
      %p370 = scmp.lt.s32.totalorder %s21, 1
      %s371 = scalar_select %p370, %s21, 1
      %s372 = smul.addr %s371, 2
      %s373 = smul.addr %s372, 8
      %s374 = scalar_lea.vmem %s1, %s373
      %p375 = scmp.lt.s32.totalorder %s21, 1
      %s376 = scalar_select %p375, %s21, 1
      %s377 = smul.addr %s376, 2
      %s378 = smul.addr %s377, 8
      %s379 = scalar_lea.vmem %s10, %s378
      %v381 = vld [vmem:[%s369] sm:$0xff]
      %v382 = vld [vmem:[%s369 + $0x8] sm:$0xff]
      %v383 = vld [vmem:[%s374] sm:$0xff]
      %v384 = vld [vmem:[%s374 + $0x8] sm:$0xff]
      %vm385 = vcmask 48128
      %v386 = vsel %vm385, %v381, -inf
      %387 = vmax.xlane.f32.xlu0 %v386
      %v388 = vpop.xlane.xlu0 %387
      %v389 = vsel %vm385, %v382, -inf
      %390 = vmax.xlane.f32.xlu0 %v389
      %v391 = vpop.xlane.xlu0 %390
      %v392 = vsub.f32 %v381, %v388
      %v393 = vsub.f32 %v382, %v391
      %v394 = vmul.f32 %v392, 1.442695
      %v395 = vpow.pop %v394
      %v396 = vmul.f32 %v393, 1.442695
      %v397 = vpow.pop %v396
      %v398 = vsel %vm385, %v395, 0.0
      %399 = vadd.xlane.f32.xlu0 %v398
      %v400 = vpop.xlane.xlu0 %399
      %v401 = vsel %vm385, %v397, 0.0
      %402 = vadd.xlane.f32.xlu0 %v401
      %v403 = vpop.xlane.xlu0 %402
      %v404 = vrcp.pop %v400
      %v405 = vmul.f32 %v395, %v404
      %v406 = vrcp.pop %v403
      %v407 = vmul.f32 %v397, %v406
      %409 = vset.pattern.permute.xlu0 0
      %410 = vperm.xlu0 %409, %v383
      %v411 = vpop.permute.xlu0 %410
      %414 = vset.pattern.permute.xlu0 0
      %415 = vperm.xlu0 %414, %v384
      %v416 = vpop.permute.xlu0 %415
      %v418 = vmul.f32 %v405, %v411
      %v419 = vmul.f32 %v407, %v416
      %v420 = vpack.c.bf16 %v419, %v418
      %v421 = vld [vmem:[%s2] sm:$0x7]
      %v422 = vld [vmem:[%s3] sm:$0x1]
      %v424 = vlaneseq
      %v425 = vshrl.u32 %v424, 7
      %v426 = vsub.s32 0, %v425
      %v427 = vrot.slane %v422, %v426
      %v430 = vsel %vm385, %v420, 0
      %vm432 = vcmask 1042432
      %v434 = vsel %vm432, %v421, 0
      %436 = vmatprep.subr.bf16.mxu0 0
      %437 = vmatpush1.bf16.msra.mxu0 %v434
      %438 = vmatprep.subr.bf16.mxu0 0
      %439 = vmatpush1.bf16.msra.mxu0 0
      %440 = vmatprep.subr.bf16.mxu0 0
      %441 = vmatpush1.bf16.msra.mxu0 0
      %442 = vmatprep.subr.bf16.mxu0 0
      %443 = vmatpush1.bf16.msra.mxu0 0
      %444 = vmatprep.subr.bf16.mxu0 0
      %445 = vmatpush1.bf16.msra.mxu0 0
      %446 = vmatprep.subr.bf16.mxu0 0
      %447 = vmatpush1.bf16.msra.mxu0 0
      %448 = vmatprep.subr.bf16.mxu0 0
      %449 = vmatpush1.bf16.msra.mxu0 0
      %450 = vmatprep.subr.bf16.mxu0 0
      %451 = vmatpush1.bf16.msra.mxu0 0
      %452 = vmatprep.subr.bf16.mxu0 0
      %453 = vmatpush1.bf16.msra.mxu0 0
      %454 = vmatprep.subr.bf16.mxu0 0
      %455 = vmatpush1.bf16.msra.mxu0 0
      %456 = vmatprep.subr.bf16.mxu0 0
      %457 = vmatpush1.bf16.msra.mxu0 0
      %458 = vmatprep.subr.bf16.mxu0 0
      %459 = vmatpush1.bf16.msra.mxu0 0
      %460 = vmatprep.subr.bf16.mxu0 0
      %461 = vmatpush1.bf16.msra.mxu0 0
      %462 = vmatprep.subr.bf16.mxu0 0
      %463 = vmatpush1.bf16.msra.mxu0 0
      %464 = vmatprep.subr.bf16.mxu0 0
      %465 = vmatpush1.bf16.msra.mxu0 0
      %466 = vmatprep.subr.bf16.mxu0 0
      %467 = vmatpush1.bf16.msra.mxu0 0
      %468 = vmatprep.mubr.bf16.mxu0 0
      %469 = vmatmul.mubr.bf16.gmra.mrb[0].mxu0 %v430
      %v470 = vpop.f32.mrb[0].mxu0
      %v471 = vadd.f32 %v427, %v470
      %v472 = vpop.f32.mrb[0].mxu0
      %v473 = vpop.f32.mrb[0].mxu0
      %v474 = vadd.f32 %v427, %v473
      %v475 = vpop.f32.mrb[0].mxu0
      %476 = vdwg.mxu0
      %v477 = vlaneseq
      %v478 = vshrl.u32 %v477, 7
      %v479 = vadd.s32 %v478, 8
      %vm480 = vcmp.ge.s32.totalorder %v478, 1
      %vm481 = vcmp.ge.s32.totalorder %v479, 1
      %v482 = vsel %vm480, 1, 0
      %v483 = vsel %vm481, 1, 0
      %v484 = vcvt.s32.f32 %v482
      %v485 = vcvt.s32.f32 %v483
      %vm486 = vcmp.lt.s32.totalorder %v478, 15
      %vm487 = vcmp.lt.s32.totalorder %v479, 15
      %v488 = vsel %vm486, 1, 0
      %v489 = vsel %vm487, 1, 0
      %v490 = vcvt.s32.f32 %v488
      %v491 = vcvt.s32.f32 %v489
      %v492 = vrot.slane %v471, 7
      %v493 = vrot.slane %v474, 7
      %vm494 = vcmp.lt.s32.totalorder %v478, 1
      %v495 = vsel %vm494, %v492, %v493
      %v496 = vsel %vm494, %v493, %v492
      %v497 = vmul.f32 %v496, %v484
      %v498 = vmul.f32 %v495, %v485
      %v499 = vrot.slane %v471, 1
      %v500 = vrot.slane %v474, 1
      %vm501 = vcmp.lt.s32.totalorder %v478, 7
      %v502 = vsel %vm501, %v499, %v500
      %v503 = vsel %vm501, %v500, %v499
      %v504 = vmul.f32 %v502, %v490
      %v505 = vmul.f32 %v503, %v491
      %508 = vrot.lane.b32.xlu0 %v471, 32
      %v509 = vpop.permute.xlu0 %508
      %510 = vrot.lane.b32.xlu0 %v474, 32
      %v511 = vpop.permute.xlu0 %510
      %516 = vrot.lane.b32.xlu0 %v504, 64
      %v517 = vpop.permute.xlu0 %516
      %518 = vrot.lane.b32.xlu0 %v505, 64
      %v519 = vpop.permute.xlu0 %518
      %vm522 = vcmask 261120
      %v523 = vsel %vm522, %v497, %v509
      %v524 = vsel %vm522, %v498, %v511
      %vm525 = vcmask 523264
      %v526 = vsel %vm525, %v523, %v517
      %v527 = vsel %vm525, %v524, %v519
      %v528 = vpack.c.bf16 %v527, %v526
      %v529 = vld [vmem:[%s4] sm:$0xf]
      %v530 = vld [vmem:[%s4 + $0x4] sm:$0xf]
      %v531 = vld [vmem:[%s4 + $0x8] sm:$0xf]
      %v532 = vld [vmem:[%s4 + $0xc] sm:$0xf]
      %v533 = vld [vmem:[%s4 + $0x10] sm:$0xf]
      %v534 = vld [vmem:[%s4 + $0x14] sm:$0xf]
      %v535 = vld [vmem:[%s4 + $0x18] sm:$0xf]
      %v536 = vld [vmem:[%s4 + $0x1c] sm:$0xf]
      %v537 = vld [vmem:[%s4 + $0x20] sm:$0xf]
      %v538 = vld [vmem:[%s4 + $0x24] sm:$0xf]
      %v539 = vld [vmem:[%s4 + $0x28] sm:$0xf]
      %v540 = vld [vmem:[%s4 + $0x2c] sm:$0xf]
      %v541 = vld [vmem:[%s5] sm:$0x1]
      %v542 = vlaneseq
      %v543 = vshrl.u32 %v542, 7
      %v544 = vsub.s32 0, %v543
      %v545 = vrot.slane %v541, %v544
      %v558 = vunpack.c.l.b16 %v529
      %v559 = vunpack.c.l.b16 %v530
      %v560 = vunpack.c.l.b16 %v531
      %v561 = vunpack.c.l.b16 %v532
      %v562 = vunpack.c.l.b16 %v533
      %v563 = vunpack.c.l.b16 %v534
      %v564 = vunpack.c.l.b16 %v535
      %v565 = vunpack.c.l.b16 %v536
      %v566 = vunpack.c.l.b16 %v537
      %v567 = vunpack.c.l.b16 %v538
      %v568 = vunpack.c.l.b16 %v539
      %v569 = vunpack.c.l.b16 %v540
      %v570 = vpack.c.b16 %v559, %v558
      %v571 = vpack.c.b16 %v561, %v560
      %v572 = vpack.c.b16 %v563, %v562
      %v573 = vpack.c.b16 %v565, %v564
      %v574 = vpack.c.b16 %v567, %v566
      %v575 = vpack.c.b16 %v569, %v568
      %vm582 = vcmask 785408
      %v584 = vsel %vm582, %v528, 0
      %586 = vmatprep.subr.bf16.mxu0 0
      %587 = vmatpush1.bf16.msra.mxu0 %v570
      %588 = vmatprep.subr.bf16.mxu0 0
      %589 = vmatpush1.bf16.msra.mxu0 %v571
      %590 = vmatprep.subr.bf16.mxu0 0
      %591 = vmatpush1.bf16.msra.mxu0 %v572
      %592 = vmatprep.subr.bf16.mxu0 0
      %593 = vmatpush1.bf16.msra.mxu0 %v573
      %594 = vmatprep.subr.bf16.mxu0 0
      %595 = vmatpush1.bf16.msra.mxu0 %v574
      %596 = vmatprep.subr.bf16.mxu0 0
      %597 = vmatpush1.bf16.msra.mxu0 %v575
      %598 = vmatprep.subr.bf16.mxu0 0
      %599 = vmatpush1.bf16.msra.mxu0 0
      %600 = vmatprep.subr.bf16.mxu0 0
      %601 = vmatpush1.bf16.msra.mxu0 0
      %602 = vmatprep.subr.bf16.mxu0 0
      %603 = vmatpush1.bf16.msra.mxu0 0
      %604 = vmatprep.subr.bf16.mxu0 0
      %605 = vmatpush1.bf16.msra.mxu0 0
      %606 = vmatprep.subr.bf16.mxu0 0
      %607 = vmatpush1.bf16.msra.mxu0 0
      %608 = vmatprep.subr.bf16.mxu0 0
      %609 = vmatpush1.bf16.msra.mxu0 0
      %610 = vmatprep.subr.bf16.mxu0 0
      %611 = vmatpush1.bf16.msra.mxu0 0
      %612 = vmatprep.subr.bf16.mxu0 0
      %613 = vmatpush1.bf16.msra.mxu0 0
      %614 = vmatprep.subr.bf16.mxu0 0
      %615 = vmatpush1.bf16.msra.mxu0 0
      %616 = vmatprep.subr.bf16.mxu0 0
      %617 = vmatpush1.bf16.msra.mxu0 0
      %618 = vmatprep.mubr.bf16.mxu0 0
      %619 = vmatmul.mubr.bf16.gmra.mrb[0].mxu0 %v584
      %v620 = vpop.f32.mrb[0].mxu0
      %v621 = vadd.f32 %v545, %v620
      %v622 = vpop.f32.mrb[0].mxu0
      %v623 = vpop.f32.mrb[0].mxu0
      %v624 = vadd.f32 %v545, %v623
      %v625 = vpop.f32.mrb[0].mxu0
      %626 = vdwg.mxu0
      %v627 = vmax.f32 %v621, 0.0
      %v628 = vmax.f32 %v624, 0.0
      %v629 = vpack.c.bf16 %v628, %v627
      %v630 = vld [vmem:[%s6] sm:$0xf]
      %v631 = vld [vmem:[%s6 + $0x4] sm:$0xf]
      %v632 = vld [vmem:[%s6 + $0x8] sm:$0xf]
      %v633 = vld [vmem:[%s6 + $0xc] sm:$0xf]
      %v634 = vld [vmem:[%s7] sm:$0x1]
      %v635 = vlaneseq
      %v636 = vshrl.u32 %v635, 7
      %v637 = vsub.s32 0, %v636
      %v638 = vrot.slane %v634, %v637
      %v643 = vunpack.c.l.b16 %v630
      %v644 = vunpack.c.l.b16 %v631
      %v645 = vunpack.c.l.b16 %v632
      %v646 = vunpack.c.l.b16 %v633
      %v647 = vpack.c.b16 %v644, %v643
      %v648 = vpack.c.b16 %v646, %v645
      %v652 = vsel %vm522, %v629, 0
      %654 = vmatprep.subr.bf16.mxu0 0
      %655 = vmatpush1.bf16.msra.mxu0 %v647
      %656 = vmatprep.subr.bf16.mxu0 0
      %657 = vmatpush1.bf16.msra.mxu0 %v648
      %658 = vmatprep.subr.bf16.mxu0 0
      %659 = vmatpush1.bf16.msra.mxu0 0
      %660 = vmatprep.subr.bf16.mxu0 0
      %661 = vmatpush1.bf16.msra.mxu0 0
      %662 = vmatprep.subr.bf16.mxu0 0
      %663 = vmatpush1.bf16.msra.mxu0 0
      %664 = vmatprep.subr.bf16.mxu0 0
      %665 = vmatpush1.bf16.msra.mxu0 0
      %666 = vmatprep.subr.bf16.mxu0 0
      %667 = vmatpush1.bf16.msra.mxu0 0
      %668 = vmatprep.subr.bf16.mxu0 0
      %669 = vmatpush1.bf16.msra.mxu0 0
      %670 = vmatprep.subr.bf16.mxu0 0
      %671 = vmatpush1.bf16.msra.mxu0 0
      %672 = vmatprep.subr.bf16.mxu0 0
      %673 = vmatpush1.bf16.msra.mxu0 0
      %674 = vmatprep.subr.bf16.mxu0 0
      %675 = vmatpush1.bf16.msra.mxu0 0
      %676 = vmatprep.subr.bf16.mxu0 0
      %677 = vmatpush1.bf16.msra.mxu0 0
      %678 = vmatprep.subr.bf16.mxu0 0
      %679 = vmatpush1.bf16.msra.mxu0 0
      %680 = vmatprep.subr.bf16.mxu0 0
      %681 = vmatpush1.bf16.msra.mxu0 0
      %682 = vmatprep.subr.bf16.mxu0 0
      %683 = vmatpush1.bf16.msra.mxu0 0
      %684 = vmatprep.subr.bf16.mxu0 0
      %685 = vmatpush1.bf16.msra.mxu0 0
      %686 = vmatprep.mubr.bf16.mxu0 0
      %687 = vmatmul.mubr.bf16.gmra.mrb[0].mxu0 %v652
      %v688 = vpop.f32.mrb[0].mxu0
      %v689 = vadd.f32 %v638, %v688
      %v690 = vpop.f32.mrb[0].mxu0
      %v691 = vpop.f32.mrb[0].mxu0
      %v692 = vadd.f32 %v638, %v691
      %v693 = vpop.f32.mrb[0].mxu0
      %694 = vdwg.mxu0
      %v695 = vadd.f32 %v471, %v689
      %v696 = vadd.f32 %v474, %v692
      %v697 = vmul.f32 %v695, %v411
      %v698 = vmul.f32 %v696, %v416
      %vm699 = vcmp.ge.s32.totalorder %v478, 2
      %vm700 = vcmp.ge.s32.totalorder %v479, 2
      %v701 = vsel %vm699, 1, 0
      %v702 = vsel %vm700, 1, 0
      %v703 = vcvt.s32.f32 %v701
      %v704 = vcvt.s32.f32 %v702
      %vm705 = vcmp.lt.s32.totalorder %v478, 14
      %vm706 = vcmp.lt.s32.totalorder %v479, 14
      %v707 = vsel %vm705, 1, 0
      %v708 = vsel %vm706, 1, 0
      %v709 = vcvt.s32.f32 %v707
      %v710 = vcvt.s32.f32 %v708
      %v711 = vrot.slane %v697, 6
      %v712 = vrot.slane %v698, 6
      %vm713 = vcmp.lt.s32.totalorder %v478, 2
      %v714 = vsel %vm713, %v711, %v712
      %v715 = vsel %vm713, %v712, %v711
      %v716 = vmul.f32 %v715, %v703
      %v717 = vmul.f32 %v714, %v704
      %v718 = vrot.slane %v697, 2
      %v719 = vrot.slane %v698, 2
      %vm720 = vcmp.lt.s32.totalorder %v478, 6
      %v721 = vsel %vm720, %v718, %v719
      %v722 = vsel %vm720, %v719, %v718
      %v723 = vmul.f32 %v721, %v709
      %v724 = vmul.f32 %v722, %v710
      %727 = vrot.lane.b32.xlu0 %v697, 32
      %v728 = vpop.permute.xlu0 %727
      %729 = vrot.lane.b32.xlu0 %v698, 32
      %v730 = vpop.permute.xlu0 %729
      %735 = vrot.lane.b32.xlu0 %v723, 64
      %v736 = vpop.permute.xlu0 %735
      %737 = vrot.lane.b32.xlu0 %v724, 64
      %v738 = vpop.permute.xlu0 %737
      %v741 = vsel %vm522, %v716, %v728
      %v742 = vsel %vm522, %v717, %v730
      %v743 = vsel %vm525, %v741, %v736
      %v744 = vsel %vm525, %v742, %v738
      %v745 = vpack.c.bf16 %v744, %v743
      %s746 = scalar_lea.vmem %s4, 48
      %v747 = vld [vmem:[%s746] sm:$0xf]
      %v748 = vld [vmem:[%s746 + $0x4] sm:$0xf]
      %v749 = vld [vmem:[%s746 + $0x8] sm:$0xf]
      %v750 = vld [vmem:[%s746 + $0xc] sm:$0xf]
      %v751 = vld [vmem:[%s746 + $0x10] sm:$0xf]
      %v752 = vld [vmem:[%s746 + $0x14] sm:$0xf]
      %v753 = vld [vmem:[%s746 + $0x18] sm:$0xf]
      %v754 = vld [vmem:[%s746 + $0x1c] sm:$0xf]
      %v755 = vld [vmem:[%s746 + $0x20] sm:$0xf]
      %v756 = vld [vmem:[%s746 + $0x24] sm:$0xf]
      %v757 = vld [vmem:[%s746 + $0x28] sm:$0xf]
      %v758 = vld [vmem:[%s746 + $0x2c] sm:$0xf]
      %v759 = vld [vmem:[%s5 + $0x1] sm:$0x1]
      %v760 = vlaneseq
      %v761 = vshrl.u32 %v760, 7
      %v762 = vsub.s32 0, %v761
      %v763 = vrot.slane %v759, %v762
      %v776 = vunpack.c.l.b16 %v747
      %v777 = vunpack.c.l.b16 %v748
      %v778 = vunpack.c.l.b16 %v749
      %v779 = vunpack.c.l.b16 %v750
      %v780 = vunpack.c.l.b16 %v751
      %v781 = vunpack.c.l.b16 %v752
      %v782 = vunpack.c.l.b16 %v753
      %v783 = vunpack.c.l.b16 %v754
      %v784 = vunpack.c.l.b16 %v755
      %v785 = vunpack.c.l.b16 %v756
      %v786 = vunpack.c.l.b16 %v757
      %v787 = vunpack.c.l.b16 %v758
      %v788 = vpack.c.b16 %v777, %v776
      %v789 = vpack.c.b16 %v779, %v778
      %v790 = vpack.c.b16 %v781, %v780
      %v791 = vpack.c.b16 %v783, %v782
      %v792 = vpack.c.b16 %v785, %v784
      %v793 = vpack.c.b16 %v787, %v786
      %v801 = vsel %vm582, %v745, 0
      %803 = vmatprep.subr.bf16.mxu0 0
      %804 = vmatpush1.bf16.msra.mxu0 %v788
      %805 = vmatprep.subr.bf16.mxu0 0
      %806 = vmatpush1.bf16.msra.mxu0 %v789
      %807 = vmatprep.subr.bf16.mxu0 0
      %808 = vmatpush1.bf16.msra.mxu0 %v790
      %809 = vmatprep.subr.bf16.mxu0 0
      %810 = vmatpush1.bf16.msra.mxu0 %v791
      %811 = vmatprep.subr.bf16.mxu0 0
      %812 = vmatpush1.bf16.msra.mxu0 %v792
      %813 = vmatprep.subr.bf16.mxu0 0
      %814 = vmatpush1.bf16.msra.mxu0 %v793
      %815 = vmatprep.subr.bf16.mxu0 0
      %816 = vmatpush1.bf16.msra.mxu0 0
      %817 = vmatprep.subr.bf16.mxu0 0
      %818 = vmatpush1.bf16.msra.mxu0 0
      %819 = vmatprep.subr.bf16.mxu0 0
      %820 = vmatpush1.bf16.msra.mxu0 0
      %821 = vmatprep.subr.bf16.mxu0 0
      %822 = vmatpush1.bf16.msra.mxu0 0
      %823 = vmatprep.subr.bf16.mxu0 0
      %824 = vmatpush1.bf16.msra.mxu0 0
      %825 = vmatprep.subr.bf16.mxu0 0
      %826 = vmatpush1.bf16.msra.mxu0 0
      %827 = vmatprep.subr.bf16.mxu0 0
      %828 = vmatpush1.bf16.msra.mxu0 0
      %829 = vmatprep.subr.bf16.mxu0 0
      %830 = vmatpush1.bf16.msra.mxu0 0
      %831 = vmatprep.subr.bf16.mxu0 0
      %832 = vmatpush1.bf16.msra.mxu0 0
      %833 = vmatprep.subr.bf16.mxu0 0
      %834 = vmatpush1.bf16.msra.mxu0 0
      %835 = vmatprep.mubr.bf16.mxu0 0
      %836 = vmatmul.mubr.bf16.gmra.mrb[0].mxu0 %v801
      %v837 = vpop.f32.mrb[0].mxu0
      %v838 = vadd.f32 %v763, %v837
      %v839 = vpop.f32.mrb[0].mxu0
      %v840 = vpop.f32.mrb[0].mxu0
      %v841 = vadd.f32 %v763, %v840
      %v842 = vpop.f32.mrb[0].mxu0
      %843 = vdwg.mxu0
      %v844 = vmax.f32 %v838, 0.0
      %v845 = vmax.f32 %v841, 0.0
      %v846 = vpack.c.bf16 %v845, %v844
      %s847 = scalar_lea.vmem %s6, 16
      %v848 = vld [vmem:[%s847] sm:$0xf]
      %v849 = vld [vmem:[%s847 + $0x4] sm:$0xf]
      %v850 = vld [vmem:[%s847 + $0x8] sm:$0xf]
      %v851 = vld [vmem:[%s847 + $0xc] sm:$0xf]
      %v852 = vld [vmem:[%s7 + $0x1] sm:$0x1]
      %v853 = vlaneseq
      %v854 = vshrl.u32 %v853, 7
      %v855 = vsub.s32 0, %v854
      %v856 = vrot.slane %v852, %v855
      %v861 = vunpack.c.l.b16 %v848
      %v862 = vunpack.c.l.b16 %v849
      %v863 = vunpack.c.l.b16 %v850
      %v864 = vunpack.c.l.b16 %v851
      %v865 = vpack.c.b16 %v862, %v861
      %v866 = vpack.c.b16 %v864, %v863
      %v870 = vsel %vm522, %v846, 0
      %872 = vmatprep.subr.bf16.mxu0 0
      %873 = vmatpush1.bf16.msra.mxu0 %v865
      %874 = vmatprep.subr.bf16.mxu0 0
      %875 = vmatpush1.bf16.msra.mxu0 %v866
      %876 = vmatprep.subr.bf16.mxu0 0
      %877 = vmatpush1.bf16.msra.mxu0 0
      %878 = vmatprep.subr.bf16.mxu0 0
      %879 = vmatpush1.bf16.msra.mxu0 0
      %880 = vmatprep.subr.bf16.mxu0 0
      %881 = vmatpush1.bf16.msra.mxu0 0
      %882 = vmatprep.subr.bf16.mxu0 0
      %883 = vmatpush1.bf16.msra.mxu0 0
      %884 = vmatprep.subr.bf16.mxu0 0
      %885 = vmatpush1.bf16.msra.mxu0 0
      %886 = vmatprep.subr.bf16.mxu0 0
      %887 = vmatpush1.bf16.msra.mxu0 0
      %888 = vmatprep.subr.bf16.mxu0 0
      %889 = vmatpush1.bf16.msra.mxu0 0
      %890 = vmatprep.subr.bf16.mxu0 0
      %891 = vmatpush1.bf16.msra.mxu0 0
      %892 = vmatprep.subr.bf16.mxu0 0
      %893 = vmatpush1.bf16.msra.mxu0 0
      %894 = vmatprep.subr.bf16.mxu0 0
      %895 = vmatpush1.bf16.msra.mxu0 0
      %896 = vmatprep.subr.bf16.mxu0 0
      %897 = vmatpush1.bf16.msra.mxu0 0
      %898 = vmatprep.subr.bf16.mxu0 0
      %899 = vmatpush1.bf16.msra.mxu0 0
      %900 = vmatprep.subr.bf16.mxu0 0
      %901 = vmatpush1.bf16.msra.mxu0 0
      %902 = vmatprep.subr.bf16.mxu0 0
      %903 = vmatpush1.bf16.msra.mxu0 0
      %904 = vmatprep.mubr.bf16.mxu0 0
      %905 = vmatmul.mubr.bf16.gmra.mrb[0].mxu0 %v870
      %v906 = vpop.f32.mrb[0].mxu0
      %v907 = vadd.f32 %v856, %v906
      %v908 = vpop.f32.mrb[0].mxu0
      %v909 = vpop.f32.mrb[0].mxu0
      %v910 = vadd.f32 %v856, %v909
      %v911 = vpop.f32.mrb[0].mxu0
      %912 = vdwg.mxu0
      %v913 = vadd.f32 %v697, %v907
      %v914 = vadd.f32 %v698, %v910
      %v915 = vmul.f32 %v913, %v411
      %v916 = vmul.f32 %v914, %v416
      %vm917 = vcmp.ge.s32.totalorder %v478, 4
      %vm918 = vcmp.ge.s32.totalorder %v479, 4
      %v919 = vsel %vm917, 1, 0
      %v920 = vsel %vm918, 1, 0
      %v921 = vcvt.s32.f32 %v919
      %v922 = vcvt.s32.f32 %v920
      %vm923 = vcmp.lt.s32.totalorder %v478, 12
      %vm924 = vcmp.lt.s32.totalorder %v479, 12
      %v925 = vsel %vm923, 1, 0
      %v926 = vsel %vm924, 1, 0
      %v927 = vcvt.s32.f32 %v925
      %v928 = vcvt.s32.f32 %v926
      %v929 = vrot.slane %v915, 4
      %v930 = vrot.slane %v916, 4
      %vm931 = vcmp.lt.s32.totalorder %v478, 4
      %v932 = vsel %vm931, %v929, %v930
      %v933 = vsel %vm931, %v930, %v929
      %v934 = vmul.f32 %v933, %v921
      %v935 = vmul.f32 %v932, %v922
      %v936 = vmul.f32 %v932, %v927
      %v937 = vmul.f32 %v933, %v928
      %940 = vrot.lane.b32.xlu0 %v915, 32
      %v941 = vpop.permute.xlu0 %940
      %942 = vrot.lane.b32.xlu0 %v916, 32
      %v943 = vpop.permute.xlu0 %942
      %948 = vrot.lane.b32.xlu0 %v936, 64
      %v949 = vpop.permute.xlu0 %948
      %950 = vrot.lane.b32.xlu0 %v937, 64
      %v951 = vpop.permute.xlu0 %950
      %v954 = vsel %vm522, %v934, %v941
      %v955 = vsel %vm522, %v935, %v943
      %v956 = vsel %vm525, %v954, %v949
      %v957 = vsel %vm525, %v955, %v951
      %v958 = vpack.c.bf16 %v957, %v956
      %s959 = scalar_lea.vmem %s4, 96
      %v960 = vld [vmem:[%s959] sm:$0xf]
      %v961 = vld [vmem:[%s959 + $0x4] sm:$0xf]
      %v962 = vld [vmem:[%s959 + $0x8] sm:$0xf]
      %v963 = vld [vmem:[%s959 + $0xc] sm:$0xf]
      %v964 = vld [vmem:[%s959 + $0x10] sm:$0xf]
      %v965 = vld [vmem:[%s959 + $0x14] sm:$0xf]
      %v966 = vld [vmem:[%s959 + $0x18] sm:$0xf]
      %v967 = vld [vmem:[%s959 + $0x1c] sm:$0xf]
      %v968 = vld [vmem:[%s959 + $0x20] sm:$0xf]
      %v969 = vld [vmem:[%s959 + $0x24] sm:$0xf]
      %v970 = vld [vmem:[%s959 + $0x28] sm:$0xf]
      %v971 = vld [vmem:[%s959 + $0x2c] sm:$0xf]
      %v972 = vld [vmem:[%s5 + $0x2] sm:$0x1]
      %v973 = vlaneseq
      %v974 = vshrl.u32 %v973, 7
      %v975 = vsub.s32 0, %v974
      %v976 = vrot.slane %v972, %v975
      %v989 = vunpack.c.l.b16 %v960
      %v990 = vunpack.c.l.b16 %v961
      %v991 = vunpack.c.l.b16 %v962
      %v992 = vunpack.c.l.b16 %v963
      %v993 = vunpack.c.l.b16 %v964
      %v994 = vunpack.c.l.b16 %v965
      %v995 = vunpack.c.l.b16 %v966
      %v996 = vunpack.c.l.b16 %v967
      %v997 = vunpack.c.l.b16 %v968
      %v998 = vunpack.c.l.b16 %v969
      %v999 = vunpack.c.l.b16 %v970
      %v1000 = vunpack.c.l.b16 %v971
      %v1001 = vpack.c.b16 %v990, %v989
      %v1002 = vpack.c.b16 %v992, %v991
      %v1003 = vpack.c.b16 %v994, %v993
      %v1004 = vpack.c.b16 %v996, %v995
      %v1005 = vpack.c.b16 %v998, %v997
      %v1006 = vpack.c.b16 %v1000, %v999
      %v1014 = vsel %vm582, %v958, 0
      %1016 = vmatprep.subr.bf16.mxu0 0
      %1017 = vmatpush1.bf16.msra.mxu0 %v1001
      %1018 = vmatprep.subr.bf16.mxu0 0
      %1019 = vmatpush1.bf16.msra.mxu0 %v1002
      %1020 = vmatprep.subr.bf16.mxu0 0
      %1021 = vmatpush1.bf16.msra.mxu0 %v1003
      %1022 = vmatprep.subr.bf16.mxu0 0
      %1023 = vmatpush1.bf16.msra.mxu0 %v1004
      %1024 = vmatprep.subr.bf16.mxu0 0
      %1025 = vmatpush1.bf16.msra.mxu0 %v1005
      %1026 = vmatprep.subr.bf16.mxu0 0
      %1027 = vmatpush1.bf16.msra.mxu0 %v1006
      %1028 = vmatprep.subr.bf16.mxu0 0
      %1029 = vmatpush1.bf16.msra.mxu0 0
      %1030 = vmatprep.subr.bf16.mxu0 0
      %1031 = vmatpush1.bf16.msra.mxu0 0
      %1032 = vmatprep.subr.bf16.mxu0 0
      %1033 = vmatpush1.bf16.msra.mxu0 0
      %1034 = vmatprep.subr.bf16.mxu0 0
      %1035 = vmatpush1.bf16.msra.mxu0 0
      %1036 = vmatprep.subr.bf16.mxu0 0
      %1037 = vmatpush1.bf16.msra.mxu0 0
      %1038 = vmatprep.subr.bf16.mxu0 0
      %1039 = vmatpush1.bf16.msra.mxu0 0
      %1040 = vmatprep.subr.bf16.mxu0 0
      %1041 = vmatpush1.bf16.msra.mxu0 0
      %1042 = vmatprep.subr.bf16.mxu0 0
      %1043 = vmatpush1.bf16.msra.mxu0 0
      %1044 = vmatprep.subr.bf16.mxu0 0
      %1045 = vmatpush1.bf16.msra.mxu0 0
      %1046 = vmatprep.subr.bf16.mxu0 0
      %1047 = vmatpush1.bf16.msra.mxu0 0
      %1048 = vmatprep.mubr.bf16.mxu0 0
      %1049 = vmatmul.mubr.bf16.gmra.mrb[0].mxu0 %v1014
      %v1050 = vpop.f32.mrb[0].mxu0
      %v1051 = vadd.f32 %v976, %v1050
      %v1052 = vpop.f32.mrb[0].mxu0
      %v1053 = vpop.f32.mrb[0].mxu0
      %v1054 = vadd.f32 %v976, %v1053
      %v1055 = vpop.f32.mrb[0].mxu0
      %1056 = vdwg.mxu0
      %v1057 = vmax.f32 %v1051, 0.0
      %v1058 = vmax.f32 %v1054, 0.0
      %v1059 = vpack.c.bf16 %v1058, %v1057
      %s1060 = scalar_lea.vmem %s6, 32
      %v1061 = vld [vmem:[%s1060] sm:$0xf]
      %v1062 = vld [vmem:[%s1060 + $0x4] sm:$0xf]
      %v1063 = vld [vmem:[%s1060 + $0x8] sm:$0xf]
      %v1064 = vld [vmem:[%s1060 + $0xc] sm:$0xf]
      %v1065 = vld [vmem:[%s7 + $0x2] sm:$0x1]
      %v1066 = vlaneseq
      %v1067 = vshrl.u32 %v1066, 7
      %v1068 = vsub.s32 0, %v1067
      %v1069 = vrot.slane %v1065, %v1068
      %v1074 = vunpack.c.l.b16 %v1061
      %v1075 = vunpack.c.l.b16 %v1062
      %v1076 = vunpack.c.l.b16 %v1063
      %v1077 = vunpack.c.l.b16 %v1064
      %v1078 = vpack.c.b16 %v1075, %v1074
      %v1079 = vpack.c.b16 %v1077, %v1076
      %v1083 = vsel %vm522, %v1059, 0
      %1085 = vmatprep.subr.bf16.mxu0 0
      %1086 = vmatpush1.bf16.msra.mxu0 %v1078
      %1087 = vmatprep.subr.bf16.mxu0 0
      %1088 = vmatpush1.bf16.msra.mxu0 %v1079
      %1089 = vmatprep.subr.bf16.mxu0 0
      %1090 = vmatpush1.bf16.msra.mxu0 0
      %1091 = vmatprep.subr.bf16.mxu0 0
      %1092 = vmatpush1.bf16.msra.mxu0 0
      %1093 = vmatprep.subr.bf16.mxu0 0
      %1094 = vmatpush1.bf16.msra.mxu0 0
      %1095 = vmatprep.subr.bf16.mxu0 0
      %1096 = vmatpush1.bf16.msra.mxu0 0
      %1097 = vmatprep.subr.bf16.mxu0 0
      %1098 = vmatpush1.bf16.msra.mxu0 0
      %1099 = vmatprep.subr.bf16.mxu0 0
      %1100 = vmatpush1.bf16.msra.mxu0 0
      %1101 = vmatprep.subr.bf16.mxu0 0
      %1102 = vmatpush1.bf16.msra.mxu0 0
      %1103 = vmatprep.subr.bf16.mxu0 0
      %1104 = vmatpush1.bf16.msra.mxu0 0
      %1105 = vmatprep.subr.bf16.mxu0 0
      %1106 = vmatpush1.bf16.msra.mxu0 0
      %1107 = vmatprep.subr.bf16.mxu0 0
      %1108 = vmatpush1.bf16.msra.mxu0 0
      %1109 = vmatprep.subr.bf16.mxu0 0
      %1110 = vmatpush1.bf16.msra.mxu0 0
      %1111 = vmatprep.subr.bf16.mxu0 0
      %1112 = vmatpush1.bf16.msra.mxu0 0
      %1113 = vmatprep.subr.bf16.mxu0 0
      %1114 = vmatpush1.bf16.msra.mxu0 0
      %1115 = vmatprep.subr.bf16.mxu0 0
      %1116 = vmatpush1.bf16.msra.mxu0 0
      %1117 = vmatprep.mubr.bf16.mxu0 0
      %1118 = vmatmul.mubr.bf16.gmra.mrb[0].mxu0 %v1083
      %v1119 = vpop.f32.mrb[0].mxu0
      %v1120 = vadd.f32 %v1069, %v1119
      %v1121 = vpop.f32.mrb[0].mxu0
      %v1122 = vpop.f32.mrb[0].mxu0
      %v1123 = vadd.f32 %v1069, %v1122
      %v1124 = vpop.f32.mrb[0].mxu0
      %1125 = vdwg.mxu0
      %v1126 = vadd.f32 %v915, %v1120
      %v1127 = vadd.f32 %v916, %v1123
      %v1128 = vmul.f32 %v1126, %v411
      %v1129 = vmul.f32 %v1127, %v416
      %v1130 = vpack.c.bf16 %v1129, %v1128
      %v1131 = vld [vmem:[%s8] sm:$0xf]
      %v1132 = vld [vmem:[%s8 + $0x4] sm:$0xf]
      %v1133 = vld [vmem:[%s8 + $0x8] sm:$0xf]
      %v1134 = vld [vmem:[%s8 + $0xc] sm:$0xf]
      %v1135 = vld [vmem:[%s9] sm:$0x1]
      %v1137 = vlaneseq
      %v1138 = vshrl.u32 %v1137, 7
      %v1139 = vsub.s32 0, %v1138
      %v1140 = vrot.slane %v1135, %v1139
      %v1146 = vunpack.c.l.b16 %v1131
      %v1147 = vunpack.c.l.b16 %v1132
      %v1148 = vunpack.c.l.b16 %v1133
      %v1149 = vunpack.c.l.b16 %v1134
      %v1150 = vpack.c.b16 %v1147, %v1146
      %v1151 = vpack.c.b16 %v1149, %v1148
      %v1155 = vsel %vm522, %v1130, 0
      %1157 = vmatprep.subr.bf16.mxu0 0
      %1158 = vmatpush1.bf16.msra.mxu0 %v1150
      %1159 = vmatprep.subr.bf16.mxu0 0
      %1160 = vmatpush1.bf16.msra.mxu0 %v1151
      %1161 = vmatprep.subr.bf16.mxu0 0
      %1162 = vmatpush1.bf16.msra.mxu0 0
      %1163 = vmatprep.subr.bf16.mxu0 0
      %1164 = vmatpush1.bf16.msra.mxu0 0
      %1165 = vmatprep.subr.bf16.mxu0 0
      %1166 = vmatpush1.bf16.msra.mxu0 0
      %1167 = vmatprep.subr.bf16.mxu0 0
      %1168 = vmatpush1.bf16.msra.mxu0 0
      %1169 = vmatprep.subr.bf16.mxu0 0
      %1170 = vmatpush1.bf16.msra.mxu0 0
      %1171 = vmatprep.subr.bf16.mxu0 0
      %1172 = vmatpush1.bf16.msra.mxu0 0
      %1173 = vmatprep.subr.bf16.mxu0 0
      %1174 = vmatpush1.bf16.msra.mxu0 0
      %1175 = vmatprep.subr.bf16.mxu0 0
      %1176 = vmatpush1.bf16.msra.mxu0 0
      %1177 = vmatprep.subr.bf16.mxu0 0
      %1178 = vmatpush1.bf16.msra.mxu0 0
      %1179 = vmatprep.subr.bf16.mxu0 0
      %1180 = vmatpush1.bf16.msra.mxu0 0
      %1181 = vmatprep.subr.bf16.mxu0 0
      %1182 = vmatpush1.bf16.msra.mxu0 0
      %1183 = vmatprep.subr.bf16.mxu0 0
      %1184 = vmatpush1.bf16.msra.mxu0 0
      %1185 = vmatprep.subr.bf16.mxu0 0
      %1186 = vmatpush1.bf16.msra.mxu0 0
      %1187 = vmatprep.subr.bf16.mxu0 0
      %1188 = vmatpush1.bf16.msra.mxu0 0
      %1189 = vmatprep.mubr.bf16.mxu0 0
      %1190 = vmatmul.mubr.bf16.gmra.mrb[0].mxu0 %v1155
      %v1191 = vpop.f32.mrb[0].mxu0
      %v1192 = vadd.f32 %v1140, %v1191
      %v1193 = vpop.f32.mrb[0].mxu0
      %v1194 = vpop.f32.mrb[0].mxu0
      %v1195 = vadd.f32 %v1140, %v1194
      %v1196 = vpop.f32.mrb[0].mxu0
      %1197 = vdwg.mxu0
      %1198 = vst [vmem:[%s379] sm:$0xff] %v1192
      %1199 = vst [vmem:[%s379 + $0x8] sm:$0xff] %v1195
      %p1200 = scmp.lt.s32.totalorder %s21, 1
      %s1201 = scalar_select %p1200, %s21, 1
      %s1202 = smul.addr %s1201, 2
      %s1203 = smul.addr %s1202, 8
      %s1204 = scalar_lea.vmem %s10, %s1203
      // Predicated region
      $region61: #{multi_stage_forward.6} parent=59 // pred_check
        %p1205 = pneg %p259
      $region62: #{multi_stage_forward.6} parent=59 // pred_check_branch
        %1207 = sbr.rel (%p1205) target = $region64
      $region63: #{multi_stage_forward.6} parent=59 // pred_region
        _
      $region64: #{multi_stage_forward.6} parent=59 // pred_fallthru
        _
    $region60: #{multi_stage_forward.6} parent=5 // pred_fallthru
      _
    %p1208 = scmp.le.s32.totalorder 2, %s16
    // Predicated region
    $region65: #{multi_stage_forward.6} parent=5 // pred_check
      %p1209 = pneg %p1208
    $region66: #{multi_stage_forward.6} parent=5 // pred_check_branch
      %1211 = sbr.rel (%p1209) target = $region68
    $region67: #{multi_stage_forward.6} parent=5 // pred_region
      %s1212 = ssub.s32 %s16, 2
      // Predicated region
      $region69: #{multi_stage_forward.6} parent=67 // pred_check
        %p1213 = pneg %p265
      $region70: #{multi_stage_forward.6} parent=67 // pred_check_branch
        %1215 = sbr.rel (%p1213) target = $region72
      $region71: #{multi_stage_forward.6} parent=67 // pred_region
        %p1216 = scmp.lt.s32.totalorder %s22, 1
        %s1217 = scalar_select %p1216, %s22, 1
        %s1218 = smul.addr %s1217, 2
        %s1219 = smul.addr %s1218, 8
        %s1220 = scalar_lea.vmem %s10, %s1219
      $region72: #{multi_stage_forward.6} parent=67 // pred_fallthru
        _
    $region68: #{multi_stage_forward.6} parent=5 // pred_fallthru
      _
  $region6: #{multi_stage_forward.6} parent=0 // loop_footer
    %s20 = sadd.s32 1, %s16
  $region7: #{multi_stage_forward.6} parent=0 // loop_footer_branch
    %15 = sbr.rel target = $region3
  $region8: #{multi_stage_forward.6} parent=0 // loop_exit
    _

</llo_original>
